<compile_context>
chip_gen: v7x
topology: tpu7x:2x2x1
jax: 0.10.0
libtpu: 0.0.40
codegen_flags: <defaults>
</compile_context>

<pallas_src>
import math
from functools import partial

import jax
import jax.numpy as jnp
from jax.experimental import pallas as pl
from jax.experimental.pallas import tpu as pltpu

OUT_PAD = 128  # conv2 output channels padded to one full lane group


def _round_up(x, m):
    return ((x + m - 1) // m) * m


def _pick_batch_block(batch):
    """Largest block <= 8 dividing B that still leaves >= 2 grid steps (megacore)."""
    for bb in (8, 4, 2, 1):
        if batch % bb == 0 and batch // bb >= 2:
            return bb
    return 1


# -----------------------------------------------------------------------------
# Fused Pallas kernel: q_sample + conv1 + (time emb, SiLU) + conv2 per batch block
# -----------------------------------------------------------------------------

def _ddpm_fused_kernel(xcol_ref, ncol_ref, a_ref, c_ref, temb_ref,
                       w1_ref, b1_ref, w2_ref, b2_ref, out_ref, *, H, W):
    BB, HW, K1 = xcol_ref.shape
    DIM = w1_ref.shape[1]
    NOUT = w2_ref.shape[2]

    # --- q_sample on the im2col'd image / noise (linearity => identical result) --
    xq = a_ref[...] * xcol_ref[...] + c_ref[...] * ncol_ref[...]     # f32
    xq = xq.astype(jnp.bfloat16)                                     # single cast

    # --- conv1: 3x3, C -> DIM as ONE matmul over the folded K = 9*C -------------
    h = jnp.dot(xq.reshape(BB * HW, K1), w1_ref[...],
                preferred_element_type=jnp.float32)                  # (BB*HW, DIM)
    h = h.reshape(BB, HW, DIM) + b1_ref[...] + temb_ref[...]         # bias + time emb
    h = h * jax.nn.sigmoid(h)                                        # SiLU (f32, real DIM)
    hb = h.astype(jnp.bfloat16)                                      # single cast

    # --- conv2: 3x3, DIM -> (lane-padded) C -------------------------------------
    # Zero-border shifted views of hb built from sublane-aligned slices + column
    # masks; accumulated as a value (no VMEM accumulator ref, no hpad scratch).
    col = jax.lax.broadcasted_iota(jnp.int32, (1, HW, 1), 1) % W
    zeros_hb = jnp.zeros_like(hb)
    src_by_kw = (
        jnp.where(col != (W - 1), hb, zeros_hb),   # kw=0 (reads col j-1): drop col W-1
        hb,                                        # kw=1
        jnp.where(col != 0, hb, zeros_hb),         # kw=2 (reads col j+1): drop col 0
    )

    out = None
    for kh in range(3):
        for kw in range(3):
            src = src_by_kw[kw]
            s = (kh - 1) * W + (kw - 1)            # flat row shift for this tap
            if s > 0:
                part = jnp.concatenate(
                    [src[:, s:, :], jnp.zeros((BB, s, DIM), src.dtype)], axis=1)
            elif s < 0:
                part = jnp.concatenate(
                    [jnp.zeros((BB, -s, DIM), src.dtype), src[:, :HW + s, :]], axis=1)
            else:
                part = src
            contrib = jnp.dot(part.reshape(BB * HW, DIM), w2_ref[kh * 3 + kw],
                              preferred_element_type=jnp.float32)
            out = contrib if out is None else out + contrib

    out = out + b2_ref[...]
    out_ref[...] = out.reshape(BB, HW, NOUT)       # lane-dense (., ., 128) store


def ddpm_fused_forward(xcol, ncol, a, c, temb, w1, b1, w2, b2, H, W):
    B, HW, K1 = xcol.shape
    DIM = w1.shape[1]
    NOUT = w2.shape[2]
    BBLK = _pick_batch_block(B)
    grid = (B // BBLK,)

    in_specs = [
        pl.BlockSpec((BBLK, HW, K1), lambda i: (i, 0, 0)),        # im2col(x)
        pl.BlockSpec((BBLK, HW, K1), lambda i: (i, 0, 0)),        # im2col(noise)
        pl.BlockSpec((BBLK, 1, 1), lambda i: (i, 0, 0)),          # sqrt(alpha_cumprod)_t
        pl.BlockSpec((BBLK, 1, 1), lambda i: (i, 0, 0)),          # sqrt(1-alpha_cumprod)_t
        pl.BlockSpec((BBLK, 1, DIM), lambda i: (i, 0, 0)),        # time embedding
        pl.BlockSpec((K1, DIM), lambda i: (0, 0)),                # conv1 weight (folded K)
        pl.BlockSpec((1, DIM), lambda i: (0, 0)),                 # conv1 bias
        pl.BlockSpec((9, DIM, NOUT), lambda i: (0, 0, 0)),        # conv2 weight (per tap)
        pl.BlockSpec((1, NOUT), lambda i: (0, 0)),                # conv2 bias (padded)
    ]
    out_specs = pl.BlockSpec((BBLK, HW, NOUT), lambda i: (i, 0, 0))

    return pl.pallas_call(
        partial(_ddpm_fused_kernel, H=H, W=W),
        out_shape=jax.ShapeDtypeStruct((B, HW, NOUT), jnp.float32),
        grid=grid,
        in_specs=in_specs,
        out_specs=out_specs,
        compiler_params=pltpu.CompilerParams(dimension_semantics=("parallel",)),
    )(xcol, ncol, a, c, temb, w1, b1, w2, b2)


# -----------------------------------------------------------------------------
# Glue (plain JAX): schedules, time embedding, im2col, one-time weight repack
# -----------------------------------------------------------------------------

def linear_beta_schedule(steps):
    return jnp.linspace(1e-4, 0.02, steps, dtype=jnp.float32)


def ddpm_schedules(steps):
    betas = linear_beta_schedule(steps)
    alphas = 1.0 - betas
    alphas_cumprod = jnp.cumprod(alphas, axis=0)
    alphas_cumprod_prev = jnp.pad(alphas_cumprod[:-1], (1, 0), constant_values=1.0)
    return dict(
        betas=betas,
        alphas=alphas,
        alphas_cumprod=alphas_cumprod,
        alphas_cumprod_prev=alphas_cumprod_prev,
        sqrt_recip_alphas=jnp.sqrt(1.0 / alphas),
        sqrt_alphas_cumprod=jnp.sqrt(alphas_cumprod),
        sqrt_one_minus_alphas_cumprod=jnp.sqrt(1.0 - alphas_cumprod),
        posterior_variance=betas * (1.0 - alphas_cumprod_prev) / (1.0 - alphas_cumprod),
    )


def sinusoidal_time_embedding(t, dim):
    half = dim // 2
    freqs = jnp.exp(jnp.arange(half, dtype=jnp.float32)
                    * -(math.log(10000.0) / (half - 1)))
    args = t.astype(jnp.float32)[:, None] * freqs[None, :]
    return jnp.concatenate([jnp.sin(args), jnp.cos(args)], axis=-1)   # (B, dim)


def _im2col_3x3(x_nhwc):
    """(B,H,W,C) -> (B, H*W, 9*C), 3x3 neighbourhoods with zero border.
    Chunk order is kh-major, kw, then channel (matches weight repack below)."""
    B, H, W, C = x_nhwc.shape
    xp = jnp.pad(x_nhwc, ((0, 0), (1, 1), (1, 1), (0, 0)))
    cols = [xp[:, kh:kh + H, kw:kw + W, :] for kh in range(3) for kw in range(3)]
    return jnp.concatenate(cols, axis=-1).reshape(B, H * W, 9 * C)


def prepare_weights(params, dim, channels):
    """One-time repack (outside the jitted forward): conv kernels into matmul
    layout, MXU operands cast to bf16, conv2 N zero-padded to OUT_PAD."""
    k_raw = 9 * channels
    k1 = _round_up(k_raw, 8)
    # w1m[(kh*3+kw)*C + ci, co] = conv1_w[co, ci, kh, kw]; K padded to k1
    w1 = jnp.transpose(params["conv1_w"], (2, 3, 1, 0)).reshape(k_raw, dim)
    w1 = jnp.pad(w1, ((0, k1 - k_raw), (0, 0)))
    # w2m[kh*3+kw, ci, co(padded)] = conv2_w[co, ci, kh, kw]
    w2 = jnp.transpose(params["conv2_w"], (2, 3, 1, 0)).reshape(9, dim, channels)
    w2 = jnp.pad(w2, ((0, 0), (0, 0), (0, OUT_PAD - channels)))
    b2 = jnp.pad(params["conv2_b"], ((0, 0), (0, OUT_PAD - channels)))
    return dict(
        conv1_wm=w1.astype(jnp.bfloat16),
        conv1_b=params["conv1_b"],
        conv2_wm=w2.astype(jnp.bfloat16),
        conv2_b=b2,
        time_w1=params["time_w1"], time_b1=params["time_b1"],
        time_w2=params["time_w2"], time_b2=params["time_b2"],
    )


def init_params(dim, channels, key):
    ks = jax.random.split(key, 6)
    p = {}
    p["conv1_w"] = 0.05 * jax.random.normal(ks[0], (dim, channels, 3, 3), jnp.float32)
    p["conv1_b"] = jnp.zeros((1, dim), jnp.float32)
    p["time_w1"] = 0.05 * jax.random.normal(ks[1], (dim, dim), jnp.float32)
    p["time_b1"] = jnp.zeros((1, dim), jnp.float32)
    p["time_w2"] = 0.05 * jax.random.normal(ks[2], (dim, dim), jnp.float32)
    p["time_b2"] = jnp.zeros((1, dim), jnp.float32)
    p["conv2_w"] = 0.05 * jax.random.normal(ks[3], (channels, dim, 3, 3), jnp.float32)
    p["conv2_b"] = jnp.zeros((1, channels), jnp.float32)
    return p


# -----------------------------------------------------------------------------
# DDPM forward (matches DDPM.forward(x, t, noise) semantics)
# -----------------------------------------------------------------------------

@partial(jax.jit, static_argnames=("dim",))
def ddpm_forward(weights, buffers, x_nchw, t, noise_nchw, dim):
    B, C, H, W = x_nchw.shape

    x = jnp.transpose(x_nchw, (0, 2, 3, 1)).astype(jnp.float32)       # NCHW -> NHWC
    n = jnp.transpose(noise_nchw, (0, 2, 3, 1)).astype(jnp.float32)

    # im2col for both image and noise; q_sample (a*x + c*n) is applied in-kernel
    # on this representation (valid by linearity of im2col).
    k1 = weights["conv1_wm"].shape[0]
    xcol = _im2col_3x3(x)
    ncol = _im2col_3x3(n)
    kpad = k1 - 9 * C
    if kpad:
        xcol = jnp.pad(xcol, ((0, 0), (0, 0), (0, kpad)))
        ncol = jnp.pad(ncol, ((0, 0), (0, 0), (0, kpad)))

    a = jnp.take(buffers["sqrt_alphas_cumprod"], t).reshape(B, 1, 1)
    c = jnp.take(buffers["sqrt_one_minus_alphas_cumprod"], t).reshape(B, 1, 1)

    # Time-embedding MLP hoisted out of the kernel (batched, tiny).
    semb = sinusoidal_time_embedding(t, dim)
    e = semb @ weights["time_w1"] + weights["time_b1"]
    e = e * jax.nn.sigmoid(e)
    temb = (e @ weights["time_w2"] + weights["time_b2"]).reshape(B, 1, dim)

    out = ddpm_fused_forward(xcol, ncol, a, c, temb,
                             weights["conv1_wm"], weights["conv1_b"],
                             weights["conv2_wm"], weights["conv2_b"], H, W)

    pred = out[:, :, :C].reshape(B, H, W, C)         # drop lane padding
    return jnp.transpose(pred, (0, 3, 1, 2))         # back to NCHW


# -----------------------------------------------------------------------------
# Main
# -----------------------------------------------------------------------------

if __name__ == "__main__":
    B, C, H, W = 2, 3, 16, 16
    DIM = 32
    STEPS = 64

    key = jax.random.PRNGKey(0)
    k_x, k_n, k_t, k_p = jax.random.split(key, 4)

    x = jax.random.normal(k_x, (B, C, H, W), jnp.float32)
    noise = jax.random.normal(k_n, (B, C, H, W), jnp.float32)
    t = jax.random.randint(k_t, (B,), 0, STEPS, dtype=jnp.int32)

    params = init_params(DIM, C, k_p)
    weights = prepare_weights(params, DIM, C)   # one-time repack, outside jit path
    buffers = ddpm_schedules(STEPS)

    out = ddpm_forward(weights, buffers, x, t, noise, DIM)
    out = jax.block_until_ready(out)

    assert out.shape == (B, C, H, W), out.shape
    assert bool(jnp.all(jnp.isfinite(out)))
    print("KERNEL_OK")
</pallas_src>

<mosaic_0001>
module attributes {stable_mosaic.version = 11 : i64} {
  func.func @_ddpm_fused_kernel(%arg0: i32, %arg1: memref<1x256x32xf32, #tpu.memory_space<vmem>>, %arg2: memref<1x256x32xf32, #tpu.memory_space<vmem>>, %arg3: memref<1x1x1xf32, #tpu.memory_space<vmem>>, %arg4: memref<1x1x1xf32, #tpu.memory_space<vmem>>, %arg5: memref<1x1x32xf32, #tpu.memory_space<vmem>>, %arg6: memref<32x32xbf16, #tpu.memory_space<vmem>>, %arg7: memref<1x32xf32, #tpu.memory_space<vmem>>, %arg8: memref<9x32x128xbf16, #tpu.memory_space<vmem>>, %arg9: memref<1x128xf32, #tpu.memory_space<vmem>>, %arg10: memref<1x256x128xf32, #tpu.memory_space<vmem>>) attributes {dimension_semantics = [#tpu.dimension_semantics<parallel>], iteration_bounds = array<i64: 2>, scalar_prefetch = 0 : i64, scratch_operands = 0 : i64, tpu.core_type = #tpu.core_type<tc>, window_params = [{transform_indices = @transform_0, window_bounds = array<i64: 1, 256, 32>}, {transform_indices = @transform_1, window_bounds = array<i64: 1, 256, 32>}, {transform_indices = @transform_2, window_bounds = array<i64: 1, 1, 1>}, {transform_indices = @transform_3, window_bounds = array<i64: 1, 1, 1>}, {transform_indices = @transform_4, window_bounds = array<i64: 1, 1, 32>}, {pipeline_mode = #tpu.pipeline_mode<synchronous>, transform_indices = @transform_5, window_bounds = array<i64: 32, 32>}, {pipeline_mode = #tpu.pipeline_mode<synchronous>, transform_indices = @transform_6, window_bounds = array<i64: 1, 32>}, {pipeline_mode = #tpu.pipeline_mode<synchronous>, transform_indices = @transform_7, window_bounds = array<i64: 9, 32, 128>}, {pipeline_mode = #tpu.pipeline_mode<synchronous>, transform_indices = @transform_8, window_bounds = array<i64: 1, 128>}, {transform_indices = @transform_9, window_bounds = array<i64: 1, 256, 128>}]} {
    %c0 = arith.constant 0 : index
    %c0_0 = arith.constant 0 : index
    %c0_1 = arith.constant 0 : index
    %0 = vector.load %arg3[%c0, %c0_0, %c0_1] : memref<1x1x1xf32, #tpu.memory_space<vmem>>, vector<1x1x1xf32>
    %c0_2 = arith.constant 0 : index
    %c0_3 = arith.constant 0 : index
    %c0_4 = arith.constant 0 : index
    %1 = vector.load %arg1[%c0_2, %c0_3, %c0_4] : memref<1x256x32xf32, #tpu.memory_space<vmem>>, vector<1x256x32xf32>
    %2 = vector.broadcast %0 : vector<1x1x1xf32> to vector<1x256x32xf32>
    %3 = arith.mulf %2, %1 : vector<1x256x32xf32>
    %c0_5 = arith.constant 0 : index
    %c0_6 = arith.constant 0 : index
    %c0_7 = arith.constant 0 : index
    %4 = vector.load %arg4[%c0_5, %c0_6, %c0_7] : memref<1x1x1xf32, #tpu.memory_space<vmem>>, vector<1x1x1xf32>
    %c0_8 = arith.constant 0 : index
    %c0_9 = arith.constant 0 : index
    %c0_10 = arith.constant 0 : index
    %5 = vector.load %arg2[%c0_8, %c0_9, %c0_10] : memref<1x256x32xf32, #tpu.memory_space<vmem>>, vector<1x256x32xf32>
    %6 = vector.broadcast %4 : vector<1x1x1xf32> to vector<1x256x32xf32>
    %7 = arith.mulf %6, %5 : vector<1x256x32xf32>
    %8 = arith.addf %3, %7 : vector<1x256x32xf32>
    %9 = arith.truncf %8 : vector<1x256x32xf32> to vector<1x256x32xbf16>
    %10 = vector.shape_cast %9 : vector<1x256x32xbf16> to vector<256x32xbf16>
    %c0_11 = arith.constant 0 : index
    %c0_12 = arith.constant 0 : index
    %11 = vector.load %arg6[%c0_11, %c0_12] : memref<32x32xbf16, #tpu.memory_space<vmem>>, vector<32x32xbf16>
    %cst = arith.constant dense<0.000000e+00> : vector<256x32xf32>
    %12 = tpu.matmul %10, %11, %cst {dimension_numbers = #tpu.dot_dimension_numbers<[1], [0], [0], [1], [0, 0, 1, 1], [], []>} : vector<256x32xbf16>, vector<32x32xbf16>, vector<256x32xf32> -> vector<256x32xf32>
    %13 = vector.shape_cast %12 : vector<256x32xf32> to vector<1x256x32xf32>
    %c0_13 = arith.constant 0 : index
    %c0_14 = arith.constant 0 : index
    %14 = vector.load %arg7[%c0_13, %c0_14] : memref<1x32xf32, #tpu.memory_space<vmem>>, vector<1x32xf32>
    %15 = vector.shape_cast %14 : vector<1x32xf32> to vector<1x1x32xf32>
    %16 = vector.broadcast %15 : vector<1x1x32xf32> to vector<1x256x32xf32>
    %17 = arith.addf %13, %16 : vector<1x256x32xf32>
    %c0_15 = arith.constant 0 : index
    %c0_16 = arith.constant 0 : index
    %c0_17 = arith.constant 0 : index
    %18 = vector.load %arg5[%c0_15, %c0_16, %c0_17] : memref<1x1x32xf32, #tpu.memory_space<vmem>>, vector<1x1x32xf32>
    %19 = vector.broadcast %18 : vector<1x1x32xf32> to vector<1x256x32xf32>
    %20 = arith.addf %17, %19 : vector<1x256x32xf32>
    %21 = arith.negf %20 : vector<1x256x32xf32>
    %22 = math.exp %21 : vector<1x256x32xf32>
    %cst_18 = arith.constant 1.000000e+00 : f32
    %23 = vector.broadcast %cst_18 : f32 to vector<1x256x32xf32>
    %24 = arith.addf %23, %22 : vector<1x256x32xf32>
    %25 = arith.divf %23, %24 : vector<1x256x32xf32>
    %26 = arith.mulf %20, %25 : vector<1x256x32xf32>
    %27 = arith.truncf %26 : vector<1x256x32xf32> to vector<1x256x32xbf16>
    %28 = tpu.iota {dimensions = array<i32: 1>} : vector<1x256x1xi32>
    %c16_i32 = arith.constant 16 : i32
    %c0_i32 = arith.constant 0 : i32
    %29 = arith.cmpi eq, %c16_i32, %c0_i32 : i32
    %c1_i32 = arith.constant 1 : i32
    %30 = arith.select %29, %c1_i32, %c16_i32 : i32
    %31 = vector.broadcast %30 : i32 to vector<1x256x1xi32>
    %32 = arith.remsi %28, %31 : vector<1x256x1xi32>
    %c0_i32_19 = arith.constant 0 : i32
    %33 = vector.broadcast %c0_i32_19 : i32 to vector<1x256x1xi32>
    %34 = arith.cmpi ne, %32, %33 : vector<1x256x1xi32>
    %c0_i32_20 = arith.constant 0 : i32
    %35 = vector.broadcast %c0_i32_20 : i32 to vector<1x256x1xi32>
    %36 = arith.cmpi slt, %32, %35 : vector<1x256x1xi32>
    %c0_i32_21 = arith.constant 0 : i32
    %37 = arith.cmpi slt, %30, %c0_i32_21 : i32
    %38 = vector.broadcast %37 : i1 to vector<1x256x1xi1>
    %39 = vector.broadcast %38 : vector<1x256x1xi1> to vector<1x256x1xi1>
    %40 = arith.xori %36, %39 : vector<1x256x1xi1>
    %41 = arith.andi %40, %34 : vector<1x256x1xi1>
    %42 = vector.broadcast %30 : i32 to vector<1x256x1xi32>
    %43 = arith.addi %32, %42 : vector<1x256x1xi32>
    %44 = arith.select %41, %43, %32 : vector<1x256x1xi1>, vector<1x256x1xi32>
    %cst_22 = arith.constant 0.000000e+00 : bf16
    %45 = vector.broadcast %cst_22 : bf16 to vector<1x256x32xbf16>
    %c15_i32 = arith.constant 15 : i32
    %46 = vector.broadcast %c15_i32 : i32 to vector<1x256x1xi32>
    %47 = arith.cmpi ne, %44, %46 : vector<1x256x1xi32>
    %48 = vector.shape_cast %47 : vector<1x256x1xi1> to vector<1x256x1xi1>
    %49 = vector.broadcast %48 : vector<1x256x1xi1> to vector<1x256x32xi1>
    %50 = arith.select %49, %27, %45 : vector<1x256x32xi1>, vector<1x256x32xbf16>
    %c0_i32_23 = arith.constant 0 : i32
    %51 = vector.broadcast %c0_i32_23 : i32 to vector<1x256x1xi32>
    %52 = arith.cmpi ne, %44, %51 : vector<1x256x1xi32>
    %53 = vector.shape_cast %52 : vector<1x256x1xi1> to vector<1x256x1xi1>
    %54 = vector.broadcast %53 : vector<1x256x1xi1> to vector<1x256x32xi1>
    %55 = arith.select %54, %27, %45 : vector<1x256x32xi1>, vector<1x256x32xbf16>
    %cst_24 = arith.constant 0.000000e+00 : bf16
    %56 = vector.broadcast %cst_24 : bf16 to vector<1x17x32xbf16>
    %57 = vector.extract_strided_slice %50 {offsets = [0, 0, 0], sizes = [1, 239, 32], strides = [1, 1, 1]} : vector<1x256x32xbf16> to vector<1x239x32xbf16>
    %58 = tpu.concatenate %56, %57 in 1 : vector<1x17x32xbf16>, vector<1x239x32xbf16> -> vector<1x256x32xbf16>
    %59 = vector.shape_cast %58 : vector<1x256x32xbf16> to vector<256x32xbf16>
    %c0_25 = arith.constant 0 : index
    %c0_26 = arith.constant 0 : index
    %c0_27 = arith.constant 0 : index
    %60 = vector.load %arg8[%c0_25, %c0_26, %c0_27] : memref<9x32x128xbf16, #tpu.memory_space<vmem>>, vector<1x32x128xbf16>
    %61 = vector.shape_cast %60 : vector<1x32x128xbf16> to vector<32x128xbf16>
    %cst_28 = arith.constant dense<0.000000e+00> : vector<256x128xf32>
    %62 = tpu.matmul %59, %61, %cst_28 {dimension_numbers = #tpu.dot_dimension_numbers<[1], [0], [0], [1], [0, 0, 1, 1], [], []>} : vector<256x32xbf16>, vector<32x128xbf16>, vector<256x128xf32> -> vector<256x128xf32>
    %cst_29 = arith.constant 0.000000e+00 : bf16
    %63 = vector.broadcast %cst_29 : bf16 to vector<1x16x32xbf16>
    %64 = vector.extract_strided_slice %27 {offsets = [0, 0, 0], sizes = [1, 240, 32], strides = [1, 1, 1]} : vector<1x256x32xbf16> to vector<1x240x32xbf16>
    %65 = tpu.concatenate %63, %64 in 1 : vector<1x16x32xbf16>, vector<1x240x32xbf16> -> vector<1x256x32xbf16>
    %66 = vector.shape_cast %65 : vector<1x256x32xbf16> to vector<256x32xbf16>
    %c1 = arith.constant 1 : index
    %c0_30 = arith.constant 0 : index
    %c0_31 = arith.constant 0 : index
    %67 = vector.load %arg8[%c1, %c0_30, %c0_31] : memref<9x32x128xbf16, #tpu.memory_space<vmem>>, vector<1x32x128xbf16>
    %68 = vector.shape_cast %67 : vector<1x32x128xbf16> to vector<32x128xbf16>
    %cst_32 = arith.constant dense<0.000000e+00> : vector<256x128xf32>
    %69 = tpu.matmul %66, %68, %cst_32 {dimension_numbers = #tpu.dot_dimension_numbers<[1], [0], [0], [1], [0, 0, 1, 1], [], []>} : vector<256x32xbf16>, vector<32x128xbf16>, vector<256x128xf32> -> vector<256x128xf32>
    %70 = arith.addf %62, %69 : vector<256x128xf32>
    %cst_33 = arith.constant 0.000000e+00 : bf16
    %71 = vector.broadcast %cst_33 : bf16 to vector<1x15x32xbf16>
    %72 = vector.extract_strided_slice %55 {offsets = [0, 0, 0], sizes = [1, 241, 32], strides = [1, 1, 1]} : vector<1x256x32xbf16> to vector<1x241x32xbf16>
    %73 = tpu.concatenate %71, %72 in 1 : vector<1x15x32xbf16>, vector<1x241x32xbf16> -> vector<1x256x32xbf16>
    %74 = vector.shape_cast %73 : vector<1x256x32xbf16> to vector<256x32xbf16>
    %c2 = arith.constant 2 : index
    %c0_34 = arith.constant 0 : index
    %c0_35 = arith.constant 0 : index
    %75 = vector.load %arg8[%c2, %c0_34, %c0_35] : memref<9x32x128xbf16, #tpu.memory_space<vmem>>, vector<1x32x128xbf16>
    %76 = vector.shape_cast %75 : vector<1x32x128xbf16> to vector<32x128xbf16>
    %cst_36 = arith.constant dense<0.000000e+00> : vector<256x128xf32>
    %77 = tpu.matmul %74, %76, %cst_36 {dimension_numbers = #tpu.dot_dimension_numbers<[1], [0], [0], [1], [0, 0, 1, 1], [], []>} : vector<256x32xbf16>, vector<32x128xbf16>, vector<256x128xf32> -> vector<256x128xf32>
    %78 = arith.addf %70, %77 : vector<256x128xf32>
    %cst_37 = arith.constant 0.000000e+00 : bf16
    %79 = vector.broadcast %cst_37 : bf16 to vector<1x1x32xbf16>
    %80 = vector.extract_strided_slice %50 {offsets = [0, 0, 0], sizes = [1, 255, 32], strides = [1, 1, 1]} : vector<1x256x32xbf16> to vector<1x255x32xbf16>
    %81 = tpu.concatenate %79, %80 in 1 : vector<1x1x32xbf16>, vector<1x255x32xbf16> -> vector<1x256x32xbf16>
    %82 = vector.shape_cast %81 : vector<1x256x32xbf16> to vector<256x32xbf16>
    %c3 = arith.constant 3 : index
    %c0_38 = arith.constant 0 : index
    %c0_39 = arith.constant 0 : index
    %83 = vector.load %arg8[%c3, %c0_38, %c0_39] : memref<9x32x128xbf16, #tpu.memory_space<vmem>>, vector<1x32x128xbf16>
    %84 = vector.shape_cast %83 : vector<1x32x128xbf16> to vector<32x128xbf16>
    %cst_40 = arith.constant dense<0.000000e+00> : vector<256x128xf32>
    %85 = tpu.matmul %82, %84, %cst_40 {dimension_numbers = #tpu.dot_dimension_numbers<[1], [0], [0], [1], [0, 0, 1, 1], [], []>} : vector<256x32xbf16>, vector<32x128xbf16>, vector<256x128xf32> -> vector<256x128xf32>
    %86 = arith.addf %78, %85 : vector<256x128xf32>
    %87 = vector.shape_cast %27 : vector<1x256x32xbf16> to vector<256x32xbf16>
    %c4 = arith.constant 4 : index
    %c0_41 = arith.constant 0 : index
    %c0_42 = arith.constant 0 : index
    %88 = vector.load %arg8[%c4, %c0_41, %c0_42] : memref<9x32x128xbf16, #tpu.memory_space<vmem>>, vector<1x32x128xbf16>
    %89 = vector.shape_cast %88 : vector<1x32x128xbf16> to vector<32x128xbf16>
    %cst_43 = arith.constant dense<0.000000e+00> : vector<256x128xf32>
    %90 = tpu.matmul %87, %89, %cst_43 {dimension_numbers = #tpu.dot_dimension_numbers<[1], [0], [0], [1], [0, 0, 1, 1], [], []>} : vector<256x32xbf16>, vector<32x128xbf16>, vector<256x128xf32> -> vector<256x128xf32>
    %91 = arith.addf %86, %90 : vector<256x128xf32>
    %92 = vector.extract_strided_slice %55 {offsets = [0, 1, 0], sizes = [1, 255, 32], strides = [1, 1, 1]} : vector<1x256x32xbf16> to vector<1x255x32xbf16>
    %cst_44 = arith.constant 0.000000e+00 : bf16
    %93 = vector.broadcast %cst_44 : bf16 to vector<1x1x32xbf16>
    %94 = tpu.concatenate %92, %93 in 1 : vector<1x255x32xbf16>, vector<1x1x32xbf16> -> vector<1x256x32xbf16>
    %95 = vector.shape_cast %94 : vector<1x256x32xbf16> to vector<256x32xbf16>
    %c5 = arith.constant 5 : index
    %c0_45 = arith.constant 0 : index
    %c0_46 = arith.constant 0 : index
    %96 = vector.load %arg8[%c5, %c0_45, %c0_46] : memref<9x32x128xbf16, #tpu.memory_space<vmem>>, vector<1x32x128xbf16>
    %97 = vector.shape_cast %96 : vector<1x32x128xbf16> to vector<32x128xbf16>
    %cst_47 = arith.constant dense<0.000000e+00> : vector<256x128xf32>
    %98 = tpu.matmul %95, %97, %cst_47 {dimension_numbers = #tpu.dot_dimension_numbers<[1], [0], [0], [1], [0, 0, 1, 1], [], []>} : vector<256x32xbf16>, vector<32x128xbf16>, vector<256x128xf32> -> vector<256x128xf32>
    %99 = arith.addf %91, %98 : vector<256x128xf32>
    %100 = vector.extract_strided_slice %50 {offsets = [0, 15, 0], sizes = [1, 241, 32], strides = [1, 1, 1]} : vector<1x256x32xbf16> to vector<1x241x32xbf16>
    %cst_48 = arith.constant 0.000000e+00 : bf16
    %101 = vector.broadcast %cst_48 : bf16 to vector<1x15x32xbf16>
    %102 = tpu.concatenate %100, %101 in 1 : vector<1x241x32xbf16>, vector<1x15x32xbf16> -> vector<1x256x32xbf16>
    %103 = vector.shape_cast %102 : vector<1x256x32xbf16> to vector<256x32xbf16>
    %c6 = arith.constant 6 : index
    %c0_49 = arith.constant 0 : index
    %c0_50 = arith.constant 0 : index
    %104 = vector.load %arg8[%c6, %c0_49, %c0_50] : memref<9x32x128xbf16, #tpu.memory_space<vmem>>, vector<1x32x128xbf16>
    %105 = vector.shape_cast %104 : vector<1x32x128xbf16> to vector<32x128xbf16>
    %cst_51 = arith.constant dense<0.000000e+00> : vector<256x128xf32>
    %106 = tpu.matmul %103, %105, %cst_51 {dimension_numbers = #tpu.dot_dimension_numbers<[1], [0], [0], [1], [0, 0, 1, 1], [], []>} : vector<256x32xbf16>, vector<32x128xbf16>, vector<256x128xf32> -> vector<256x128xf32>
    %107 = arith.addf %99, %106 : vector<256x128xf32>
    %108 = vector.extract_strided_slice %27 {offsets = [0, 16, 0], sizes = [1, 240, 32], strides = [1, 1, 1]} : vector<1x256x32xbf16> to vector<1x240x32xbf16>
    %cst_52 = arith.constant 0.000000e+00 : bf16
    %109 = vector.broadcast %cst_52 : bf16 to vector<1x16x32xbf16>
    %110 = tpu.concatenate %108, %109 in 1 : vector<1x240x32xbf16>, vector<1x16x32xbf16> -> vector<1x256x32xbf16>
    %111 = vector.shape_cast %110 : vector<1x256x32xbf16> to vector<256x32xbf16>
    %c7 = arith.constant 7 : index
    %c0_53 = arith.constant 0 : index
    %c0_54 = arith.constant 0 : index
    %112 = vector.load %arg8[%c7, %c0_53, %c0_54] : memref<9x32x128xbf16, #tpu.memory_space<vmem>>, vector<1x32x128xbf16>
    %113 = vector.shape_cast %112 : vector<1x32x128xbf16> to vector<32x128xbf16>
    %cst_55 = arith.constant dense<0.000000e+00> : vector<256x128xf32>
    %114 = tpu.matmul %111, %113, %cst_55 {dimension_numbers = #tpu.dot_dimension_numbers<[1], [0], [0], [1], [0, 0, 1, 1], [], []>} : vector<256x32xbf16>, vector<32x128xbf16>, vector<256x128xf32> -> vector<256x128xf32>
    %115 = arith.addf %107, %114 : vector<256x128xf32>
    %116 = vector.extract_strided_slice %55 {offsets = [0, 17, 0], sizes = [1, 239, 32], strides = [1, 1, 1]} : vector<1x256x32xbf16> to vector<1x239x32xbf16>
    %cst_56 = arith.constant 0.000000e+00 : bf16
    %117 = vector.broadcast %cst_56 : bf16 to vector<1x17x32xbf16>
    %118 = tpu.concatenate %116, %117 in 1 : vector<1x239x32xbf16>, vector<1x17x32xbf16> -> vector<1x256x32xbf16>
    %119 = vector.shape_cast %118 : vector<1x256x32xbf16> to vector<256x32xbf16>
    %c8 = arith.constant 8 : index
    %c0_57 = arith.constant 0 : index
    %c0_58 = arith.constant 0 : index
    %120 = vector.load %arg8[%c8, %c0_57, %c0_58] : memref<9x32x128xbf16, #tpu.memory_space<vmem>>, vector<1x32x128xbf16>
    %121 = vector.shape_cast %120 : vector<1x32x128xbf16> to vector<32x128xbf16>
    %cst_59 = arith.constant dense<0.000000e+00> : vector<256x128xf32>
    %122 = tpu.matmul %119, %121, %cst_59 {dimension_numbers = #tpu.dot_dimension_numbers<[1], [0], [0], [1], [0, 0, 1, 1], [], []>} : vector<256x32xbf16>, vector<32x128xbf16>, vector<256x128xf32> -> vector<256x128xf32>
    %123 = arith.addf %115, %122 : vector<256x128xf32>
    %c0_60 = arith.constant 0 : index
    %c0_61 = arith.constant 0 : index
    %124 = vector.load %arg9[%c0_60, %c0_61] : memref<1x128xf32, #tpu.memory_space<vmem>>, vector<1x128xf32>
    %125 = vector.broadcast %124 : vector<1x128xf32> to vector<256x128xf32>
    %126 = arith.addf %123, %125 : vector<256x128xf32>
    %127 = vector.shape_cast %126 : vector<256x128xf32> to vector<1x256x128xf32>
    %c0_62 = arith.constant 0 : index
    %c0_63 = arith.constant 0 : index
    %c0_64 = arith.constant 0 : index
    %128 = vector.load %arg10[%c0_62, %c0_63, %c0_64] : memref<1x256x128xf32, #tpu.memory_space<vmem>>, vector<1x256x128xf32>
    tpu.vector_store %arg10[%c0_62, %c0_63, %c0_64], %127 {strides = array<i32>} : memref<1x256x128xf32, #tpu.memory_space<vmem>>, vector<1x256x128xf32>,
    return
  }
  func.func @transform_0(%arg0: i32) -> (i32, i32, i32) {
    %c0_i32 = arith.constant 0 : i32
    %c0_i32_0 = arith.constant 0 : i32
    %c0_i32_1 = arith.constant 0 : i32
    return %arg0, %c0_i32, %c0_i32_0 : i32, i32, i32
  }
  func.func @transform_1(%arg0: i32) -> (i32, i32, i32) {
    %c0_i32 = arith.constant 0 : i32
    %c0_i32_0 = arith.constant 0 : i32
    %c0_i32_1 = arith.constant 0 : i32
    return %arg0, %c0_i32, %c0_i32_0 : i32, i32, i32
  }
  func.func @transform_2(%arg0: i32) -> (i32, i32, i32) {
    %c0_i32 = arith.constant 0 : i32
    %c0_i32_0 = arith.constant 0 : i32
    %c0_i32_1 = arith.constant 0 : i32
    return %arg0, %c0_i32, %c0_i32_0 : i32, i32, i32
  }
  func.func @transform_3(%arg0: i32) -> (i32, i32, i32) {
    %c0_i32 = arith.constant 0 : i32
    %c0_i32_0 = arith.constant 0 : i32
    %c0_i32_1 = arith.constant 0 : i32
    return %arg0, %c0_i32, %c0_i32_0 : i32, i32, i32
  }
  func.func @transform_4(%arg0: i32) -> (i32, i32, i32) {
    %c0_i32 = arith.constant 0 : i32
    %c0_i32_0 = arith.constant 0 : i32
    %c0_i32_1 = arith.constant 0 : i32
    return %arg0, %c0_i32, %c0_i32_0 : i32, i32, i32
  }
  func.func @transform_5(%arg0: i32) -> (i32, i32) {
    %c0_i32 = arith.constant 0 : i32
    %c0_i32_0 = arith.constant 0 : i32
    %c0_i32_1 = arith.constant 0 : i32
    return %c0_i32, %c0_i32_0 : i32, i32
  }
  func.func @transform_6(%arg0: i32) -> (i32, i32) {
    %c0_i32 = arith.constant 0 : i32
    %c0_i32_0 = arith.constant 0 : i32
    %c0_i32_1 = arith.constant 0 : i32
    return %c0_i32, %c0_i32_0 : i32, i32
  }
  func.func @transform_7(%arg0: i32) -> (i32, i32, i32) {
    %c0_i32 = arith.constant 0 : i32
    %c0_i32_0 = arith.constant 0 : i32
    %c0_i32_1 = arith.constant 0 : i32
    %c0_i32_2 = arith.constant 0 : i32
    return %c0_i32, %c0_i32_0, %c0_i32_1 : i32, i32, i32
  }
  func.func @transform_8(%arg0: i32) -> (i32, i32) {
    %c0_i32 = arith.constant 0 : i32
    %c0_i32_0 = arith.constant 0 : i32
    %c0_i32_1 = arith.constant 0 : i32
    return %c0_i32, %c0_i32_0 : i32, i32
  }
  func.func @transform_9(%arg0: i32) -> (i32, i32, i32) {
    %c0_i32 = arith.constant 0 : i32
    %c0_i32_0 = arith.constant 0 : i32
    %c0_i32_1 = arith.constant 0 : i32
    return %arg0, %c0_i32, %c0_i32_0 : i32, i32, i32
  }
}

</mosaic_0001>

<llo_original>
// kernel: ddpm_forward.1
$region0: #{ddpm_forward.1}
  #allocation0 [shape = 'u32[]', space=smem, size = 0x4, offset = 0x4, fixed_abs, tag = 'smem constant byte address 0x4 - core index']
  #allocation1 [shape = 'u32[144,128]{1,0:T(1,128)}', space=vmem, size = 0x12000, scoped, tag = 'internal scratch']
  %s0 = inlined_call_operand.vmem [shape: f32[2,256,32], index: 0, kind: input, shape index: {}]
  %s1 = inlined_call_operand.vmem [shape: f32[2,256,32], index: 1, kind: input, shape index: {}]
  %s2 = inlined_call_operand.vmem [shape: f32[2,1,1], index: 2, kind: input, shape index: {}]
  %s3 = inlined_call_operand.vmem [shape: f32[2,1,1], index: 3, kind: input, shape index: {}]
  %s4 = inlined_call_operand.vmem [shape: f32[2,1,32], index: 4, kind: input, shape index: {}]
  %s5 = inlined_call_operand.vmem [shape: bf16[32,32], index: 5, kind: input, shape index: {}]
  %s6 = inlined_call_operand.vmem [shape: f32[1,32], index: 6, kind: input, shape index: {}]
  %s7 = inlined_call_operand.vmem [shape: bf16[9,32,128], index: 7, kind: input, shape index: {}]
  %s8 = inlined_call_operand.vmem [shape: f32[1,128], index: 8, kind: input, shape index: {}]
  %s9 = inlined_call_operand.vmem [shape: f32[2,256,128], index: 9, kind: output, shape index: {}]
  %s10 = sld [smem:[#allocation0]]
  $region69: #{ddpm_forward.1} parent=0
    _
  %s12 = ssub.s32 1, %s10
  %s13 = scalar_select 0, %s12, %s10
  loop: start=0, step=1, limit=4
  $region2: #{ddpm_forward.1} parent=0 // loop_pre_header
    _
  $region3: #{ddpm_forward.1} parent=0 // loop_header
    %s15 = sphi 0, %s19
    %p16 = scmp.ge.s32.totalorder %s15, 4
    %s25 = sphi 0, %s27
    %s28 = sphi 0, %s25
    %s29 = sphi 0, %s28
    %s45 = sphi 0, %s29
    %s51 = sphi 0, %s53
    %s54 = sphi 0, %s51
    %s55 = sphi 0, %s54
    %s71 = sphi 0, %s55
    %s77 = sphi 0, %s79
    %s80 = sphi 0, %s77
    %s81 = sphi 0, %s80
    %s97 = sphi 0, %s81
    %s103 = sphi 0, %s105
    %s106 = sphi 0, %s103
    %s107 = sphi 0, %s106
    %s123 = sphi 0, %s107
    %s129 = sphi 0, %s131
    %s132 = sphi 0, %s129
    %s133 = sphi 0, %s132
    %s149 = sphi 0, %s133
    %s153 = sphi 0, %s153
    %s155 = sphi 0, %s153
    %s156 = sphi 0, %s155
    %s170 = sphi 0, %s156
    %s174 = sphi 0, %s174
    %s176 = sphi 0, %s174
    %s177 = sphi 0, %s176
    %s191 = sphi 0, %s177
    %s195 = sphi 0, %s195
    %s197 = sphi 0, %s195
    %s198 = sphi 0, %s197
    %s212 = sphi 0, %s198
    %s216 = sphi 0, %s216
    %s218 = sphi 0, %s216
    %s219 = sphi 0, %s218
    %s233 = sphi 0, %s219
    %s239 = sphi 0, %s241
    %s242 = sphi 0, %s239
    %s243 = sphi 0, %s242
    %s259 = sphi 0, %s243
  $region4: #{ddpm_forward.1} parent=0 // loop_header_branch
    %18 = sbr.rel (%p16) target = $region8
  $region5: #{ddpm_forward.1} parent=0 // loop_body
    %s20 = ssub.s32 %s15, 1
    %s21 = ssub.s32 %s15, 2
    %s22 = sadd.s32 %s15, 1
    %s23 = ssub.s32 %s15, %s22
    %p24 = scmp.eq.s32.totalorder %s23, 0
    %s26 = sadd.s32 %s25, 1
    %s27 = scalar_select %p24, %s25, %s26
    %p30 = pneg %p24
    %p31 = scmp.eq.s32.totalorder %s15, 1
    %p32 = por %p30, %p31
    %p33 = scmp.ne.s32.totalorder %s25, %s28
    %p34 = scmp.eq.s32.totalorder %s15, 0
    %p35 = por %p33, %p34
    %p36 = scmp.ne.s32.totalorder %s25, %s28
    %p37 = scmp.eq.s32.totalorder %s20, 1
    %p38 = por %p36, %p37
    %p39 = scmp.ne.s32.totalorder %s28, %s29
    %p40 = scmp.eq.s32.totalorder %s20, 0
    %p41 = por %p39, %p40
    %p42 = scmp.ne.s32.totalorder %s28, %s29
    %p43 = scmp.eq.s32.totalorder %s21, 1
    %p44 = por %p42, %p43
    %p46 = scmp.ne.s32.totalorder %s29, %s45
    %p47 = scmp.eq.s32.totalorder %s21, 0
    %p48 = por %p46, %p47
    %s49 = ssub.s32 %s15, %s22
    %p50 = scmp.eq.s32.totalorder %s49, 0
    %s52 = sadd.s32 %s51, 1
    %s53 = scalar_select %p50, %s51, %s52
    %p56 = pneg %p50
    %p57 = scmp.eq.s32.totalorder %s15, 1
    %p58 = por %p56, %p57
    %p59 = scmp.ne.s32.totalorder %s51, %s54
    %p60 = scmp.eq.s32.totalorder %s15, 0
    %p61 = por %p59, %p60
    %p62 = scmp.ne.s32.totalorder %s51, %s54
    %p63 = scmp.eq.s32.totalorder %s20, 1
    %p64 = por %p62, %p63
    %p65 = scmp.ne.s32.totalorder %s54, %s55
    %p66 = scmp.eq.s32.totalorder %s20, 0
    %p67 = por %p65, %p66
    %p68 = scmp.ne.s32.totalorder %s54, %s55
    %p69 = scmp.eq.s32.totalorder %s21, 1
    %p70 = por %p68, %p69
    %p72 = scmp.ne.s32.totalorder %s55, %s71
    %p73 = scmp.eq.s32.totalorder %s21, 0
    %p74 = por %p72, %p73
    %s75 = ssub.s32 %s15, %s22
    %p76 = scmp.eq.s32.totalorder %s75, 0
    %s78 = sadd.s32 %s77, 1
    %s79 = scalar_select %p76, %s77, %s78
    %p82 = pneg %p76
    %p83 = scmp.eq.s32.totalorder %s15, 1
    %p84 = por %p82, %p83
    %p85 = scmp.ne.s32.totalorder %s77, %s80
    %p86 = scmp.eq.s32.totalorder %s15, 0
    %p87 = por %p85, %p86
    %p88 = scmp.ne.s32.totalorder %s77, %s80
    %p89 = scmp.eq.s32.totalorder %s20, 1
    %p90 = por %p88, %p89
    %p91 = scmp.ne.s32.totalorder %s80, %s81
    %p92 = scmp.eq.s32.totalorder %s20, 0
    %p93 = por %p91, %p92
    %p94 = scmp.ne.s32.totalorder %s80, %s81
    %p95 = scmp.eq.s32.totalorder %s21, 1
    %p96 = por %p94, %p95
    %p98 = scmp.ne.s32.totalorder %s81, %s97
    %p99 = scmp.eq.s32.totalorder %s21, 0
    %p100 = por %p98, %p99
    %s101 = ssub.s32 %s15, %s22
    %p102 = scmp.eq.s32.totalorder %s101, 0
    %s104 = sadd.s32 %s103, 1
    %s105 = scalar_select %p102, %s103, %s104
    %p108 = pneg %p102
    %p109 = scmp.eq.s32.totalorder %s15, 1
    %p110 = por %p108, %p109
    %p111 = scmp.ne.s32.totalorder %s103, %s106
    %p112 = scmp.eq.s32.totalorder %s15, 0
    %p113 = por %p111, %p112
    %p114 = scmp.ne.s32.totalorder %s103, %s106
    %p115 = scmp.eq.s32.totalorder %s20, 1
    %p116 = por %p114, %p115
    %p117 = scmp.ne.s32.totalorder %s106, %s107
    %p118 = scmp.eq.s32.totalorder %s20, 0
    %p119 = por %p117, %p118
    %p120 = scmp.ne.s32.totalorder %s106, %s107
    %p121 = scmp.eq.s32.totalorder %s21, 1
    %p122 = por %p120, %p121
    %p124 = scmp.ne.s32.totalorder %s107, %s123
    %p125 = scmp.eq.s32.totalorder %s21, 0
    %p126 = por %p124, %p125
    %s127 = ssub.s32 %s15, %s22
    %p128 = scmp.eq.s32.totalorder %s127, 0
    %s130 = sadd.s32 %s129, 1
    %s131 = scalar_select %p128, %s129, %s130
    %p134 = pneg %p128
    %p135 = scmp.eq.s32.totalorder %s15, 1
    %p136 = por %p134, %p135
    %p137 = scmp.ne.s32.totalorder %s129, %s132
    %p138 = scmp.eq.s32.totalorder %s15, 0
    %p139 = por %p137, %p138
    %p140 = scmp.ne.s32.totalorder %s129, %s132
    %p141 = scmp.eq.s32.totalorder %s20, 1
    %p142 = por %p140, %p141
    %p143 = scmp.ne.s32.totalorder %s132, %s133
    %p144 = scmp.eq.s32.totalorder %s20, 0
    %p145 = por %p143, %p144
    %p146 = scmp.ne.s32.totalorder %s132, %s133
    %p147 = scmp.eq.s32.totalorder %s21, 1
    %p148 = por %p146, %p147
    %p150 = scmp.ne.s32.totalorder %s133, %s149
    %p151 = scmp.eq.s32.totalorder %s21, 0
    %p152 = por %p150, %p151
    %s154 = sadd.s32 %s153, 1
    %p157 = scmp.eq.s32.totalorder %s15, 1
    %p158 = scmp.ne.s32.totalorder %s153, %s155
    %p159 = scmp.eq.s32.totalorder %s15, 0
    %p160 = por %p158, %p159
    %p161 = scmp.ne.s32.totalorder %s153, %s155
    %p162 = scmp.eq.s32.totalorder %s20, 1
    %p163 = por %p161, %p162
    %p164 = scmp.ne.s32.totalorder %s155, %s156
    %p165 = scmp.eq.s32.totalorder %s20, 0
    %p166 = por %p164, %p165
    %p167 = scmp.ne.s32.totalorder %s155, %s156
    %p168 = scmp.eq.s32.totalorder %s21, 1
    %p169 = por %p167, %p168
    %p171 = scmp.ne.s32.totalorder %s156, %s170
    %p172 = scmp.eq.s32.totalorder %s21, 0
    %p173 = por %p171, %p172
    %s175 = sadd.s32 %s174, 1
    %p178 = scmp.eq.s32.totalorder %s15, 1
    %p179 = scmp.ne.s32.totalorder %s174, %s176
    %p180 = scmp.eq.s32.totalorder %s15, 0
    %p181 = por %p179, %p180
    %p182 = scmp.ne.s32.totalorder %s174, %s176
    %p183 = scmp.eq.s32.totalorder %s20, 1
    %p184 = por %p182, %p183
    %p185 = scmp.ne.s32.totalorder %s176, %s177
    %p186 = scmp.eq.s32.totalorder %s20, 0
    %p187 = por %p185, %p186
    %p188 = scmp.ne.s32.totalorder %s176, %s177
    %p189 = scmp.eq.s32.totalorder %s21, 1
    %p190 = por %p188, %p189
    %p192 = scmp.ne.s32.totalorder %s177, %s191
    %p193 = scmp.eq.s32.totalorder %s21, 0
    %p194 = por %p192, %p193
    %s196 = sadd.s32 %s195, 1
    %p199 = scmp.eq.s32.totalorder %s15, 1
    %p200 = scmp.ne.s32.totalorder %s195, %s197
    %p201 = scmp.eq.s32.totalorder %s15, 0
    %p202 = por %p200, %p201
    %p203 = scmp.ne.s32.totalorder %s195, %s197
    %p204 = scmp.eq.s32.totalorder %s20, 1
    %p205 = por %p203, %p204
    %p206 = scmp.ne.s32.totalorder %s197, %s198
    %p207 = scmp.eq.s32.totalorder %s20, 0
    %p208 = por %p206, %p207
    %p209 = scmp.ne.s32.totalorder %s197, %s198
    %p210 = scmp.eq.s32.totalorder %s21, 1
    %p211 = por %p209, %p210
    %p213 = scmp.ne.s32.totalorder %s198, %s212
    %p214 = scmp.eq.s32.totalorder %s21, 0
    %p215 = por %p213, %p214
    %s217 = sadd.s32 %s216, 1
    %p220 = scmp.eq.s32.totalorder %s15, 1
    %p221 = scmp.ne.s32.totalorder %s216, %s218
    %p222 = scmp.eq.s32.totalorder %s15, 0
    %p223 = por %p221, %p222
    %p224 = scmp.ne.s32.totalorder %s216, %s218
    %p225 = scmp.eq.s32.totalorder %s20, 1
    %p226 = por %p224, %p225
    %p227 = scmp.ne.s32.totalorder %s218, %s219
    %p228 = scmp.eq.s32.totalorder %s20, 0
    %p229 = por %p227, %p228
    %p230 = scmp.ne.s32.totalorder %s218, %s219
    %p231 = scmp.eq.s32.totalorder %s21, 1
    %p232 = por %p230, %p231
    %p234 = scmp.ne.s32.totalorder %s219, %s233
    %p235 = scmp.eq.s32.totalorder %s21, 0
    %p236 = por %p234, %p235
    %s237 = ssub.s32 %s15, %s22
    %p238 = scmp.eq.s32.totalorder %s237, 0
    %s240 = sadd.s32 %s239, 1
    %s241 = scalar_select %p238, %s239, %s240
    %p244 = pneg %p238
    %p245 = scmp.eq.s32.totalorder %s15, 1
    %p246 = por %p244, %p245
    %p247 = scmp.ne.s32.totalorder %s239, %s242
    %p248 = scmp.eq.s32.totalorder %s15, 0
    %p249 = por %p247, %p248
    %p250 = scmp.ne.s32.totalorder %s239, %s242
    %p251 = scmp.eq.s32.totalorder %s20, 1
    %p252 = por %p250, %p251
    %p253 = scmp.ne.s32.totalorder %s242, %s243
    %p254 = scmp.eq.s32.totalorder %s20, 0
    %p255 = por %p253, %p254
    %p256 = scmp.ne.s32.totalorder %s242, %s243
    %p257 = scmp.eq.s32.totalorder %s21, 1
    %p258 = por %p256, %p257
    %p260 = scmp.ne.s32.totalorder %s243, %s259
    %p261 = scmp.eq.s32.totalorder %s21, 0
    %p262 = por %p260, %p261
    %p263 = scmp.le.s32.totalorder 1, %s15
    %p264 = scmp.lt.s32.totalorder %s15, 3
    %p265 = pnand %p263, %p264
    %p266 = pneg %p265
    // Predicated region
    $region9: #{ddpm_forward.1} parent=5 // pred_check
      _
    $region10: #{ddpm_forward.1} parent=5 // pred_check_branch
      %268 = sbr.rel (%p265) target = $region12
    $region11: #{ddpm_forward.1} parent=5 // pred_region
      %s269 = ssub.s32 %s15, 1
      // Predicated region
      $region13: #{ddpm_forward.1} parent=11 // pred_check
        %p270 = pneg %p166
      $region14: #{ddpm_forward.1} parent=11 // pred_check_branch
        %272 = sbr.rel (%p270) target = $region16
      $region15: #{ddpm_forward.1} parent=11 // pred_region
        _
      $region16: #{ddpm_forward.1} parent=11 // pred_fallthru
        _
      // Predicated region
      $region17: #{ddpm_forward.1} parent=11 // pred_check
        %p273 = pneg %p187
      $region18: #{ddpm_forward.1} parent=11 // pred_check_branch
        %275 = sbr.rel (%p273) target = $region20
      $region19: #{ddpm_forward.1} parent=11 // pred_region
        _
      $region20: #{ddpm_forward.1} parent=11 // pred_fallthru
        _
      // Predicated region
      $region21: #{ddpm_forward.1} parent=11 // pred_check
        %p276 = pneg %p208
      $region22: #{ddpm_forward.1} parent=11 // pred_check_branch
        %278 = sbr.rel (%p276) target = $region24
      $region23: #{ddpm_forward.1} parent=11 // pred_region
        _
      $region24: #{ddpm_forward.1} parent=11 // pred_fallthru
        _
      // Predicated region
      $region25: #{ddpm_forward.1} parent=11 // pred_check
        %p279 = pneg %p229
      $region26: #{ddpm_forward.1} parent=11 // pred_check_branch
        %281 = sbr.rel (%p279) target = $region28
      $region27: #{ddpm_forward.1} parent=11 // pred_region
        _
      $region28: #{ddpm_forward.1} parent=11 // pred_fallthru
        _
    $region12: #{ddpm_forward.1} parent=5 // pred_fallthru
      _
    %p282 = scmp.lt.s32.totalorder %s15, 2
    // Predicated region
    $region29: #{ddpm_forward.1} parent=5 // pred_check
      %p283 = pneg %p282
    $region30: #{ddpm_forward.1} parent=5 // pred_check_branch
      %285 = sbr.rel (%p283) target = $region32
    $region31: #{ddpm_forward.1} parent=5 // pred_region
      // Predicated region
      $region33: #{ddpm_forward.1} parent=31 // pred_check
        %p286 = pneg %p35
      $region34: #{ddpm_forward.1} parent=31 // pred_check_branch
        %288 = sbr.rel (%p286) target = $region36
      $region35: #{ddpm_forward.1} parent=31 // pred_region
        %p289 = scmp.lt.s32.totalorder %s15, 1
        %s290 = scalar_select %p289, %s15, 1
        %s291 = smul.addr %s290, 32
        %s292 = smul.addr %s291, 8
        %s293 = scalar_lea.vmem %s0, %s292
      $region36: #{ddpm_forward.1} parent=31 // pred_fallthru
        _
      // Predicated region
      $region37: #{ddpm_forward.1} parent=31 // pred_check
        %p294 = pneg %p61
      $region38: #{ddpm_forward.1} parent=31 // pred_check_branch
        %296 = sbr.rel (%p294) target = $region40
      $region39: #{ddpm_forward.1} parent=31 // pred_region
        %p297 = scmp.lt.s32.totalorder %s15, 1
        %s298 = scalar_select %p297, %s15, 1
        %s299 = smul.addr %s298, 32
        %s300 = smul.addr %s299, 8
        %s301 = scalar_lea.vmem %s1, %s300
      $region40: #{ddpm_forward.1} parent=31 // pred_fallthru
        _
      // Predicated region
      $region41: #{ddpm_forward.1} parent=31 // pred_check
        %p302 = pneg %p87
      $region42: #{ddpm_forward.1} parent=31 // pred_check_branch
        %304 = sbr.rel (%p302) target = $region44
      $region43: #{ddpm_forward.1} parent=31 // pred_region
        %p305 = scmp.lt.s32.totalorder %s15, 1
        %s306 = scalar_select %p305, %s15, 1
        %s307 = scalar_lea.vmem %s2, %s306
      $region44: #{ddpm_forward.1} parent=31 // pred_fallthru
        _
      // Predicated region
      $region45: #{ddpm_forward.1} parent=31 // pred_check
        %p308 = pneg %p113
      $region46: #{ddpm_forward.1} parent=31 // pred_check_branch
        %310 = sbr.rel (%p308) target = $region48
      $region47: #{ddpm_forward.1} parent=31 // pred_region
        %p311 = scmp.lt.s32.totalorder %s15, 1
        %s312 = scalar_select %p311, %s15, 1
        %s313 = scalar_lea.vmem %s3, %s312
      $region48: #{ddpm_forward.1} parent=31 // pred_fallthru
        _
      // Predicated region
      $region49: #{ddpm_forward.1} parent=31 // pred_check
        %p314 = pneg %p139
      $region50: #{ddpm_forward.1} parent=31 // pred_check_branch
        %316 = sbr.rel (%p314) target = $region52
      $region51: #{ddpm_forward.1} parent=31 // pred_region
        %p317 = scmp.lt.s32.totalorder %s15, 1
        %s318 = scalar_select %p317, %s15, 1
        %s319 = scalar_lea.vmem %s4, %s318
      $region52: #{ddpm_forward.1} parent=31 // pred_fallthru
        _
    $region32: #{ddpm_forward.1} parent=5 // pred_fallthru
      _
    %p320 = scmp.le.s32.totalorder 1, %s15
    %p321 = scmp.lt.s32.totalorder %s15, 3
    %p322 = pnand %p320, %p321
    %p323 = pneg %p322
    // Predicated region
    $region53: #{ddpm_forward.1} parent=5 // pred_check
      _
    $region54: #{ddpm_forward.1} parent=5 // pred_check_branch
      %325 = sbr.rel (%p322) target = $region56
    $region55: #{ddpm_forward.1} parent=5 // pred_region
      %s326 = ssub.s32 %s15, 1
      %p327 = scmp.lt.s32.totalorder %s20, 1
      %s328 = scalar_select %p327, %s20, 1
      %s329 = smul.addr %s328, 32
      %s330 = smul.addr %s329, 8
      %s331 = scalar_lea.vmem %s0, %s330
      %p332 = pneg %p41
      %p333 = pneg %p38
      %p334 = scmp.lt.s32.totalorder %s20, 1
      %s335 = scalar_select %p334, %s20, 1
      %s336 = smul.addr %s335, 32
      %s337 = smul.addr %s336, 8
      %s338 = scalar_lea.vmem %s1, %s337
      %p339 = pneg %p67
      %p340 = pneg %p64
      %p341 = scmp.lt.s32.totalorder %s20, 1
      %s342 = scalar_select %p341, %s20, 1
      %s343 = scalar_lea.vmem %s2, %s342
      %p344 = pneg %p93
      %p345 = pneg %p90
      %p346 = scmp.lt.s32.totalorder %s20, 1
      %s347 = scalar_select %p346, %s20, 1
      %s348 = scalar_lea.vmem %s3, %s347
      %p349 = pneg %p119
      %p350 = pneg %p116
      %p351 = scmp.lt.s32.totalorder %s20, 1
      %s352 = scalar_select %p351, %s20, 1
      %s353 = scalar_lea.vmem %s4, %s352
      %p354 = pneg %p145
      %p355 = pneg %p142
      %p356 = pneg %p166
      %p357 = pneg %p163
      %p358 = pneg %p187
      %p359 = pneg %p184
      %p360 = pneg %p208
      %p361 = pneg %p205
      %p362 = pneg %p229
      %p363 = pneg %p226
      %p364 = pneg %p255
      %p365 = pneg %p252
      %p366 = scmp.lt.s32.totalorder %s20, 1
      %s367 = scalar_select %p366, %s20, 1
      %s368 = smul.addr %s367, 32
      %s369 = smul.addr %s368, 8
      %s370 = scalar_lea.vmem %s9, %s369
      %p371 = scmp.lt.s32.totalorder %s20, 1
      %s372 = scalar_select %p371, %s20, 1
      %s373 = smul.addr %s372, 32
      %s374 = smul.addr %s373, 8
      %s375 = scalar_lea.vmem %s0, %s374
      %p376 = scmp.lt.s32.totalorder %s20, 1
      %s377 = scalar_select %p376, %s20, 1
      %s378 = smul.addr %s377, 32
      %s379 = smul.addr %s378, 8
      %s380 = scalar_lea.vmem %s1, %s379
      %p381 = scmp.lt.s32.totalorder %s20, 1
      %s382 = scalar_select %p381, %s20, 1
      %s383 = scalar_lea.vmem %s2, %s382
      %p384 = scmp.lt.s32.totalorder %s20, 1
      %s385 = scalar_select %p384, %s20, 1
      %s386 = scalar_lea.vmem %s3, %s385
      %p387 = scmp.lt.s32.totalorder %s20, 1
      %s388 = scalar_select %p387, %s20, 1
      %s389 = scalar_lea.vmem %s4, %s388
      %p390 = scmp.lt.s32.totalorder %s20, 1
      %s391 = scalar_select %p390, %s20, 1
      %s392 = smul.addr %s391, 32
      %s393 = smul.addr %s392, 8
      %s394 = scalar_lea.vmem %s9, %s393
      %v398 = vld [vmem:[%s383] sm:$0x1]
      %v399 = vld [vmem:[%s375] sm:$0xff]
      %v400 = vld [vmem:[%s375 + $0x8] sm:$0xff]
      %v401 = vld [vmem:[%s375 + $0x10] sm:$0xff]
      %v402 = vld [vmem:[%s375 + $0x18] sm:$0xff]
      %v403 = vld [vmem:[%s375 + $0x20] sm:$0xff]
      %v404 = vld [vmem:[%s375 + $0x28] sm:$0xff]
      %v405 = vld [vmem:[%s375 + $0x30] sm:$0xff]
      %v406 = vld [vmem:[%s375 + $0x38] sm:$0xff]
      %v407 = vld [vmem:[%s375 + $0x40] sm:$0xff]
      %v408 = vld [vmem:[%s375 + $0x48] sm:$0xff]
      %v409 = vld [vmem:[%s375 + $0x50] sm:$0xff]
      %v410 = vld [vmem:[%s375 + $0x58] sm:$0xff]
      %v411 = vld [vmem:[%s375 + $0x60] sm:$0xff]
      %v412 = vld [vmem:[%s375 + $0x68] sm:$0xff]
      %v413 = vld [vmem:[%s375 + $0x70] sm:$0xff]
      %v414 = vld [vmem:[%s375 + $0x78] sm:$0xff]
      %v415 = vld [vmem:[%s375 + $0x80] sm:$0xff]
      %v416 = vld [vmem:[%s375 + $0x88] sm:$0xff]
      %v417 = vld [vmem:[%s375 + $0x90] sm:$0xff]
      %v418 = vld [vmem:[%s375 + $0x98] sm:$0xff]
      %v419 = vld [vmem:[%s375 + $0xa0] sm:$0xff]
      %v420 = vld [vmem:[%s375 + $0xa8] sm:$0xff]
      %v421 = vld [vmem:[%s375 + $0xb0] sm:$0xff]
      %v422 = vld [vmem:[%s375 + $0xb8] sm:$0xff]
      %v423 = vld [vmem:[%s375 + $0xc0] sm:$0xff]
      %v424 = vld [vmem:[%s375 + $0xc8] sm:$0xff]
      %v425 = vld [vmem:[%s375 + $0xd0] sm:$0xff]
      %v426 = vld [vmem:[%s375 + $0xd8] sm:$0xff]
      %v427 = vld [vmem:[%s375 + $0xe0] sm:$0xff]
      %v428 = vld [vmem:[%s375 + $0xe8] sm:$0xff]
      %v429 = vld [vmem:[%s375 + $0xf0] sm:$0xff]
      %v430 = vld [vmem:[%s375 + $0xf8] sm:$0xff]
      %v432 = vlaneseq
      %v433 = vshrl.u32 %v432, 7
      %v434 = vsub.s32 0, %v433
      %v435 = vrot.slane %v398, %v434
      %436 = vset.pattern.permute.xlu0 0
      %437 = vperm.xlu0 %436, %v435
      %v438 = vpop.permute.xlu0 %437
      %v440 = vmul.f32 %v438, %v399
      %v441 = vmul.f32 %v438, %v400
      %v442 = vmul.f32 %v438, %v401
      %v443 = vmul.f32 %v438, %v402
      %v444 = vmul.f32 %v438, %v403
      %v445 = vmul.f32 %v438, %v404
      %v446 = vmul.f32 %v438, %v405
      %v447 = vmul.f32 %v438, %v406
      %v448 = vmul.f32 %v438, %v407
      %v449 = vmul.f32 %v438, %v408
      %v450 = vmul.f32 %v438, %v409
      %v451 = vmul.f32 %v438, %v410
      %v452 = vmul.f32 %v438, %v411
      %v453 = vmul.f32 %v438, %v412
      %v454 = vmul.f32 %v438, %v413
      %v455 = vmul.f32 %v438, %v414
      %v456 = vmul.f32 %v438, %v415
      %v457 = vmul.f32 %v438, %v416
      %v458 = vmul.f32 %v438, %v417
      %v459 = vmul.f32 %v438, %v418
      %v460 = vmul.f32 %v438, %v419
      %v461 = vmul.f32 %v438, %v420
      %v462 = vmul.f32 %v438, %v421
      %v463 = vmul.f32 %v438, %v422
      %v464 = vmul.f32 %v438, %v423
      %v465 = vmul.f32 %v438, %v424
      %v466 = vmul.f32 %v438, %v425
      %v467 = vmul.f32 %v438, %v426
      %v468 = vmul.f32 %v438, %v427
      %v469 = vmul.f32 %v438, %v428
      %v470 = vmul.f32 %v438, %v429
      %v471 = vmul.f32 %v438, %v430
      %v472 = vld [vmem:[%s386] sm:$0x1]
      %v473 = vld [vmem:[%s380] sm:$0xff]
      %v474 = vld [vmem:[%s380 + $0x8] sm:$0xff]
      %v475 = vld [vmem:[%s380 + $0x10] sm:$0xff]
      %v476 = vld [vmem:[%s380 + $0x18] sm:$0xff]
      %v477 = vld [vmem:[%s380 + $0x20] sm:$0xff]
      %v478 = vld [vmem:[%s380 + $0x28] sm:$0xff]
      %v479 = vld [vmem:[%s380 + $0x30] sm:$0xff]
      %v480 = vld [vmem:[%s380 + $0x38] sm:$0xff]
      %v481 = vld [vmem:[%s380 + $0x40] sm:$0xff]
      %v482 = vld [vmem:[%s380 + $0x48] sm:$0xff]
      %v483 = vld [vmem:[%s380 + $0x50] sm:$0xff]
      %v484 = vld [vmem:[%s380 + $0x58] sm:$0xff]
      %v485 = vld [vmem:[%s380 + $0x60] sm:$0xff]
      %v486 = vld [vmem:[%s380 + $0x68] sm:$0xff]
      %v487 = vld [vmem:[%s380 + $0x70] sm:$0xff]
      %v488 = vld [vmem:[%s380 + $0x78] sm:$0xff]
      %v489 = vld [vmem:[%s380 + $0x80] sm:$0xff]
      %v490 = vld [vmem:[%s380 + $0x88] sm:$0xff]
      %v491 = vld [vmem:[%s380 + $0x90] sm:$0xff]
      %v492 = vld [vmem:[%s380 + $0x98] sm:$0xff]
      %v493 = vld [vmem:[%s380 + $0xa0] sm:$0xff]
      %v494 = vld [vmem:[%s380 + $0xa8] sm:$0xff]
      %v495 = vld [vmem:[%s380 + $0xb0] sm:$0xff]
      %v496 = vld [vmem:[%s380 + $0xb8] sm:$0xff]
      %v497 = vld [vmem:[%s380 + $0xc0] sm:$0xff]
      %v498 = vld [vmem:[%s380 + $0xc8] sm:$0xff]
      %v499 = vld [vmem:[%s380 + $0xd0] sm:$0xff]
      %v500 = vld [vmem:[%s380 + $0xd8] sm:$0xff]
      %v501 = vld [vmem:[%s380 + $0xe0] sm:$0xff]
      %v502 = vld [vmem:[%s380 + $0xe8] sm:$0xff]
      %v503 = vld [vmem:[%s380 + $0xf0] sm:$0xff]
      %v504 = vld [vmem:[%s380 + $0xf8] sm:$0xff]
      %v506 = vlaneseq
      %v507 = vshrl.u32 %v506, 7
      %v508 = vsub.s32 0, %v507
      %v509 = vrot.slane %v472, %v508
      %510 = vset.pattern.permute.xlu0 0
      %511 = vperm.xlu0 %510, %v509
      %v512 = vpop.permute.xlu0 %511
      %v514 = vmul.f32 %v512, %v473
      %v515 = vmul.f32 %v512, %v474
      %v516 = vmul.f32 %v512, %v475
      %v517 = vmul.f32 %v512, %v476
      %v518 = vmul.f32 %v512, %v477
      %v519 = vmul.f32 %v512, %v478
      %v520 = vmul.f32 %v512, %v479
      %v521 = vmul.f32 %v512, %v480
      %v522 = vmul.f32 %v512, %v481
      %v523 = vmul.f32 %v512, %v482
      %v524 = vmul.f32 %v512, %v483
      %v525 = vmul.f32 %v512, %v484
      %v526 = vmul.f32 %v512, %v485
      %v527 = vmul.f32 %v512, %v486
      %v528 = vmul.f32 %v512, %v487
      %v529 = vmul.f32 %v512, %v488
      %v530 = vmul.f32 %v512, %v489
      %v531 = vmul.f32 %v512, %v490
      %v532 = vmul.f32 %v512, %v491
      %v533 = vmul.f32 %v512, %v492
      %v534 = vmul.f32 %v512, %v493
      %v535 = vmul.f32 %v512, %v494
      %v536 = vmul.f32 %v512, %v495
      %v537 = vmul.f32 %v512, %v496
      %v538 = vmul.f32 %v512, %v497
      %v539 = vmul.f32 %v512, %v498
      %v540 = vmul.f32 %v512, %v499
      %v541 = vmul.f32 %v512, %v500
      %v542 = vmul.f32 %v512, %v501
      %v543 = vmul.f32 %v512, %v502
      %v544 = vmul.f32 %v512, %v503
      %v545 = vmul.f32 %v512, %v504
      %v546 = vadd.f32 %v440, %v514
      %v547 = vadd.f32 %v441, %v515
      %v548 = vadd.f32 %v442, %v516
      %v549 = vadd.f32 %v443, %v517
      %v550 = vadd.f32 %v444, %v518
      %v551 = vadd.f32 %v445, %v519
      %v552 = vadd.f32 %v446, %v520
      %v553 = vadd.f32 %v447, %v521
      %v554 = vadd.f32 %v448, %v522
      %v555 = vadd.f32 %v449, %v523
      %v556 = vadd.f32 %v450, %v524
      %v557 = vadd.f32 %v451, %v525
      %v558 = vadd.f32 %v452, %v526
      %v559 = vadd.f32 %v453, %v527
      %v560 = vadd.f32 %v454, %v528
      %v561 = vadd.f32 %v455, %v529
      %v562 = vadd.f32 %v456, %v530
      %v563 = vadd.f32 %v457, %v531
      %v564 = vadd.f32 %v458, %v532
      %v565 = vadd.f32 %v459, %v533
      %v566 = vadd.f32 %v460, %v534
      %v567 = vadd.f32 %v461, %v535
      %v568 = vadd.f32 %v462, %v536
      %v569 = vadd.f32 %v463, %v537
      %v570 = vadd.f32 %v464, %v538
      %v571 = vadd.f32 %v465, %v539
      %v572 = vadd.f32 %v466, %v540
      %v573 = vadd.f32 %v467, %v541
      %v574 = vadd.f32 %v468, %v542
      %v575 = vadd.f32 %v469, %v543
      %v576 = vadd.f32 %v470, %v544
      %v577 = vadd.f32 %v471, %v545
      %v578 = vpack.c.bf16 %v547, %v546
      %v579 = vpack.c.bf16 %v549, %v548
      %v580 = vpack.c.bf16 %v551, %v550
      %v581 = vpack.c.bf16 %v553, %v552
      %v582 = vpack.c.bf16 %v555, %v554
      %v583 = vpack.c.bf16 %v557, %v556
      %v584 = vpack.c.bf16 %v559, %v558
      %v585 = vpack.c.bf16 %v561, %v560
      %v586 = vpack.c.bf16 %v563, %v562
      %v587 = vpack.c.bf16 %v565, %v564
      %v588 = vpack.c.bf16 %v567, %v566
      %v589 = vpack.c.bf16 %v569, %v568
      %v590 = vpack.c.bf16 %v571, %v570
      %v591 = vpack.c.bf16 %v573, %v572
      %v592 = vpack.c.bf16 %v575, %v574
      %v593 = vpack.c.bf16 %v577, %v576
      %v594 = vld [vmem:[%s5] sm:$0xf]
      %v595 = vld [vmem:[%s5 + $0x4] sm:$0xf]
      %v596 = vld [vmem:[%s5 + $0x8] sm:$0xf]
      %v597 = vld [vmem:[%s5 + $0xc] sm:$0xf]
      %v602 = vunpack.c.l.b16 %v594
      %v603 = vunpack.c.l.b16 %v595
      %v604 = vunpack.c.l.b16 %v596
      %v605 = vunpack.c.l.b16 %v597
      %v606 = vpack.c.b16 %v603, %v602
      %v607 = vpack.c.b16 %v605, %v604
      %vm610 = vcmask 261120
      %v612 = vsel %vm610, %v578, 0
      %v615 = vsel %vm610, %v579, 0
      %v618 = vsel %vm610, %v580, 0
      %v621 = vsel %vm610, %v581, 0
      %v624 = vsel %vm610, %v582, 0
      %v627 = vsel %vm610, %v583, 0
      %v630 = vsel %vm610, %v584, 0
      %v633 = vsel %vm610, %v585, 0
      %v636 = vsel %vm610, %v586, 0
      %v639 = vsel %vm610, %v587, 0
      %v642 = vsel %vm610, %v588, 0
      %v645 = vsel %vm610, %v589, 0
      %v648 = vsel %vm610, %v590, 0
      %v651 = vsel %vm610, %v591, 0
      %v654 = vsel %vm610, %v592, 0
      %v657 = vsel %vm610, %v593, 0
      %659 = vmatprep.subr.bf16.mxu0 0
      %660 = vmatpush1.bf16.msra.mxu0 %v606
      %661 = vmatprep.subr.bf16.mxu0 0
      %662 = vmatpush1.bf16.msra.mxu0 %v607
      %663 = vmatprep.subr.bf16.mxu0 0
      %664 = vmatpush1.bf16.msra.mxu0 0
      %665 = vmatprep.subr.bf16.mxu0 0
      %666 = vmatpush1.bf16.msra.mxu0 0
      %667 = vmatprep.subr.bf16.mxu0 0
      %668 = vmatpush1.bf16.msra.mxu0 0
      %669 = vmatprep.subr.bf16.mxu0 0
      %670 = vmatpush1.bf16.msra.mxu0 0
      %671 = vmatprep.subr.bf16.mxu0 0
      %672 = vmatpush1.bf16.msra.mxu0 0
      %673 = vmatprep.subr.bf16.mxu0 0
      %674 = vmatpush1.bf16.msra.mxu0 0
      %675 = vmatprep.subr.bf16.mxu0 0
      %676 = vmatpush1.bf16.msra.mxu0 0
      %677 = vmatprep.subr.bf16.mxu0 0
      %678 = vmatpush1.bf16.msra.mxu0 0
      %679 = vmatprep.subr.bf16.mxu0 0
      %680 = vmatpush1.bf16.msra.mxu0 0
      %681 = vmatprep.subr.bf16.mxu0 0
      %682 = vmatpush1.bf16.msra.mxu0 0
      %683 = vmatprep.subr.bf16.mxu0 0
      %684 = vmatpush1.bf16.msra.mxu0 0
      %685 = vmatprep.subr.bf16.mxu0 0
      %686 = vmatpush1.bf16.msra.mxu0 0
      %687 = vmatprep.subr.bf16.mxu0 0
      %688 = vmatpush1.bf16.msra.mxu0 0
      %689 = vmatprep.subr.bf16.mxu0 0
      %690 = vmatpush1.bf16.msra.mxu0 0
      %691 = vmatprep.mubr.bf16.mxu0 0
      %692 = vmatmul.mubr.bf16.gmra.mrb[0].mxu0 %v612
      %v693 = vpop.f32.mrb[0].mxu0
      %v694 = vadd.f32 0.0, %v693
      %v695 = vpop.f32.mrb[0].mxu0
      %v696 = vpop.f32.mrb[0].mxu0
      %v697 = vadd.f32 0.0, %v696
      %v698 = vpop.f32.mrb[0].mxu0
      %699 = vmatprep.mubr.bf16.mxu0 0
      %700 = vmatmul.mubr.bf16.gmra.mrb[0].mxu0 %v615
      %v701 = vpop.f32.mrb[0].mxu0
      %v702 = vadd.f32 0.0, %v701
      %v703 = vpop.f32.mrb[0].mxu0
      %v704 = vpop.f32.mrb[0].mxu0
      %v705 = vadd.f32 0.0, %v704
      %v706 = vpop.f32.mrb[0].mxu0
      %707 = vmatprep.mubr.bf16.mxu0 0
      %708 = vmatmul.mubr.bf16.gmra.mrb[0].mxu0 %v618
      %v709 = vpop.f32.mrb[0].mxu0
      %v710 = vadd.f32 0.0, %v709
      %v711 = vpop.f32.mrb[0].mxu0
      %v712 = vpop.f32.mrb[0].mxu0
      %v713 = vadd.f32 0.0, %v712
      %v714 = vpop.f32.mrb[0].mxu0
      %715 = vmatprep.mubr.bf16.mxu0 0
      %716 = vmatmul.mubr.bf16.gmra.mrb[0].mxu0 %v621
      %v717 = vpop.f32.mrb[0].mxu0
      %v718 = vadd.f32 0.0, %v717
      %v719 = vpop.f32.mrb[0].mxu0
      %v720 = vpop.f32.mrb[0].mxu0
      %v721 = vadd.f32 0.0, %v720
      %v722 = vpop.f32.mrb[0].mxu0
      %723 = vmatprep.mubr.bf16.mxu0 0
      %724 = vmatmul.mubr.bf16.gmra.mrb[0].mxu0 %v624
      %v725 = vpop.f32.mrb[0].mxu0
      %v726 = vadd.f32 0.0, %v725
      %v727 = vpop.f32.mrb[0].mxu0
      %v728 = vpop.f32.mrb[0].mxu0
      %v729 = vadd.f32 0.0, %v728
      %v730 = vpop.f32.mrb[0].mxu0
      %731 = vmatprep.mubr.bf16.mxu0 0
      %732 = vmatmul.mubr.bf16.gmra.mrb[0].mxu0 %v627
      %v733 = vpop.f32.mrb[0].mxu0
      %v734 = vadd.f32 0.0, %v733
      %v735 = vpop.f32.mrb[0].mxu0
      %v736 = vpop.f32.mrb[0].mxu0
      %v737 = vadd.f32 0.0, %v736
      %v738 = vpop.f32.mrb[0].mxu0
      %739 = vmatprep.mubr.bf16.mxu0 0
      %740 = vmatmul.mubr.bf16.gmra.mrb[0].mxu0 %v630
      %v741 = vpop.f32.mrb[0].mxu0
      %v742 = vadd.f32 0.0, %v741
      %v743 = vpop.f32.mrb[0].mxu0
      %v744 = vpop.f32.mrb[0].mxu0
      %v745 = vadd.f32 0.0, %v744
      %v746 = vpop.f32.mrb[0].mxu0
      %747 = vmatprep.mubr.bf16.mxu0 0
      %748 = vmatmul.mubr.bf16.gmra.mrb[0].mxu0 %v633
      %v749 = vpop.f32.mrb[0].mxu0
      %v750 = vadd.f32 0.0, %v749
      %v751 = vpop.f32.mrb[0].mxu0
      %v752 = vpop.f32.mrb[0].mxu0
      %v753 = vadd.f32 0.0, %v752
      %v754 = vpop.f32.mrb[0].mxu0
      %755 = vmatprep.mubr.bf16.mxu0 0
      %756 = vmatmul.mubr.bf16.gmra.mrb[0].mxu0 %v636
      %v757 = vpop.f32.mrb[0].mxu0
      %v758 = vadd.f32 0.0, %v757
      %v759 = vpop.f32.mrb[0].mxu0
      %v760 = vpop.f32.mrb[0].mxu0
      %v761 = vadd.f32 0.0, %v760
      %v762 = vpop.f32.mrb[0].mxu0
      %763 = vmatprep.mubr.bf16.mxu0 0
      %764 = vmatmul.mubr.bf16.gmra.mrb[0].mxu0 %v639
      %v765 = vpop.f32.mrb[0].mxu0
      %v766 = vadd.f32 0.0, %v765
      %v767 = vpop.f32.mrb[0].mxu0
      %v768 = vpop.f32.mrb[0].mxu0
      %v769 = vadd.f32 0.0, %v768
      %v770 = vpop.f32.mrb[0].mxu0
      %771 = vmatprep.mubr.bf16.mxu0 0
      %772 = vmatmul.mubr.bf16.gmra.mrb[0].mxu0 %v642
      %v773 = vpop.f32.mrb[0].mxu0
      %v774 = vadd.f32 0.0, %v773
      %v775 = vpop.f32.mrb[0].mxu0
      %v776 = vpop.f32.mrb[0].mxu0
      %v777 = vadd.f32 0.0, %v776
      %v778 = vpop.f32.mrb[0].mxu0
      %779 = vmatprep.mubr.bf16.mxu0 0
      %780 = vmatmul.mubr.bf16.gmra.mrb[0].mxu0 %v645
      %v781 = vpop.f32.mrb[0].mxu0
      %v782 = vadd.f32 0.0, %v781
      %v783 = vpop.f32.mrb[0].mxu0
      %v784 = vpop.f32.mrb[0].mxu0
      %v785 = vadd.f32 0.0, %v784
      %v786 = vpop.f32.mrb[0].mxu0
      %787 = vmatprep.mubr.bf16.mxu0 0
      %788 = vmatmul.mubr.bf16.gmra.mrb[0].mxu0 %v648
      %v789 = vpop.f32.mrb[0].mxu0
      %v790 = vadd.f32 0.0, %v789
      %v791 = vpop.f32.mrb[0].mxu0
      %v792 = vpop.f32.mrb[0].mxu0
      %v793 = vadd.f32 0.0, %v792
      %v794 = vpop.f32.mrb[0].mxu0
      %795 = vmatprep.mubr.bf16.mxu0 0
      %796 = vmatmul.mubr.bf16.gmra.mrb[0].mxu0 %v651
      %v797 = vpop.f32.mrb[0].mxu0
      %v798 = vadd.f32 0.0, %v797
      %v799 = vpop.f32.mrb[0].mxu0
      %v800 = vpop.f32.mrb[0].mxu0
      %v801 = vadd.f32 0.0, %v800
      %v802 = vpop.f32.mrb[0].mxu0
      %803 = vmatprep.mubr.bf16.mxu0 0
      %804 = vmatmul.mubr.bf16.gmra.mrb[0].mxu0 %v654
      %v805 = vpop.f32.mrb[0].mxu0
      %v806 = vadd.f32 0.0, %v805
      %v807 = vpop.f32.mrb[0].mxu0
      %v808 = vpop.f32.mrb[0].mxu0
      %v809 = vadd.f32 0.0, %v808
      %v810 = vpop.f32.mrb[0].mxu0
      %811 = vmatprep.mubr.bf16.mxu0 0
      %812 = vmatmul.mubr.bf16.gmra.mrb[0].mxu0 %v657
      %v813 = vpop.f32.mrb[0].mxu0
      %v814 = vadd.f32 0.0, %v813
      %v815 = vpop.f32.mrb[0].mxu0
      %v816 = vpop.f32.mrb[0].mxu0
      %v817 = vadd.f32 0.0, %v816
      %v818 = vpop.f32.mrb[0].mxu0
      %819 = vdwg.mxu0
      %v820 = vld [vmem:[%s6] sm:$0x1]
      %v822 = vlaneseq
      %v823 = vshrl.u32 %v822, 7
      %v824 = vsub.s32 0, %v823
      %v825 = vrot.slane %v820, %v824
      %v827 = vadd.f32 %v694, %v825
      %v828 = vadd.f32 %v697, %v825
      %v829 = vadd.f32 %v702, %v825
      %v830 = vadd.f32 %v705, %v825
      %v831 = vadd.f32 %v710, %v825
      %v832 = vadd.f32 %v713, %v825
      %v833 = vadd.f32 %v718, %v825
      %v834 = vadd.f32 %v721, %v825
      %v835 = vadd.f32 %v726, %v825
      %v836 = vadd.f32 %v729, %v825
      %v837 = vadd.f32 %v734, %v825
      %v838 = vadd.f32 %v737, %v825
      %v839 = vadd.f32 %v742, %v825
      %v840 = vadd.f32 %v745, %v825
      %v841 = vadd.f32 %v750, %v825
      %v842 = vadd.f32 %v753, %v825
      %v843 = vadd.f32 %v758, %v825
      %v844 = vadd.f32 %v761, %v825
      %v845 = vadd.f32 %v766, %v825
      %v846 = vadd.f32 %v769, %v825
      %v847 = vadd.f32 %v774, %v825
      %v848 = vadd.f32 %v777, %v825
      %v849 = vadd.f32 %v782, %v825
      %v850 = vadd.f32 %v785, %v825
      %v851 = vadd.f32 %v790, %v825
      %v852 = vadd.f32 %v793, %v825
      %v853 = vadd.f32 %v798, %v825
      %v854 = vadd.f32 %v801, %v825
      %v855 = vadd.f32 %v806, %v825
      %v856 = vadd.f32 %v809, %v825
      %v857 = vadd.f32 %v814, %v825
      %v858 = vadd.f32 %v817, %v825
      %v859 = vld [vmem:[%s389] sm:$0x1]
      %v861 = vlaneseq
      %v862 = vshrl.u32 %v861, 7
      %v863 = vsub.s32 0, %v862
      %v864 = vrot.slane %v859, %v863
      %v866 = vadd.f32 %v827, %v864
      %v867 = vadd.f32 %v828, %v864
      %v868 = vadd.f32 %v829, %v864
      %v869 = vadd.f32 %v830, %v864
      %v870 = vadd.f32 %v831, %v864
      %v871 = vadd.f32 %v832, %v864
      %v872 = vadd.f32 %v833, %v864
      %v873 = vadd.f32 %v834, %v864
      %v874 = vadd.f32 %v835, %v864
      %v875 = vadd.f32 %v836, %v864
      %v876 = vadd.f32 %v837, %v864
      %v877 = vadd.f32 %v838, %v864
      %v878 = vadd.f32 %v839, %v864
      %v879 = vadd.f32 %v840, %v864
      %v880 = vadd.f32 %v841, %v864
      %v881 = vadd.f32 %v842, %v864
      %v882 = vadd.f32 %v843, %v864
      %v883 = vadd.f32 %v844, %v864
      %v884 = vadd.f32 %v845, %v864
      %v885 = vadd.f32 %v846, %v864
      %v886 = vadd.f32 %v847, %v864
      %v887 = vadd.f32 %v848, %v864
      %v888 = vadd.f32 %v849, %v864
      %v889 = vadd.f32 %v850, %v864
      %v890 = vadd.f32 %v851, %v864
      %v891 = vadd.f32 %v852, %v864
      %v892 = vadd.f32 %v853, %v864
      %v893 = vadd.f32 %v854, %v864
      %v894 = vadd.f32 %v855, %v864
      %v895 = vadd.f32 %v856, %v864
      %v896 = vadd.f32 %v857, %v864
      %v897 = vadd.f32 %v858, %v864
      %v898 = vxor.u32 %v866, 2147483648
      %v899 = vxor.u32 %v867, 2147483648
      %v900 = vxor.u32 %v868, 2147483648
      %v901 = vxor.u32 %v869, 2147483648
      %v902 = vxor.u32 %v870, 2147483648
      %v903 = vxor.u32 %v871, 2147483648
      %v904 = vxor.u32 %v872, 2147483648
      %v905 = vxor.u32 %v873, 2147483648
      %v906 = vxor.u32 %v874, 2147483648
      %v907 = vxor.u32 %v875, 2147483648
      %v908 = vxor.u32 %v876, 2147483648
      %v909 = vxor.u32 %v877, 2147483648
      %v910 = vxor.u32 %v878, 2147483648
      %v911 = vxor.u32 %v879, 2147483648
      %v912 = vxor.u32 %v880, 2147483648
      %v913 = vxor.u32 %v881, 2147483648
      %v914 = vxor.u32 %v882, 2147483648
      %v915 = vxor.u32 %v883, 2147483648
      %v916 = vxor.u32 %v884, 2147483648
      %v917 = vxor.u32 %v885, 2147483648
      %v918 = vxor.u32 %v886, 2147483648
      %v919 = vxor.u32 %v887, 2147483648
      %v920 = vxor.u32 %v888, 2147483648
      %v921 = vxor.u32 %v889, 2147483648
      %v922 = vxor.u32 %v890, 2147483648
      %v923 = vxor.u32 %v891, 2147483648
      %v924 = vxor.u32 %v892, 2147483648
      %v925 = vxor.u32 %v893, 2147483648
      %v926 = vxor.u32 %v894, 2147483648
      %v927 = vxor.u32 %v895, 2147483648
      %v928 = vxor.u32 %v896, 2147483648
      %v929 = vxor.u32 %v897, 2147483648
      %v930 = vmul.f32 %v898, 1.442695
      %v931 = vpow.pop %v930
      %v932 = vmul.f32 %v899, 1.442695
      %v933 = vpow.pop %v932
      %v934 = vmul.f32 %v900, 1.442695
      %v935 = vpow.pop %v934
      %v936 = vmul.f32 %v901, 1.442695
      %v937 = vpow.pop %v936
      %v938 = vmul.f32 %v902, 1.442695
      %v939 = vpow.pop %v938
      %v940 = vmul.f32 %v903, 1.442695
      %v941 = vpow.pop %v940
      %v942 = vmul.f32 %v904, 1.442695
      %v943 = vpow.pop %v942
      %v944 = vmul.f32 %v905, 1.442695
      %v945 = vpow.pop %v944
      %v946 = vmul.f32 %v906, 1.442695
      %v947 = vpow.pop %v946
      %v948 = vmul.f32 %v907, 1.442695
      %v949 = vpow.pop %v948
      %v950 = vmul.f32 %v908, 1.442695
      %v951 = vpow.pop %v950
      %v952 = vmul.f32 %v909, 1.442695
      %v953 = vpow.pop %v952
      %v954 = vmul.f32 %v910, 1.442695
      %v955 = vpow.pop %v954
      %v956 = vmul.f32 %v911, 1.442695
      %v957 = vpow.pop %v956
      %v958 = vmul.f32 %v912, 1.442695
      %v959 = vpow.pop %v958
      %v960 = vmul.f32 %v913, 1.442695
      %v961 = vpow.pop %v960
      %v962 = vmul.f32 %v914, 1.442695
      %v963 = vpow.pop %v962
      %v964 = vmul.f32 %v915, 1.442695
      %v965 = vpow.pop %v964
      %v966 = vmul.f32 %v916, 1.442695
      %v967 = vpow.pop %v966
      %v968 = vmul.f32 %v917, 1.442695
      %v969 = vpow.pop %v968
      %v970 = vmul.f32 %v918, 1.442695
      %v971 = vpow.pop %v970
      %v972 = vmul.f32 %v919, 1.442695
      %v973 = vpow.pop %v972
      %v974 = vmul.f32 %v920, 1.442695
      %v975 = vpow.pop %v974
      %v976 = vmul.f32 %v921, 1.442695
      %v977 = vpow.pop %v976
      %v978 = vmul.f32 %v922, 1.442695
      %v979 = vpow.pop %v978
      %v980 = vmul.f32 %v923, 1.442695
      %v981 = vpow.pop %v980
      %v982 = vmul.f32 %v924, 1.442695
      %v983 = vpow.pop %v982
      %v984 = vmul.f32 %v925, 1.442695
      %v985 = vpow.pop %v984
      %v986 = vmul.f32 %v926, 1.442695
      %v987 = vpow.pop %v986
      %v988 = vmul.f32 %v927, 1.442695
      %v989 = vpow.pop %v988
      %v990 = vmul.f32 %v928, 1.442695
      %v991 = vpow.pop %v990
      %v992 = vmul.f32 %v929, 1.442695
      %v993 = vpow.pop %v992
      %v994 = vadd.f32 %v931, 1.0
      %v995 = vadd.f32 %v933, 1.0
      %v996 = vadd.f32 %v935, 1.0
      %v997 = vadd.f32 %v937, 1.0
      %v998 = vadd.f32 %v939, 1.0
      %v999 = vadd.f32 %v941, 1.0
      %v1000 = vadd.f32 %v943, 1.0
      %v1001 = vadd.f32 %v945, 1.0
      %v1002 = vadd.f32 %v947, 1.0
      %v1003 = vadd.f32 %v949, 1.0
      %v1004 = vadd.f32 %v951, 1.0
      %v1005 = vadd.f32 %v953, 1.0
      %v1006 = vadd.f32 %v955, 1.0
      %v1007 = vadd.f32 %v957, 1.0
      %v1008 = vadd.f32 %v959, 1.0
      %v1009 = vadd.f32 %v961, 1.0
      %v1010 = vadd.f32 %v963, 1.0
      %v1011 = vadd.f32 %v965, 1.0
      %v1012 = vadd.f32 %v967, 1.0
      %v1013 = vadd.f32 %v969, 1.0
      %v1014 = vadd.f32 %v971, 1.0
      %v1015 = vadd.f32 %v973, 1.0
      %v1016 = vadd.f32 %v975, 1.0
      %v1017 = vadd.f32 %v977, 1.0
      %v1018 = vadd.f32 %v979, 1.0
      %v1019 = vadd.f32 %v981, 1.0
      %v1020 = vadd.f32 %v983, 1.0
      %v1021 = vadd.f32 %v985, 1.0
      %v1022 = vadd.f32 %v987, 1.0
      %v1023 = vadd.f32 %v989, 1.0
      %v1024 = vadd.f32 %v991, 1.0
      %v1025 = vadd.f32 %v993, 1.0
      %v1026 = vrcp.pop %v994
      %v1027 = vmul.f32 1.0, %v1026
      %v1028 = vrcp.pop %v995
      %v1029 = vmul.f32 1.0, %v1028
      %v1030 = vrcp.pop %v996
      %v1031 = vmul.f32 1.0, %v1030
      %v1032 = vrcp.pop %v997
      %v1033 = vmul.f32 1.0, %v1032
      %v1034 = vrcp.pop %v998
      %v1035 = vmul.f32 1.0, %v1034
      %v1036 = vrcp.pop %v999
      %v1037 = vmul.f32 1.0, %v1036
      %v1038 = vrcp.pop %v1000
      %v1039 = vmul.f32 1.0, %v1038
      %v1040 = vrcp.pop %v1001
      %v1041 = vmul.f32 1.0, %v1040
      %v1042 = vrcp.pop %v1002
      %v1043 = vmul.f32 1.0, %v1042
      %v1044 = vrcp.pop %v1003
      %v1045 = vmul.f32 1.0, %v1044
      %v1046 = vrcp.pop %v1004
      %v1047 = vmul.f32 1.0, %v1046
      %v1048 = vrcp.pop %v1005
      %v1049 = vmul.f32 1.0, %v1048
      %v1050 = vrcp.pop %v1006
      %v1051 = vmul.f32 1.0, %v1050
      %v1052 = vrcp.pop %v1007
      %v1053 = vmul.f32 1.0, %v1052
      %v1054 = vrcp.pop %v1008
      %v1055 = vmul.f32 1.0, %v1054
      %v1056 = vrcp.pop %v1009
      %v1057 = vmul.f32 1.0, %v1056
      %v1058 = vrcp.pop %v1010
      %v1059 = vmul.f32 1.0, %v1058
      %v1060 = vrcp.pop %v1011
      %v1061 = vmul.f32 1.0, %v1060
      %v1062 = vrcp.pop %v1012
      %v1063 = vmul.f32 1.0, %v1062
      %v1064 = vrcp.pop %v1013
      %v1065 = vmul.f32 1.0, %v1064
      %v1066 = vrcp.pop %v1014
      %v1067 = vmul.f32 1.0, %v1066
      %v1068 = vrcp.pop %v1015
      %v1069 = vmul.f32 1.0, %v1068
      %v1070 = vrcp.pop %v1016
      %v1071 = vmul.f32 1.0, %v1070
      %v1072 = vrcp.pop %v1017
      %v1073 = vmul.f32 1.0, %v1072
      %v1074 = vrcp.pop %v1018
      %v1075 = vmul.f32 1.0, %v1074
      %v1076 = vrcp.pop %v1019
      %v1077 = vmul.f32 1.0, %v1076
      %v1078 = vrcp.pop %v1020
      %v1079 = vmul.f32 1.0, %v1078
      %v1080 = vrcp.pop %v1021
      %v1081 = vmul.f32 1.0, %v1080
      %v1082 = vrcp.pop %v1022
      %v1083 = vmul.f32 1.0, %v1082
      %v1084 = vrcp.pop %v1023
      %v1085 = vmul.f32 1.0, %v1084
      %v1086 = vrcp.pop %v1024
      %v1087 = vmul.f32 1.0, %v1086
      %v1088 = vrcp.pop %v1025
      %v1089 = vmul.f32 1.0, %v1088
      %v1090 = vmul.f32 %v866, %v1027
      %v1091 = vmul.f32 %v867, %v1029
      %v1092 = vmul.f32 %v868, %v1031
      %v1093 = vmul.f32 %v869, %v1033
      %v1094 = vmul.f32 %v870, %v1035
      %v1095 = vmul.f32 %v871, %v1037
      %v1096 = vmul.f32 %v872, %v1039
      %v1097 = vmul.f32 %v873, %v1041
      %v1098 = vmul.f32 %v874, %v1043
      %v1099 = vmul.f32 %v875, %v1045
      %v1100 = vmul.f32 %v876, %v1047
      %v1101 = vmul.f32 %v877, %v1049
      %v1102 = vmul.f32 %v878, %v1051
      %v1103 = vmul.f32 %v879, %v1053
      %v1104 = vmul.f32 %v880, %v1055
      %v1105 = vmul.f32 %v881, %v1057
      %v1106 = vmul.f32 %v882, %v1059
      %v1107 = vmul.f32 %v883, %v1061
      %v1108 = vmul.f32 %v884, %v1063
      %v1109 = vmul.f32 %v885, %v1065
      %v1110 = vmul.f32 %v886, %v1067
      %v1111 = vmul.f32 %v887, %v1069
      %v1112 = vmul.f32 %v888, %v1071
      %v1113 = vmul.f32 %v889, %v1073
      %v1114 = vmul.f32 %v890, %v1075
      %v1115 = vmul.f32 %v891, %v1077
      %v1116 = vmul.f32 %v892, %v1079
      %v1117 = vmul.f32 %v893, %v1081
      %v1118 = vmul.f32 %v894, %v1083
      %v1119 = vmul.f32 %v895, %v1085
      %v1120 = vmul.f32 %v896, %v1087
      %v1121 = vmul.f32 %v897, %v1089
      %v1122 = vpack.c.bf16 %v1091, %v1090
      %v1123 = vpack.c.bf16 %v1093, %v1092
      %v1124 = vpack.c.bf16 %v1095, %v1094
      %v1125 = vpack.c.bf16 %v1097, %v1096
      %v1126 = vpack.c.bf16 %v1099, %v1098
      %v1127 = vpack.c.bf16 %v1101, %v1100
      %v1128 = vpack.c.bf16 %v1103, %v1102
      %v1129 = vpack.c.bf16 %v1105, %v1104
      %v1130 = vpack.c.bf16 %v1107, %v1106
      %v1131 = vpack.c.bf16 %v1109, %v1108
      %v1132 = vpack.c.bf16 %v1111, %v1110
      %v1133 = vpack.c.bf16 %v1113, %v1112
      %v1134 = vpack.c.bf16 %v1115, %v1114
      %v1135 = vpack.c.bf16 %v1117, %v1116
      %v1136 = vpack.c.bf16 %v1119, %v1118
      %v1137 = vpack.c.bf16 %v1121, %v1120
      %v1138 = vlaneseq
      %v1139 = vshrl.u32 %v1138, 7
      %v1140 = vadd.s32 %v1139, 8
      %v1141 = vadd.s32 %v1139, 16
      %v1142 = vadd.s32 %v1139, 24
      %v1143 = vadd.s32 %v1139, 32
      %v1144 = vadd.s32 %v1139, 40
      %v1145 = vadd.s32 %v1139, 48
      %v1146 = vadd.s32 %v1139, 56
      %v1147 = vadd.s32 %v1139, 64
      %v1148 = vadd.s32 %v1139, 72
      %v1149 = vadd.s32 %v1139, 80
      %v1150 = vadd.s32 %v1139, 88
      %v1151 = vadd.s32 %v1139, 96
      %v1152 = vadd.s32 %v1139, 104
      %v1153 = vadd.s32 %v1139, 112
      %v1154 = vadd.s32 %v1139, 120
      %v1155 = vadd.s32 %v1139, 128
      %v1156 = vadd.s32 %v1139, 136
      %v1157 = vadd.s32 %v1139, 144
      %v1158 = vadd.s32 %v1139, 152
      %v1159 = vadd.s32 %v1139, 160
      %v1160 = vadd.s32 %v1139, 168
      %v1161 = vadd.s32 %v1139, 176
      %v1162 = vadd.s32 %v1139, 184
      %v1163 = vadd.s32 %v1139, 192
      %v1164 = vadd.s32 %v1139, 200
      %v1165 = vadd.s32 %v1139, 208
      %v1166 = vadd.s32 %v1139, 216
      %v1167 = vadd.s32 %v1139, 224
      %v1168 = vadd.s32 %v1139, 232
      %v1169 = vadd.s32 %v1139, 240
      %v1170 = vadd.s32 %v1139, 248
      %vm1171 = vcmp.lt.s32.totalorder %v1139, 0
      %v1172 = vsub.s32 0, %v1139
      %v1173 = vsel %vm1171, %v1172, %v1139
      %v1174 = vshrl.u32 %v1173, 4
      %v1175 = vand.u32 %v1173, 15
      %v1176 = vsub.s32 0, %v1175
      %v1177 = vsel %vm1171, %v1176, %v1175
      %vm1178 = vcmp.lt.s32.totalorder %v1140, 0
      %v1179 = vsub.s32 0, %v1140
      %v1180 = vsel %vm1178, %v1179, %v1140
      %v1181 = vshrl.u32 %v1180, 4
      %v1182 = vand.u32 %v1180, 15
      %v1183 = vsub.s32 0, %v1182
      %v1184 = vsel %vm1178, %v1183, %v1182
      %vm1185 = vcmp.lt.s32.totalorder %v1141, 0
      %v1186 = vsub.s32 0, %v1141
      %v1187 = vsel %vm1185, %v1186, %v1141
      %v1188 = vshrl.u32 %v1187, 4
      %v1189 = vand.u32 %v1187, 15
      %v1190 = vsub.s32 0, %v1189
      %v1191 = vsel %vm1185, %v1190, %v1189
      %vm1192 = vcmp.lt.s32.totalorder %v1142, 0
      %v1193 = vsub.s32 0, %v1142
      %v1194 = vsel %vm1192, %v1193, %v1142
      %v1195 = vshrl.u32 %v1194, 4
      %v1196 = vand.u32 %v1194, 15
      %v1197 = vsub.s32 0, %v1196
      %v1198 = vsel %vm1192, %v1197, %v1196
      %vm1199 = vcmp.lt.s32.totalorder %v1143, 0
      %v1200 = vsub.s32 0, %v1143
      %v1201 = vsel %vm1199, %v1200, %v1143
      %v1202 = vshrl.u32 %v1201, 4
      %v1203 = vand.u32 %v1201, 15
      %v1204 = vsub.s32 0, %v1203
      %v1205 = vsel %vm1199, %v1204, %v1203
      %vm1206 = vcmp.lt.s32.totalorder %v1144, 0
      %v1207 = vsub.s32 0, %v1144
      %v1208 = vsel %vm1206, %v1207, %v1144
      %v1209 = vshrl.u32 %v1208, 4
      %v1210 = vand.u32 %v1208, 15
      %v1211 = vsub.s32 0, %v1210
      %v1212 = vsel %vm1206, %v1211, %v1210
      %vm1213 = vcmp.lt.s32.totalorder %v1145, 0
      %v1214 = vsub.s32 0, %v1145
      %v1215 = vsel %vm1213, %v1214, %v1145
      %v1216 = vshrl.u32 %v1215, 4
      %v1217 = vand.u32 %v1215, 15
      %v1218 = vsub.s32 0, %v1217
      %v1219 = vsel %vm1213, %v1218, %v1217
      %vm1220 = vcmp.lt.s32.totalorder %v1146, 0
      %v1221 = vsub.s32 0, %v1146
      %v1222 = vsel %vm1220, %v1221, %v1146
      %v1223 = vshrl.u32 %v1222, 4
      %v1224 = vand.u32 %v1222, 15
      %v1225 = vsub.s32 0, %v1224
      %v1226 = vsel %vm1220, %v1225, %v1224
      %vm1227 = vcmp.lt.s32.totalorder %v1147, 0
      %v1228 = vsub.s32 0, %v1147
      %v1229 = vsel %vm1227, %v1228, %v1147
      %v1230 = vshrl.u32 %v1229, 4
      %v1231 = vand.u32 %v1229, 15
      %v1232 = vsub.s32 0, %v1231
      %v1233 = vsel %vm1227, %v1232, %v1231
      %vm1234 = vcmp.lt.s32.totalorder %v1148, 0
      %v1235 = vsub.s32 0, %v1148
      %v1236 = vsel %vm1234, %v1235, %v1148
      %v1237 = vshrl.u32 %v1236, 4
      %v1238 = vand.u32 %v1236, 15
      %v1239 = vsub.s32 0, %v1238
      %v1240 = vsel %vm1234, %v1239, %v1238
      %vm1241 = vcmp.lt.s32.totalorder %v1149, 0
      %v1242 = vsub.s32 0, %v1149
      %v1243 = vsel %vm1241, %v1242, %v1149
      %v1244 = vshrl.u32 %v1243, 4
      %v1245 = vand.u32 %v1243, 15
      %v1246 = vsub.s32 0, %v1245
      %v1247 = vsel %vm1241, %v1246, %v1245
      %vm1248 = vcmp.lt.s32.totalorder %v1150, 0
      %v1249 = vsub.s32 0, %v1150
      %v1250 = vsel %vm1248, %v1249, %v1150
      %v1251 = vshrl.u32 %v1250, 4
      %v1252 = vand.u32 %v1250, 15
      %v1253 = vsub.s32 0, %v1252
      %v1254 = vsel %vm1248, %v1253, %v1252
      %vm1255 = vcmp.lt.s32.totalorder %v1151, 0
      %v1256 = vsub.s32 0, %v1151
      %v1257 = vsel %vm1255, %v1256, %v1151
      %v1258 = vshrl.u32 %v1257, 4
      %v1259 = vand.u32 %v1257, 15
      %v1260 = vsub.s32 0, %v1259
      %v1261 = vsel %vm1255, %v1260, %v1259
      %vm1262 = vcmp.lt.s32.totalorder %v1152, 0
      %v1263 = vsub.s32 0, %v1152
      %v1264 = vsel %vm1262, %v1263, %v1152
      %v1265 = vshrl.u32 %v1264, 4
      %v1266 = vand.u32 %v1264, 15
      %v1267 = vsub.s32 0, %v1266
      %v1268 = vsel %vm1262, %v1267, %v1266
      %vm1269 = vcmp.lt.s32.totalorder %v1153, 0
      %v1270 = vsub.s32 0, %v1153
      %v1271 = vsel %vm1269, %v1270, %v1153
      %v1272 = vshrl.u32 %v1271, 4
      %v1273 = vand.u32 %v1271, 15
      %v1274 = vsub.s32 0, %v1273
      %v1275 = vsel %vm1269, %v1274, %v1273
      %vm1276 = vcmp.lt.s32.totalorder %v1154, 0
      %v1277 = vsub.s32 0, %v1154
      %v1278 = vsel %vm1276, %v1277, %v1154
      %v1279 = vshrl.u32 %v1278, 4
      %v1280 = vand.u32 %v1278, 15
      %v1281 = vsub.s32 0, %v1280
      %v1282 = vsel %vm1276, %v1281, %v1280
      %vm1283 = vcmp.lt.s32.totalorder %v1155, 0
      %v1284 = vsub.s32 0, %v1155
      %v1285 = vsel %vm1283, %v1284, %v1155
      %v1286 = vshrl.u32 %v1285, 4
      %v1287 = vand.u32 %v1285, 15
      %v1288 = vsub.s32 0, %v1287
      %v1289 = vsel %vm1283, %v1288, %v1287
      %vm1290 = vcmp.lt.s32.totalorder %v1156, 0
      %v1291 = vsub.s32 0, %v1156
      %v1292 = vsel %vm1290, %v1291, %v1156
      %v1293 = vshrl.u32 %v1292, 4
      %v1294 = vand.u32 %v1292, 15
      %v1295 = vsub.s32 0, %v1294
      %v1296 = vsel %vm1290, %v1295, %v1294
      %vm1297 = vcmp.lt.s32.totalorder %v1157, 0
      %v1298 = vsub.s32 0, %v1157
      %v1299 = vsel %vm1297, %v1298, %v1157
      %v1300 = vshrl.u32 %v1299, 4
      %v1301 = vand.u32 %v1299, 15
      %v1302 = vsub.s32 0, %v1301
      %v1303 = vsel %vm1297, %v1302, %v1301
      %vm1304 = vcmp.lt.s32.totalorder %v1158, 0
      %v1305 = vsub.s32 0, %v1158
      %v1306 = vsel %vm1304, %v1305, %v1158
      %v1307 = vshrl.u32 %v1306, 4
      %v1308 = vand.u32 %v1306, 15
      %v1309 = vsub.s32 0, %v1308
      %v1310 = vsel %vm1304, %v1309, %v1308
      %vm1311 = vcmp.lt.s32.totalorder %v1159, 0
      %v1312 = vsub.s32 0, %v1159
      %v1313 = vsel %vm1311, %v1312, %v1159
      %v1314 = vshrl.u32 %v1313, 4
      %v1315 = vand.u32 %v1313, 15
      %v1316 = vsub.s32 0, %v1315
      %v1317 = vsel %vm1311, %v1316, %v1315
      %vm1318 = vcmp.lt.s32.totalorder %v1160, 0
      %v1319 = vsub.s32 0, %v1160
      %v1320 = vsel %vm1318, %v1319, %v1160
      %v1321 = vshrl.u32 %v1320, 4
      %v1322 = vand.u32 %v1320, 15
      %v1323 = vsub.s32 0, %v1322
      %v1324 = vsel %vm1318, %v1323, %v1322
      %vm1325 = vcmp.lt.s32.totalorder %v1161, 0
      %v1326 = vsub.s32 0, %v1161
      %v1327 = vsel %vm1325, %v1326, %v1161
      %v1328 = vshrl.u32 %v1327, 4
      %v1329 = vand.u32 %v1327, 15
      %v1330 = vsub.s32 0, %v1329
      %v1331 = vsel %vm1325, %v1330, %v1329
      %vm1332 = vcmp.lt.s32.totalorder %v1162, 0
      %v1333 = vsub.s32 0, %v1162
      %v1334 = vsel %vm1332, %v1333, %v1162
      %v1335 = vshrl.u32 %v1334, 4
      %v1336 = vand.u32 %v1334, 15
      %v1337 = vsub.s32 0, %v1336
      %v1338 = vsel %vm1332, %v1337, %v1336
      %vm1339 = vcmp.lt.s32.totalorder %v1163, 0
      %v1340 = vsub.s32 0, %v1163
      %v1341 = vsel %vm1339, %v1340, %v1163
      %v1342 = vshrl.u32 %v1341, 4
      %v1343 = vand.u32 %v1341, 15
      %v1344 = vsub.s32 0, %v1343
      %v1345 = vsel %vm1339, %v1344, %v1343
      %vm1346 = vcmp.lt.s32.totalorder %v1164, 0
      %v1347 = vsub.s32 0, %v1164
      %v1348 = vsel %vm1346, %v1347, %v1164
      %v1349 = vshrl.u32 %v1348, 4
      %v1350 = vand.u32 %v1348, 15
      %v1351 = vsub.s32 0, %v1350
      %v1352 = vsel %vm1346, %v1351, %v1350
      %vm1353 = vcmp.lt.s32.totalorder %v1165, 0
      %v1354 = vsub.s32 0, %v1165
      %v1355 = vsel %vm1353, %v1354, %v1165
      %v1356 = vshrl.u32 %v1355, 4
      %v1357 = vand.u32 %v1355, 15
      %v1358 = vsub.s32 0, %v1357
      %v1359 = vsel %vm1353, %v1358, %v1357
      %vm1360 = vcmp.lt.s32.totalorder %v1166, 0
      %v1361 = vsub.s32 0, %v1166
      %v1362 = vsel %vm1360, %v1361, %v1166
      %v1363 = vshrl.u32 %v1362, 4
      %v1364 = vand.u32 %v1362, 15
      %v1365 = vsub.s32 0, %v1364
      %v1366 = vsel %vm1360, %v1365, %v1364
      %vm1367 = vcmp.lt.s32.totalorder %v1167, 0
      %v1368 = vsub.s32 0, %v1167
      %v1369 = vsel %vm1367, %v1368, %v1167
      %v1370 = vshrl.u32 %v1369, 4
      %v1371 = vand.u32 %v1369, 15
      %v1372 = vsub.s32 0, %v1371
      %v1373 = vsel %vm1367, %v1372, %v1371
      %vm1374 = vcmp.lt.s32.totalorder %v1168, 0
      %v1375 = vsub.s32 0, %v1168
      %v1376 = vsel %vm1374, %v1375, %v1168
      %v1377 = vshrl.u32 %v1376, 4
      %v1378 = vand.u32 %v1376, 15
      %v1379 = vsub.s32 0, %v1378
      %v1380 = vsel %vm1374, %v1379, %v1378
      %vm1381 = vcmp.lt.s32.totalorder %v1169, 0
      %v1382 = vsub.s32 0, %v1169
      %v1383 = vsel %vm1381, %v1382, %v1169
      %v1384 = vshrl.u32 %v1383, 4
      %v1385 = vand.u32 %v1383, 15
      %v1386 = vsub.s32 0, %v1385
      %v1387 = vsel %vm1381, %v1386, %v1385
      %vm1388 = vcmp.lt.s32.totalorder %v1170, 0
      %v1389 = vsub.s32 0, %v1170
      %v1390 = vsel %vm1388, %v1389, %v1170
      %v1391 = vshrl.u32 %v1390, 4
      %v1392 = vand.u32 %v1390, 15
      %v1393 = vsub.s32 0, %v1392
      %v1394 = vsel %vm1388, %v1393, %v1392
      %vm1395 = vcmp.ne.s32.totalorder %v1177, 0
      %vm1396 = vcmp.ne.s32.totalorder %v1184, 0
      %vm1397 = vcmp.ne.s32.totalorder %v1191, 0
      %vm1398 = vcmp.ne.s32.totalorder %v1198, 0
      %vm1399 = vcmp.ne.s32.totalorder %v1205, 0
      %vm1400 = vcmp.ne.s32.totalorder %v1212, 0
      %vm1401 = vcmp.ne.s32.totalorder %v1219, 0
      %vm1402 = vcmp.ne.s32.totalorder %v1226, 0
      %vm1403 = vcmp.ne.s32.totalorder %v1233, 0
      %vm1404 = vcmp.ne.s32.totalorder %v1240, 0
      %vm1405 = vcmp.ne.s32.totalorder %v1247, 0
      %vm1406 = vcmp.ne.s32.totalorder %v1254, 0
      %vm1407 = vcmp.ne.s32.totalorder %v1261, 0
      %vm1408 = vcmp.ne.s32.totalorder %v1268, 0
      %vm1409 = vcmp.ne.s32.totalorder %v1275, 0
      %vm1410 = vcmp.ne.s32.totalorder %v1282, 0
      %vm1411 = vcmp.ne.s32.totalorder %v1289, 0
      %vm1412 = vcmp.ne.s32.totalorder %v1296, 0
      %vm1413 = vcmp.ne.s32.totalorder %v1303, 0
      %vm1414 = vcmp.ne.s32.totalorder %v1310, 0
      %vm1415 = vcmp.ne.s32.totalorder %v1317, 0
      %vm1416 = vcmp.ne.s32.totalorder %v1324, 0
      %vm1417 = vcmp.ne.s32.totalorder %v1331, 0
      %vm1418 = vcmp.ne.s32.totalorder %v1338, 0
      %vm1419 = vcmp.ne.s32.totalorder %v1345, 0
      %vm1420 = vcmp.ne.s32.totalorder %v1352, 0
      %vm1421 = vcmp.ne.s32.totalorder %v1359, 0
      %vm1422 = vcmp.ne.s32.totalorder %v1366, 0
      %vm1423 = vcmp.ne.s32.totalorder %v1373, 0
      %vm1424 = vcmp.ne.s32.totalorder %v1380, 0
      %vm1425 = vcmp.ne.s32.totalorder %v1387, 0
      %vm1426 = vcmp.ne.s32.totalorder %v1394, 0
      %vm1427 = vcmp.lt.s32.totalorder %v1177, 0
      %vm1428 = vcmp.lt.s32.totalorder %v1184, 0
      %vm1429 = vcmp.lt.s32.totalorder %v1191, 0
      %vm1430 = vcmp.lt.s32.totalorder %v1198, 0
      %vm1431 = vcmp.lt.s32.totalorder %v1205, 0
      %vm1432 = vcmp.lt.s32.totalorder %v1212, 0
      %vm1433 = vcmp.lt.s32.totalorder %v1219, 0
      %vm1434 = vcmp.lt.s32.totalorder %v1226, 0
      %vm1435 = vcmp.lt.s32.totalorder %v1233, 0
      %vm1436 = vcmp.lt.s32.totalorder %v1240, 0
      %vm1437 = vcmp.lt.s32.totalorder %v1247, 0
      %vm1438 = vcmp.lt.s32.totalorder %v1254, 0
      %vm1439 = vcmp.lt.s32.totalorder %v1261, 0
      %vm1440 = vcmp.lt.s32.totalorder %v1268, 0
      %vm1441 = vcmp.lt.s32.totalorder %v1275, 0
      %vm1442 = vcmp.lt.s32.totalorder %v1282, 0
      %vm1443 = vcmp.lt.s32.totalorder %v1289, 0
      %vm1444 = vcmp.lt.s32.totalorder %v1296, 0
      %vm1445 = vcmp.lt.s32.totalorder %v1303, 0
      %vm1446 = vcmp.lt.s32.totalorder %v1310, 0
      %vm1447 = vcmp.lt.s32.totalorder %v1317, 0
      %vm1448 = vcmp.lt.s32.totalorder %v1324, 0
      %vm1449 = vcmp.lt.s32.totalorder %v1331, 0
      %vm1450 = vcmp.lt.s32.totalorder %v1338, 0
      %vm1451 = vcmp.lt.s32.totalorder %v1345, 0
      %vm1452 = vcmp.lt.s32.totalorder %v1352, 0
      %vm1453 = vcmp.lt.s32.totalorder %v1359, 0
      %vm1454 = vcmp.lt.s32.totalorder %v1366, 0
      %vm1455 = vcmp.lt.s32.totalorder %v1373, 0
      %vm1456 = vcmp.lt.s32.totalorder %v1380, 0
      %vm1457 = vcmp.lt.s32.totalorder %v1387, 0
      %vm1458 = vcmp.lt.s32.totalorder %v1394, 0
      %vm1459 = vmand %vm1427, %vm1395
      %vm1460 = vmand %vm1428, %vm1396
      %vm1461 = vmand %vm1429, %vm1397
      %vm1462 = vmand %vm1430, %vm1398
      %vm1463 = vmand %vm1431, %vm1399
      %vm1464 = vmand %vm1432, %vm1400
      %vm1465 = vmand %vm1433, %vm1401
      %vm1466 = vmand %vm1434, %vm1402
      %vm1467 = vmand %vm1435, %vm1403
      %vm1468 = vmand %vm1436, %vm1404
      %vm1469 = vmand %vm1437, %vm1405
      %vm1470 = vmand %vm1438, %vm1406
      %vm1471 = vmand %vm1439, %vm1407
      %vm1472 = vmand %vm1440, %vm1408
      %vm1473 = vmand %vm1441, %vm1409
      %vm1474 = vmand %vm1442, %vm1410
      %vm1475 = vmand %vm1443, %vm1411
      %vm1476 = vmand %vm1444, %vm1412
      %vm1477 = vmand %vm1445, %vm1413
      %vm1478 = vmand %vm1446, %vm1414
      %vm1479 = vmand %vm1447, %vm1415
      %vm1480 = vmand %vm1448, %vm1416
      %vm1481 = vmand %vm1449, %vm1417
      %vm1482 = vmand %vm1450, %vm1418
      %vm1483 = vmand %vm1451, %vm1419
      %vm1484 = vmand %vm1452, %vm1420
      %vm1485 = vmand %vm1453, %vm1421
      %vm1486 = vmand %vm1454, %vm1422
      %vm1487 = vmand %vm1455, %vm1423
      %vm1488 = vmand %vm1456, %vm1424
      %vm1489 = vmand %vm1457, %vm1425
      %vm1490 = vmand %vm1458, %vm1426
      %v1491 = vadd.s32 %v1177, 16
      %v1492 = vadd.s32 %v1184, 16
      %v1493 = vadd.s32 %v1191, 16
      %v1494 = vadd.s32 %v1198, 16
      %v1495 = vadd.s32 %v1205, 16
      %v1496 = vadd.s32 %v1212, 16
      %v1497 = vadd.s32 %v1219, 16
      %v1498 = vadd.s32 %v1226, 16
      %v1499 = vadd.s32 %v1233, 16
      %v1500 = vadd.s32 %v1240, 16
      %v1501 = vadd.s32 %v1247, 16
      %v1502 = vadd.s32 %v1254, 16
      %v1503 = vadd.s32 %v1261, 16
      %v1504 = vadd.s32 %v1268, 16
      %v1505 = vadd.s32 %v1275, 16
      %v1506 = vadd.s32 %v1282, 16
      %v1507 = vadd.s32 %v1289, 16
      %v1508 = vadd.s32 %v1296, 16
      %v1509 = vadd.s32 %v1303, 16
      %v1510 = vadd.s32 %v1310, 16
      %v1511 = vadd.s32 %v1317, 16
      %v1512 = vadd.s32 %v1324, 16
      %v1513 = vadd.s32 %v1331, 16
      %v1514 = vadd.s32 %v1338, 16
      %v1515 = vadd.s32 %v1345, 16
      %v1516 = vadd.s32 %v1352, 16
      %v1517 = vadd.s32 %v1359, 16
      %v1518 = vadd.s32 %v1366, 16
      %v1519 = vadd.s32 %v1373, 16
      %v1520 = vadd.s32 %v1380, 16
      %v1521 = vadd.s32 %v1387, 16
      %v1522 = vadd.s32 %v1394, 16
      %v1523 = vsel %vm1459, %v1491, %v1177
      %v1524 = vsel %vm1460, %v1492, %v1184
      %v1525 = vsel %vm1461, %v1493, %v1191
      %v1526 = vsel %vm1462, %v1494, %v1198
      %v1527 = vsel %vm1463, %v1495, %v1205
      %v1528 = vsel %vm1464, %v1496, %v1212
      %v1529 = vsel %vm1465, %v1497, %v1219
      %v1530 = vsel %vm1466, %v1498, %v1226
      %v1531 = vsel %vm1467, %v1499, %v1233
      %v1532 = vsel %vm1468, %v1500, %v1240
      %v1533 = vsel %vm1469, %v1501, %v1247
      %v1534 = vsel %vm1470, %v1502, %v1254
      %v1535 = vsel %vm1471, %v1503, %v1261
      %v1536 = vsel %vm1472, %v1504, %v1268
      %v1537 = vsel %vm1473, %v1505, %v1275
      %v1538 = vsel %vm1474, %v1506, %v1282
      %v1539 = vsel %vm1475, %v1507, %v1289
      %v1540 = vsel %vm1476, %v1508, %v1296
      %v1541 = vsel %vm1477, %v1509, %v1303
      %v1542 = vsel %vm1478, %v1510, %v1310
      %v1543 = vsel %vm1479, %v1511, %v1317
      %v1544 = vsel %vm1480, %v1512, %v1324
      %v1545 = vsel %vm1481, %v1513, %v1331
      %v1546 = vsel %vm1482, %v1514, %v1338
      %v1547 = vsel %vm1483, %v1515, %v1345
      %v1548 = vsel %vm1484, %v1516, %v1352
      %v1549 = vsel %vm1485, %v1517, %v1359
      %v1550 = vsel %vm1486, %v1518, %v1366
      %v1551 = vsel %vm1487, %v1519, %v1373
      %v1552 = vsel %vm1488, %v1520, %v1380
      %v1553 = vsel %vm1489, %v1521, %v1387
      %v1554 = vsel %vm1490, %v1522, %v1394
      %vm1555 = vcmp.ne.s32.totalorder %v1523, 15
      %vm1556 = vcmp.ne.s32.totalorder %v1524, 15
      %vm1557 = vcmp.ne.s32.totalorder %v1525, 15
      %vm1558 = vcmp.ne.s32.totalorder %v1526, 15
      %vm1559 = vcmp.ne.s32.totalorder %v1527, 15
      %vm1560 = vcmp.ne.s32.totalorder %v1528, 15
      %vm1561 = vcmp.ne.s32.totalorder %v1529, 15
      %vm1562 = vcmp.ne.s32.totalorder %v1530, 15
      %vm1563 = vcmp.ne.s32.totalorder %v1531, 15
      %vm1564 = vcmp.ne.s32.totalorder %v1532, 15
      %vm1565 = vcmp.ne.s32.totalorder %v1533, 15
      %vm1566 = vcmp.ne.s32.totalorder %v1534, 15
      %vm1567 = vcmp.ne.s32.totalorder %v1535, 15
      %vm1568 = vcmp.ne.s32.totalorder %v1536, 15
      %vm1569 = vcmp.ne.s32.totalorder %v1537, 15
      %vm1570 = vcmp.ne.s32.totalorder %v1538, 15
      %vm1571 = vcmp.ne.s32.totalorder %v1539, 15
      %vm1572 = vcmp.ne.s32.totalorder %v1540, 15
      %vm1573 = vcmp.ne.s32.totalorder %v1541, 15
      %vm1574 = vcmp.ne.s32.totalorder %v1542, 15
      %vm1575 = vcmp.ne.s32.totalorder %v1543, 15
      %vm1576 = vcmp.ne.s32.totalorder %v1544, 15
      %vm1577 = vcmp.ne.s32.totalorder %v1545, 15
      %vm1578 = vcmp.ne.s32.totalorder %v1546, 15
      %vm1579 = vcmp.ne.s32.totalorder %v1547, 15
      %vm1580 = vcmp.ne.s32.totalorder %v1548, 15
      %vm1581 = vcmp.ne.s32.totalorder %v1549, 15
      %vm1582 = vcmp.ne.s32.totalorder %v1550, 15
      %vm1583 = vcmp.ne.s32.totalorder %v1551, 15
      %vm1584 = vcmp.ne.s32.totalorder %v1552, 15
      %vm1585 = vcmp.ne.s32.totalorder %v1553, 15
      %vm1586 = vcmp.ne.s32.totalorder %v1554, 15
      %v1587 = vsel %vm1555, 1, 0
      %v1588 = vsel %vm1556, 1, 0
      %v1589 = vsel %vm1557, 1, 0
      %v1590 = vsel %vm1558, 1, 0
      %v1591 = vsel %vm1559, 1, 0
      %v1592 = vsel %vm1560, 1, 0
      %v1593 = vsel %vm1561, 1, 0
      %v1594 = vsel %vm1562, 1, 0
      %v1595 = vsel %vm1563, 1, 0
      %v1596 = vsel %vm1564, 1, 0
      %v1597 = vsel %vm1565, 1, 0
      %v1598 = vsel %vm1566, 1, 0
      %v1599 = vsel %vm1567, 1, 0
      %v1600 = vsel %vm1568, 1, 0
      %v1601 = vsel %vm1569, 1, 0
      %v1602 = vsel %vm1570, 1, 0
      %v1603 = vsel %vm1571, 1, 0
      %v1604 = vsel %vm1572, 1, 0
      %v1605 = vsel %vm1573, 1, 0
      %v1606 = vsel %vm1574, 1, 0
      %v1607 = vsel %vm1575, 1, 0
      %v1608 = vsel %vm1576, 1, 0
      %v1609 = vsel %vm1577, 1, 0
      %v1610 = vsel %vm1578, 1, 0
      %v1611 = vsel %vm1579, 1, 0
      %v1612 = vsel %vm1580, 1, 0
      %v1613 = vsel %vm1581, 1, 0
      %v1614 = vsel %vm1582, 1, 0
      %v1615 = vsel %vm1583, 1, 0
      %v1616 = vsel %vm1584, 1, 0
      %v1617 = vsel %vm1585, 1, 0
      %v1618 = vsel %vm1586, 1, 0
      %vm1619 = vcmp.eq.s32.totalorder %v1587, 1
      %vm1620 = vcmp.eq.s32.totalorder %v1588, 1
      %vm1621 = vcmp.eq.s32.totalorder %v1589, 1
      %vm1622 = vcmp.eq.s32.totalorder %v1590, 1
      %vm1623 = vcmp.eq.s32.totalorder %v1591, 1
      %vm1624 = vcmp.eq.s32.totalorder %v1592, 1
      %vm1625 = vcmp.eq.s32.totalorder %v1593, 1
      %vm1626 = vcmp.eq.s32.totalorder %v1594, 1
      %vm1627 = vcmp.eq.s32.totalorder %v1595, 1
      %vm1628 = vcmp.eq.s32.totalorder %v1596, 1
      %vm1629 = vcmp.eq.s32.totalorder %v1597, 1
      %vm1630 = vcmp.eq.s32.totalorder %v1598, 1
      %vm1631 = vcmp.eq.s32.totalorder %v1599, 1
      %vm1632 = vcmp.eq.s32.totalorder %v1600, 1
      %vm1633 = vcmp.eq.s32.totalorder %v1601, 1
      %vm1634 = vcmp.eq.s32.totalorder %v1602, 1
      %vm1635 = vcmp.eq.s32.totalorder %v1603, 1
      %vm1636 = vcmp.eq.s32.totalorder %v1604, 1
      %vm1637 = vcmp.eq.s32.totalorder %v1605, 1
      %vm1638 = vcmp.eq.s32.totalorder %v1606, 1
      %vm1639 = vcmp.eq.s32.totalorder %v1607, 1
      %vm1640 = vcmp.eq.s32.totalorder %v1608, 1
      %vm1641 = vcmp.eq.s32.totalorder %v1609, 1
      %vm1642 = vcmp.eq.s32.totalorder %v1610, 1
      %vm1643 = vcmp.eq.s32.totalorder %v1611, 1
      %vm1644 = vcmp.eq.s32.totalorder %v1612, 1
      %vm1645 = vcmp.eq.s32.totalorder %v1613, 1
      %vm1646 = vcmp.eq.s32.totalorder %v1614, 1
      %vm1647 = vcmp.eq.s32.totalorder %v1615, 1
      %vm1648 = vcmp.eq.s32.totalorder %v1616, 1
      %vm1649 = vcmp.eq.s32.totalorder %v1617, 1
      %vm1650 = vcmp.eq.s32.totalorder %v1618, 1
      %vm1651 = vmpackc.low %vm1619, %vm1619
      %vm1652 = vmpackc.low %vm1620, %vm1620
      %vm1653 = vmpackc.low %vm1621, %vm1621
      %vm1654 = vmpackc.low %vm1622, %vm1622
      %vm1655 = vmpackc.low %vm1623, %vm1623
      %vm1656 = vmpackc.low %vm1624, %vm1624
      %vm1657 = vmpackc.low %vm1625, %vm1625
      %vm1658 = vmpackc.low %vm1626, %vm1626
      %vm1659 = vmpackc.low %vm1627, %vm1627
      %vm1660 = vmpackc.low %vm1628, %vm1628
      %vm1661 = vmpackc.low %vm1629, %vm1629
      %vm1662 = vmpackc.low %vm1630, %vm1630
      %vm1663 = vmpackc.low %vm1631, %vm1631
      %vm1664 = vmpackc.low %vm1632, %vm1632
      %vm1665 = vmpackc.low %vm1633, %vm1633
      %vm1666 = vmpackc.low %vm1634, %vm1634
      %vm1667 = vmpackc.low %vm1635, %vm1635
      %vm1668 = vmpackc.low %vm1636, %vm1636
      %vm1669 = vmpackc.low %vm1637, %vm1637
      %vm1670 = vmpackc.low %vm1638, %vm1638
      %vm1671 = vmpackc.low %vm1639, %vm1639
      %vm1672 = vmpackc.low %vm1640, %vm1640
      %vm1673 = vmpackc.low %vm1641, %vm1641
      %vm1674 = vmpackc.low %vm1642, %vm1642
      %vm1675 = vmpackc.low %vm1643, %vm1643
      %vm1676 = vmpackc.low %vm1644, %vm1644
      %vm1677 = vmpackc.low %vm1645, %vm1645
      %vm1678 = vmpackc.low %vm1646, %vm1646
      %vm1679 = vmpackc.low %vm1647, %vm1647
      %vm1680 = vmpackc.low %vm1648, %vm1648
      %vm1681 = vmpackc.low %vm1649, %vm1649
      %vm1682 = vmpackc.low %vm1650, %vm1650
      %v1683 = vsel %vm1651, 65537, 0
      %v1684 = vsel %vm1652, 65537, 0
      %v1685 = vsel %vm1653, 65537, 0
      %v1686 = vsel %vm1654, 65537, 0
      %v1687 = vsel %vm1655, 65537, 0
      %v1688 = vsel %vm1656, 65537, 0
      %v1689 = vsel %vm1657, 65537, 0
      %v1690 = vsel %vm1658, 65537, 0
      %v1691 = vsel %vm1659, 65537, 0
      %v1692 = vsel %vm1660, 65537, 0
      %v1693 = vsel %vm1661, 65537, 0
      %v1694 = vsel %vm1662, 65537, 0
      %v1695 = vsel %vm1663, 65537, 0
      %v1696 = vsel %vm1664, 65537, 0
      %v1697 = vsel %vm1665, 65537, 0
      %v1698 = vsel %vm1666, 65537, 0
      %v1699 = vsel %vm1667, 65537, 0
      %v1700 = vsel %vm1668, 65537, 0
      %v1701 = vsel %vm1669, 65537, 0
      %v1702 = vsel %vm1670, 65537, 0
      %v1703 = vsel %vm1671, 65537, 0
      %v1704 = vsel %vm1672, 65537, 0
      %v1705 = vsel %vm1673, 65537, 0
      %v1706 = vsel %vm1674, 65537, 0
      %v1707 = vsel %vm1675, 65537, 0
      %v1708 = vsel %vm1676, 65537, 0
      %v1709 = vsel %vm1677, 65537, 0
      %v1710 = vsel %vm1678, 65537, 0
      %v1711 = vsel %vm1679, 65537, 0
      %v1712 = vsel %vm1680, 65537, 0
      %v1713 = vsel %vm1681, 65537, 0
      %v1714 = vsel %vm1682, 65537, 0
      %v1715 = vunpack.c.l.b16 %v1683
      %v1716 = vunpack.c.l.b16 %v1684
      %v1717 = vunpack.c.l.b16 %v1685
      %v1718 = vunpack.c.l.b16 %v1686
      %v1719 = vunpack.c.l.b16 %v1687
      %v1720 = vunpack.c.l.b16 %v1688
      %v1721 = vunpack.c.l.b16 %v1689
      %v1722 = vunpack.c.l.b16 %v1690
      %v1723 = vunpack.c.l.b16 %v1691
      %v1724 = vunpack.c.l.b16 %v1692
      %v1725 = vunpack.c.l.b16 %v1693
      %v1726 = vunpack.c.l.b16 %v1694
      %v1727 = vunpack.c.l.b16 %v1695
      %v1728 = vunpack.c.l.b16 %v1696
      %v1729 = vunpack.c.l.b16 %v1697
      %v1730 = vunpack.c.l.b16 %v1698
      %v1731 = vunpack.c.l.b16 %v1699
      %v1732 = vunpack.c.l.b16 %v1700
      %v1733 = vunpack.c.l.b16 %v1701
      %v1734 = vunpack.c.l.b16 %v1702
      %v1735 = vunpack.c.l.b16 %v1703
      %v1736 = vunpack.c.l.b16 %v1704
      %v1737 = vunpack.c.l.b16 %v1705
      %v1738 = vunpack.c.l.b16 %v1706
      %v1739 = vunpack.c.l.b16 %v1707
      %v1740 = vunpack.c.l.b16 %v1708
      %v1741 = vunpack.c.l.b16 %v1709
      %v1742 = vunpack.c.l.b16 %v1710
      %v1743 = vunpack.c.l.b16 %v1711
      %v1744 = vunpack.c.l.b16 %v1712
      %v1745 = vunpack.c.l.b16 %v1713
      %v1746 = vunpack.c.l.b16 %v1714
      %v1747 = vpack.c.b16 %v1716, %v1715
      %v1748 = vpack.c.b16 %v1718, %v1717
      %v1749 = vpack.c.b16 %v1720, %v1719
      %v1750 = vpack.c.b16 %v1722, %v1721
      %v1751 = vpack.c.b16 %v1724, %v1723
      %v1752 = vpack.c.b16 %v1726, %v1725
      %v1753 = vpack.c.b16 %v1728, %v1727
      %v1754 = vpack.c.b16 %v1730, %v1729
      %v1755 = vpack.c.b16 %v1732, %v1731
      %v1756 = vpack.c.b16 %v1734, %v1733
      %v1757 = vpack.c.b16 %v1736, %v1735
      %v1758 = vpack.c.b16 %v1738, %v1737
      %v1759 = vpack.c.b16 %v1740, %v1739
      %v1760 = vpack.c.b16 %v1742, %v1741
      %v1761 = vpack.c.b16 %v1744, %v1743
      %v1762 = vpack.c.b16 %v1746, %v1745
      %vm1763 = vcmp.ne.s16.totalorder %v1747, 0
      %vm1764 = vcmp.ne.s16.totalorder %v1748, 0
      %vm1765 = vcmp.ne.s16.totalorder %v1749, 0
      %vm1766 = vcmp.ne.s16.totalorder %v1750, 0
      %vm1767 = vcmp.ne.s16.totalorder %v1751, 0
      %vm1768 = vcmp.ne.s16.totalorder %v1752, 0
      %vm1769 = vcmp.ne.s16.totalorder %v1753, 0
      %vm1770 = vcmp.ne.s16.totalorder %v1754, 0
      %vm1771 = vcmp.ne.s16.totalorder %v1755, 0
      %vm1772 = vcmp.ne.s16.totalorder %v1756, 0
      %vm1773 = vcmp.ne.s16.totalorder %v1757, 0
      %vm1774 = vcmp.ne.s16.totalorder %v1758, 0
      %vm1775 = vcmp.ne.s16.totalorder %v1759, 0
      %vm1776 = vcmp.ne.s16.totalorder %v1760, 0
      %vm1777 = vcmp.ne.s16.totalorder %v1761, 0
      %vm1778 = vcmp.ne.s16.totalorder %v1762, 0
      %v1779 = vsel %vm1763, %v1122, 0
      %v1780 = vsel %vm1764, %v1123, 0
      %v1781 = vsel %vm1765, %v1124, 0
      %v1782 = vsel %vm1766, %v1125, 0
      %v1783 = vsel %vm1767, %v1126, 0
      %v1784 = vsel %vm1768, %v1127, 0
      %v1785 = vsel %vm1769, %v1128, 0
      %v1786 = vsel %vm1770, %v1129, 0
      %v1787 = vsel %vm1771, %v1130, 0
      %v1788 = vsel %vm1772, %v1131, 0
      %v1789 = vsel %vm1773, %v1132, 0
      %v1790 = vsel %vm1774, %v1133, 0
      %v1791 = vsel %vm1775, %v1134, 0
      %v1792 = vsel %vm1776, %v1135, 0
      %v1793 = vsel %vm1777, %v1136, 0
      %v1794 = vsel %vm1778, %v1137, 0
      %vm1795 = vcmp.ne.s32.totalorder %v1523, 0
      %vm1796 = vcmp.ne.s32.totalorder %v1524, 0
      %vm1797 = vcmp.ne.s32.totalorder %v1525, 0
      %vm1798 = vcmp.ne.s32.totalorder %v1526, 0
      %vm1799 = vcmp.ne.s32.totalorder %v1527, 0
      %vm1800 = vcmp.ne.s32.totalorder %v1528, 0
      %vm1801 = vcmp.ne.s32.totalorder %v1529, 0
      %vm1802 = vcmp.ne.s32.totalorder %v1530, 0
      %vm1803 = vcmp.ne.s32.totalorder %v1531, 0
      %vm1804 = vcmp.ne.s32.totalorder %v1532, 0
      %vm1805 = vcmp.ne.s32.totalorder %v1533, 0
      %vm1806 = vcmp.ne.s32.totalorder %v1534, 0
      %vm1807 = vcmp.ne.s32.totalorder %v1535, 0
      %vm1808 = vcmp.ne.s32.totalorder %v1536, 0
      %vm1809 = vcmp.ne.s32.totalorder %v1537, 0
      %vm1810 = vcmp.ne.s32.totalorder %v1538, 0
      %vm1811 = vcmp.ne.s32.totalorder %v1539, 0
      %vm1812 = vcmp.ne.s32.totalorder %v1540, 0
      %vm1813 = vcmp.ne.s32.totalorder %v1541, 0
      %vm1814 = vcmp.ne.s32.totalorder %v1542, 0
      %vm1815 = vcmp.ne.s32.totalorder %v1543, 0
      %vm1816 = vcmp.ne.s32.totalorder %v1544, 0
      %vm1817 = vcmp.ne.s32.totalorder %v1545, 0
      %vm1818 = vcmp.ne.s32.totalorder %v1546, 0
      %vm1819 = vcmp.ne.s32.totalorder %v1547, 0
      %vm1820 = vcmp.ne.s32.totalorder %v1548, 0
      %vm1821 = vcmp.ne.s32.totalorder %v1549, 0
      %vm1822 = vcmp.ne.s32.totalorder %v1550, 0
      %vm1823 = vcmp.ne.s32.totalorder %v1551, 0
      %vm1824 = vcmp.ne.s32.totalorder %v1552, 0
      %vm1825 = vcmp.ne.s32.totalorder %v1553, 0
      %vm1826 = vcmp.ne.s32.totalorder %v1554, 0
      %v1827 = vsel %vm1795, 1, 0
      %v1828 = vsel %vm1796, 1, 0
      %v1829 = vsel %vm1797, 1, 0
      %v1830 = vsel %vm1798, 1, 0
      %v1831 = vsel %vm1799, 1, 0
      %v1832 = vsel %vm1800, 1, 0
      %v1833 = vsel %vm1801, 1, 0
      %v1834 = vsel %vm1802, 1, 0
      %v1835 = vsel %vm1803, 1, 0
      %v1836 = vsel %vm1804, 1, 0
      %v1837 = vsel %vm1805, 1, 0
      %v1838 = vsel %vm1806, 1, 0
      %v1839 = vsel %vm1807, 1, 0
      %v1840 = vsel %vm1808, 1, 0
      %v1841 = vsel %vm1809, 1, 0
      %v1842 = vsel %vm1810, 1, 0
      %v1843 = vsel %vm1811, 1, 0
      %v1844 = vsel %vm1812, 1, 0
      %v1845 = vsel %vm1813, 1, 0
      %v1846 = vsel %vm1814, 1, 0
      %v1847 = vsel %vm1815, 1, 0
      %v1848 = vsel %vm1816, 1, 0
      %v1849 = vsel %vm1817, 1, 0
      %v1850 = vsel %vm1818, 1, 0
      %v1851 = vsel %vm1819, 1, 0
      %v1852 = vsel %vm1820, 1, 0
      %v1853 = vsel %vm1821, 1, 0
      %v1854 = vsel %vm1822, 1, 0
      %v1855 = vsel %vm1823, 1, 0
      %v1856 = vsel %vm1824, 1, 0
      %v1857 = vsel %vm1825, 1, 0
      %v1858 = vsel %vm1826, 1, 0
      %vm1859 = vcmp.eq.s32.totalorder %v1827, 1
      %vm1860 = vcmp.eq.s32.totalorder %v1828, 1
      %vm1861 = vcmp.eq.s32.totalorder %v1829, 1
      %vm1862 = vcmp.eq.s32.totalorder %v1830, 1
      %vm1863 = vcmp.eq.s32.totalorder %v1831, 1
      %vm1864 = vcmp.eq.s32.totalorder %v1832, 1
      %vm1865 = vcmp.eq.s32.totalorder %v1833, 1
      %vm1866 = vcmp.eq.s32.totalorder %v1834, 1
      %vm1867 = vcmp.eq.s32.totalorder %v1835, 1
      %vm1868 = vcmp.eq.s32.totalorder %v1836, 1
      %vm1869 = vcmp.eq.s32.totalorder %v1837, 1
      %vm1870 = vcmp.eq.s32.totalorder %v1838, 1
      %vm1871 = vcmp.eq.s32.totalorder %v1839, 1
      %vm1872 = vcmp.eq.s32.totalorder %v1840, 1
      %vm1873 = vcmp.eq.s32.totalorder %v1841, 1
      %vm1874 = vcmp.eq.s32.totalorder %v1842, 1
      %vm1875 = vcmp.eq.s32.totalorder %v1843, 1
      %vm1876 = vcmp.eq.s32.totalorder %v1844, 1
      %vm1877 = vcmp.eq.s32.totalorder %v1845, 1
      %vm1878 = vcmp.eq.s32.totalorder %v1846, 1
      %vm1879 = vcmp.eq.s32.totalorder %v1847, 1
      %vm1880 = vcmp.eq.s32.totalorder %v1848, 1
      %vm1881 = vcmp.eq.s32.totalorder %v1849, 1
      %vm1882 = vcmp.eq.s32.totalorder %v1850, 1
      %vm1883 = vcmp.eq.s32.totalorder %v1851, 1
      %vm1884 = vcmp.eq.s32.totalorder %v1852, 1
      %vm1885 = vcmp.eq.s32.totalorder %v1853, 1
      %vm1886 = vcmp.eq.s32.totalorder %v1854, 1
      %vm1887 = vcmp.eq.s32.totalorder %v1855, 1
      %vm1888 = vcmp.eq.s32.totalorder %v1856, 1
      %vm1889 = vcmp.eq.s32.totalorder %v1857, 1
      %vm1890 = vcmp.eq.s32.totalorder %v1858, 1
      %vm1891 = vmpackc.low %vm1859, %vm1859
      %vm1892 = vmpackc.low %vm1860, %vm1860
      %vm1893 = vmpackc.low %vm1861, %vm1861
      %vm1894 = vmpackc.low %vm1862, %vm1862
      %vm1895 = vmpackc.low %vm1863, %vm1863
      %vm1896 = vmpackc.low %vm1864, %vm1864
      %vm1897 = vmpackc.low %vm1865, %vm1865
      %vm1898 = vmpackc.low %vm1866, %vm1866
      %vm1899 = vmpackc.low %vm1867, %vm1867
      %vm1900 = vmpackc.low %vm1868, %vm1868
      %vm1901 = vmpackc.low %vm1869, %vm1869
      %vm1902 = vmpackc.low %vm1870, %vm1870
      %vm1903 = vmpackc.low %vm1871, %vm1871
      %vm1904 = vmpackc.low %vm1872, %vm1872
      %vm1905 = vmpackc.low %vm1873, %vm1873
      %vm1906 = vmpackc.low %vm1874, %vm1874
      %vm1907 = vmpackc.low %vm1875, %vm1875
      %vm1908 = vmpackc.low %vm1876, %vm1876
      %vm1909 = vmpackc.low %vm1877, %vm1877
      %vm1910 = vmpackc.low %vm1878, %vm1878
      %vm1911 = vmpackc.low %vm1879, %vm1879
      %vm1912 = vmpackc.low %vm1880, %vm1880
      %vm1913 = vmpackc.low %vm1881, %vm1881
      %vm1914 = vmpackc.low %vm1882, %vm1882
      %vm1915 = vmpackc.low %vm1883, %vm1883
      %vm1916 = vmpackc.low %vm1884, %vm1884
      %vm1917 = vmpackc.low %vm1885, %vm1885
      %vm1918 = vmpackc.low %vm1886, %vm1886
      %vm1919 = vmpackc.low %vm1887, %vm1887
      %vm1920 = vmpackc.low %vm1888, %vm1888
      %vm1921 = vmpackc.low %vm1889, %vm1889
      %vm1922 = vmpackc.low %vm1890, %vm1890
      %v1923 = vsel %vm1891, 65537, 0
      %v1924 = vsel %vm1892, 65537, 0
      %v1925 = vsel %vm1893, 65537, 0
      %v1926 = vsel %vm1894, 65537, 0
      %v1927 = vsel %vm1895, 65537, 0
      %v1928 = vsel %vm1896, 65537, 0
      %v1929 = vsel %vm1897, 65537, 0
      %v1930 = vsel %vm1898, 65537, 0
      %v1931 = vsel %vm1899, 65537, 0
      %v1932 = vsel %vm1900, 65537, 0
      %v1933 = vsel %vm1901, 65537, 0
      %v1934 = vsel %vm1902, 65537, 0
      %v1935 = vsel %vm1903, 65537, 0
      %v1936 = vsel %vm1904, 65537, 0
      %v1937 = vsel %vm1905, 65537, 0
      %v1938 = vsel %vm1906, 65537, 0
      %v1939 = vsel %vm1907, 65537, 0
      %v1940 = vsel %vm1908, 65537, 0
      %v1941 = vsel %vm1909, 65537, 0
      %v1942 = vsel %vm1910, 65537, 0
      %v1943 = vsel %vm1911, 65537, 0
      %v1944 = vsel %vm1912, 65537, 0
      %v1945 = vsel %vm1913, 65537, 0
      %v1946 = vsel %vm1914, 65537, 0
      %v1947 = vsel %vm1915, 65537, 0
      %v1948 = vsel %vm1916, 65537, 0
      %v1949 = vsel %vm1917, 65537, 0
      %v1950 = vsel %vm1918, 65537, 0
      %v1951 = vsel %vm1919, 65537, 0
      %v1952 = vsel %vm1920, 65537, 0
      %v1953 = vsel %vm1921, 65537, 0
      %v1954 = vsel %vm1922, 65537, 0
      %v1955 = vunpack.c.l.b16 %v1923
      %v1956 = vunpack.c.l.b16 %v1924
      %v1957 = vunpack.c.l.b16 %v1925
      %v1958 = vunpack.c.l.b16 %v1926
      %v1959 = vunpack.c.l.b16 %v1927
      %v1960 = vunpack.c.l.b16 %v1928
      %v1961 = vunpack.c.l.b16 %v1929
      %v1962 = vunpack.c.l.b16 %v1930
      %v1963 = vunpack.c.l.b16 %v1931
      %v1964 = vunpack.c.l.b16 %v1932
      %v1965 = vunpack.c.l.b16 %v1933
      %v1966 = vunpack.c.l.b16 %v1934
      %v1967 = vunpack.c.l.b16 %v1935
      %v1968 = vunpack.c.l.b16 %v1936
      %v1969 = vunpack.c.l.b16 %v1937
      %v1970 = vunpack.c.l.b16 %v1938
      %v1971 = vunpack.c.l.b16 %v1939
      %v1972 = vunpack.c.l.b16 %v1940
      %v1973 = vunpack.c.l.b16 %v1941
      %v1974 = vunpack.c.l.b16 %v1942
      %v1975 = vunpack.c.l.b16 %v1943
      %v1976 = vunpack.c.l.b16 %v1944
      %v1977 = vunpack.c.l.b16 %v1945
      %v1978 = vunpack.c.l.b16 %v1946
      %v1979 = vunpack.c.l.b16 %v1947
      %v1980 = vunpack.c.l.b16 %v1948
      %v1981 = vunpack.c.l.b16 %v1949
      %v1982 = vunpack.c.l.b16 %v1950
      %v1983 = vunpack.c.l.b16 %v1951
      %v1984 = vunpack.c.l.b16 %v1952
      %v1985 = vunpack.c.l.b16 %v1953
      %v1986 = vunpack.c.l.b16 %v1954
      %v1987 = vpack.c.b16 %v1956, %v1955
      %v1988 = vpack.c.b16 %v1958, %v1957
      %v1989 = vpack.c.b16 %v1960, %v1959
      %v1990 = vpack.c.b16 %v1962, %v1961
      %v1991 = vpack.c.b16 %v1964, %v1963
      %v1992 = vpack.c.b16 %v1966, %v1965
      %v1993 = vpack.c.b16 %v1968, %v1967
      %v1994 = vpack.c.b16 %v1970, %v1969
      %v1995 = vpack.c.b16 %v1972, %v1971
      %v1996 = vpack.c.b16 %v1974, %v1973
      %v1997 = vpack.c.b16 %v1976, %v1975
      %v1998 = vpack.c.b16 %v1978, %v1977
      %v1999 = vpack.c.b16 %v1980, %v1979
      %v2000 = vpack.c.b16 %v1982, %v1981
      %v2001 = vpack.c.b16 %v1984, %v1983
      %v2002 = vpack.c.b16 %v1986, %v1985
      %vm2003 = vcmp.ne.s16.totalorder %v1987, 0
      %vm2004 = vcmp.ne.s16.totalorder %v1988, 0
      %vm2005 = vcmp.ne.s16.totalorder %v1989, 0
      %vm2006 = vcmp.ne.s16.totalorder %v1990, 0
      %vm2007 = vcmp.ne.s16.totalorder %v1991, 0
      %vm2008 = vcmp.ne.s16.totalorder %v1992, 0
      %vm2009 = vcmp.ne.s16.totalorder %v1993, 0
      %vm2010 = vcmp.ne.s16.totalorder %v1994, 0
      %vm2011 = vcmp.ne.s16.totalorder %v1995, 0
      %vm2012 = vcmp.ne.s16.totalorder %v1996, 0
      %vm2013 = vcmp.ne.s16.totalorder %v1997, 0
      %vm2014 = vcmp.ne.s16.totalorder %v1998, 0
      %vm2015 = vcmp.ne.s16.totalorder %v1999, 0
      %vm2016 = vcmp.ne.s16.totalorder %v2000, 0
      %vm2017 = vcmp.ne.s16.totalorder %v2001, 0
      %vm2018 = vcmp.ne.s16.totalorder %v2002, 0
      %v2019 = vsel %vm2003, %v1122, 0
      %v2020 = vsel %vm2004, %v1123, 0
      %v2021 = vsel %vm2005, %v1124, 0
      %v2022 = vsel %vm2006, %v1125, 0
      %v2023 = vsel %vm2007, %v1126, 0
      %v2024 = vsel %vm2008, %v1127, 0
      %v2025 = vsel %vm2009, %v1128, 0
      %v2026 = vsel %vm2010, %v1129, 0
      %v2027 = vsel %vm2011, %v1130, 0
      %v2028 = vsel %vm2012, %v1131, 0
      %v2029 = vsel %vm2013, %v1132, 0
      %v2030 = vsel %vm2014, %v1133, 0
      %v2031 = vsel %vm2015, %v1134, 0
      %v2032 = vsel %vm2016, %v1135, 0
      %v2033 = vsel %vm2017, %v1136, 0
      %v2034 = vsel %vm2018, %v1137, 0
      %vm2035 = vsmask.f32 256
      %v2037 = vshrl.u32 %v1779, 16
      %v2039 = vrot.slane %v2037, 7
      %v2040 = vshll.u32 %v1779, 16
      %v2042 = vor.u32 %v2039, %v2040
      %v2044 = vshrl.u32 %v1780, 16
      %v2046 = vrot.slane %v2044, 7
      %v2047 = vshll.u32 %v1780, 16
      %v2049 = vor.u32 %v2046, %v2047
      %v2050 = vsel %vm2035, %v2039, %v2049
      %v2052 = vshrl.u32 %v1781, 16
      %v2054 = vrot.slane %v2052, 7
      %v2055 = vshll.u32 %v1781, 16
      %v2057 = vor.u32 %v2054, %v2055
      %v2058 = vsel %vm2035, %v2046, %v2057
      %v2060 = vshrl.u32 %v1782, 16
      %v2062 = vrot.slane %v2060, 7
      %v2063 = vshll.u32 %v1782, 16
      %v2065 = vor.u32 %v2062, %v2063
      %v2066 = vsel %vm2035, %v2054, %v2065
      %v2068 = vshrl.u32 %v1783, 16
      %v2070 = vrot.slane %v2068, 7
      %v2071 = vshll.u32 %v1783, 16
      %v2073 = vor.u32 %v2070, %v2071
      %v2074 = vsel %vm2035, %v2062, %v2073
      %v2076 = vshrl.u32 %v1784, 16
      %v2078 = vrot.slane %v2076, 7
      %v2079 = vshll.u32 %v1784, 16
      %v2081 = vor.u32 %v2078, %v2079
      %v2082 = vsel %vm2035, %v2070, %v2081
      %v2084 = vshrl.u32 %v1785, 16
      %v2086 = vrot.slane %v2084, 7
      %v2087 = vshll.u32 %v1785, 16
      %v2089 = vor.u32 %v2086, %v2087
      %v2090 = vsel %vm2035, %v2078, %v2089
      %v2092 = vshrl.u32 %v1786, 16
      %v2094 = vrot.slane %v2092, 7
      %v2095 = vshll.u32 %v1786, 16
      %v2097 = vor.u32 %v2094, %v2095
      %v2098 = vsel %vm2035, %v2086, %v2097
      %v2100 = vshrl.u32 %v1787, 16
      %v2102 = vrot.slane %v2100, 7
      %v2103 = vshll.u32 %v1787, 16
      %v2105 = vor.u32 %v2102, %v2103
      %v2106 = vsel %vm2035, %v2094, %v2105
      %v2108 = vshrl.u32 %v1788, 16
      %v2110 = vrot.slane %v2108, 7
      %v2111 = vshll.u32 %v1788, 16
      %v2113 = vor.u32 %v2110, %v2111
      %v2114 = vsel %vm2035, %v2102, %v2113
      %v2116 = vshrl.u32 %v1789, 16
      %v2118 = vrot.slane %v2116, 7
      %v2119 = vshll.u32 %v1789, 16
      %v2121 = vor.u32 %v2118, %v2119
      %v2122 = vsel %vm2035, %v2110, %v2121
      %v2124 = vshrl.u32 %v1790, 16
      %v2126 = vrot.slane %v2124, 7
      %v2127 = vshll.u32 %v1790, 16
      %v2129 = vor.u32 %v2126, %v2127
      %v2130 = vsel %vm2035, %v2118, %v2129
      %v2132 = vshrl.u32 %v1791, 16
      %v2134 = vrot.slane %v2132, 7
      %v2135 = vshll.u32 %v1791, 16
      %v2137 = vor.u32 %v2134, %v2135
      %v2138 = vsel %vm2035, %v2126, %v2137
      %v2140 = vshrl.u32 %v1792, 16
      %v2142 = vrot.slane %v2140, 7
      %v2143 = vshll.u32 %v1792, 16
      %v2145 = vor.u32 %v2142, %v2143
      %v2146 = vsel %vm2035, %v2134, %v2145
      %v2148 = vshrl.u32 %v1793, 16
      %v2150 = vrot.slane %v2148, 7
      %v2151 = vshll.u32 %v1793, 16
      %v2153 = vor.u32 %v2150, %v2151
      %v2154 = vsel %vm2035, %v2142, %v2153
      %vm2156 = vcmask 1040384
      %vm2157 = vmand %vm2156, %vm2035
      %v2158 = vsel %vm2157, 0, %v2042
      %v2159 = vld [vmem:[%s7] sm:$0xf]
      %v2160 = vld [vmem:[%s7 + $0x4] sm:$0xf]
      %v2161 = vld [vmem:[%s7 + $0x8] sm:$0xf]
      %v2162 = vld [vmem:[%s7 + $0xc] sm:$0xf]
      %s2163 = scalar_lea.vmem %s7, 16
      %v2164 = vld [vmem:[%s2163] sm:$0xf]
      %v2165 = vld [vmem:[%s2163 + $0x4] sm:$0xf]
      %v2166 = vld [vmem:[%s2163 + $0x8] sm:$0xf]
      %v2167 = vld [vmem:[%s2163 + $0xc] sm:$0xf]
      %v2172 = vunpack.c.l.b16 %v2164
      %v2173 = vunpack.c.l.b16 %v2165
      %v2174 = vunpack.c.l.b16 %v2166
      %v2175 = vunpack.c.l.b16 %v2167
      %v2176 = vpack.c.b16 %v2173, %v2172
      %v2177 = vpack.c.b16 %v2175, %v2174
      %v2181 = vsel %vm610, 0, 0
      %v2184 = vsel %vm610, %v1122, 0
      %v2187 = vsel %vm610, %v1123, 0
      %v2190 = vsel %vm610, %v1124, 0
      %v2193 = vsel %vm610, %v1125, 0
      %v2196 = vsel %vm610, %v1126, 0
      %v2199 = vsel %vm610, %v1127, 0
      %v2202 = vsel %vm610, %v1128, 0
      %v2205 = vsel %vm610, %v1129, 0
      %v2208 = vsel %vm610, %v1130, 0
      %v2211 = vsel %vm610, %v1131, 0
      %v2214 = vsel %vm610, %v1132, 0
      %v2217 = vsel %vm610, %v1133, 0
      %v2220 = vsel %vm610, %v1134, 0
      %v2223 = vsel %vm610, %v1135, 0
      %v2226 = vsel %vm610, %v1136, 0
      %2228 = vmatprep.subr.bf16.mxu0 0
      %2229 = vmatpush1.bf16.msra.mxu0 %v2176
      %2230 = vmatprep.subr.bf16.mxu0 0
      %2231 = vmatpush1.bf16.msra.mxu0 %v2177
      %2232 = vmatprep.subr.bf16.mxu0 0
      %2233 = vmatpush1.bf16.msra.mxu0 0
      %2234 = vmatprep.subr.bf16.mxu0 0
      %2235 = vmatpush1.bf16.msra.mxu0 0
      %2236 = vmatprep.subr.bf16.mxu0 0
      %2237 = vmatpush1.bf16.msra.mxu0 0
      %2238 = vmatprep.subr.bf16.mxu0 0
      %2239 = vmatpush1.bf16.msra.mxu0 0
      %2240 = vmatprep.subr.bf16.mxu0 0
      %2241 = vmatpush1.bf16.msra.mxu0 0
      %2242 = vmatprep.subr.bf16.mxu0 0
      %2243 = vmatpush1.bf16.msra.mxu0 0
      %2244 = vmatprep.subr.bf16.mxu0 0
      %2245 = vmatpush1.bf16.msra.mxu0 0
      %2246 = vmatprep.subr.bf16.mxu0 0
      %2247 = vmatpush1.bf16.msra.mxu0 0
      %2248 = vmatprep.subr.bf16.mxu0 0
      %2249 = vmatpush1.bf16.msra.mxu0 0
      %2250 = vmatprep.subr.bf16.mxu0 0
      %2251 = vmatpush1.bf16.msra.mxu0 0
      %2252 = vmatprep.subr.bf16.mxu0 0
      %2253 = vmatpush1.bf16.msra.mxu0 0
      %2254 = vmatprep.subr.bf16.mxu0 0
      %2255 = vmatpush1.bf16.msra.mxu0 0
      %2256 = vmatprep.subr.bf16.mxu0 0
      %2257 = vmatpush1.bf16.msra.mxu0 0
      %2258 = vmatprep.subr.bf16.mxu0 0
      %2259 = vmatpush1.bf16.msra.mxu0 0
      %2260 = vmatprep.mubr.bf16.mxu0 0
      %2261 = vmatmul.mubr.bf16.gmra.mrb[0].mxu0 %v2181
      %v2262 = vpop.f32.mrb[0].mxu0
      %v2263 = vadd.f32 0.0, %v2262
      %v2264 = vpop.f32.mrb[0].mxu0
      %v2265 = vpop.f32.mrb[0].mxu0
      %v2266 = vadd.f32 0.0, %v2265
      %v2267 = vpop.f32.mrb[0].mxu0
      %2268 = vmatprep.mubr.bf16.mxu0 0
      %2269 = vmatmul.mubr.bf16.gmra.mrb[0].mxu0 %v2184
      %v2270 = vpop.f32.mrb[0].mxu0
      %v2271 = vadd.f32 0.0, %v2270
      %v2272 = vpop.f32.mrb[0].mxu0
      %v2273 = vpop.f32.mrb[0].mxu0
      %v2274 = vadd.f32 0.0, %v2273
      %v2275 = vpop.f32.mrb[0].mxu0
      %2276 = vmatprep.mubr.bf16.mxu0 0
      %2277 = vmatmul.mubr.bf16.gmra.mrb[0].mxu0 %v2187
      %v2278 = vpop.f32.mrb[0].mxu0
      %v2279 = vadd.f32 0.0, %v2278
      %v2280 = vpop.f32.mrb[0].mxu0
      %v2281 = vpop.f32.mrb[0].mxu0
      %v2282 = vadd.f32 0.0, %v2281
      %v2283 = vpop.f32.mrb[0].mxu0
      %2284 = vmatprep.mubr.bf16.mxu0 0
      %2285 = vmatmul.mubr.bf16.gmra.mrb[0].mxu0 %v2190
      %v2286 = vpop.f32.mrb[0].mxu0
      %v2287 = vadd.f32 0.0, %v2286
      %v2288 = vpop.f32.mrb[0].mxu0
      %v2289 = vpop.f32.mrb[0].mxu0
      %v2290 = vadd.f32 0.0, %v2289
      %v2291 = vpop.f32.mrb[0].mxu0
      %2292 = vmatprep.mubr.bf16.mxu0 0
      %2293 = vmatmul.mubr.bf16.gmra.mrb[0].mxu0 %v2193
      %v2294 = vpop.f32.mrb[0].mxu0
      %v2295 = vadd.f32 0.0, %v2294
      %v2296 = vpop.f32.mrb[0].mxu0
      %v2297 = vpop.f32.mrb[0].mxu0
      %v2298 = vadd.f32 0.0, %v2297
      %v2299 = vpop.f32.mrb[0].mxu0
      %2300 = vmatprep.mubr.bf16.mxu0 0
      %2301 = vmatmul.mubr.bf16.gmra.mrb[0].mxu0 %v2196
      %v2302 = vpop.f32.mrb[0].mxu0
      %v2303 = vadd.f32 0.0, %v2302
      %v2304 = vpop.f32.mrb[0].mxu0
      %v2305 = vpop.f32.mrb[0].mxu0
      %v2306 = vadd.f32 0.0, %v2305
      %v2307 = vpop.f32.mrb[0].mxu0
      %2308 = vmatprep.mubr.bf16.mxu0 0
      %2309 = vmatmul.mubr.bf16.gmra.mrb[0].mxu0 %v2199
      %v2310 = vpop.f32.mrb[0].mxu0
      %v2311 = vadd.f32 0.0, %v2310
      %v2312 = vpop.f32.mrb[0].mxu0
      %v2313 = vpop.f32.mrb[0].mxu0
      %v2314 = vadd.f32 0.0, %v2313
      %v2315 = vpop.f32.mrb[0].mxu0
      %2316 = vmatprep.mubr.bf16.mxu0 0
      %2317 = vmatmul.mubr.bf16.gmra.mrb[0].mxu0 %v2202
      %v2318 = vpop.f32.mrb[0].mxu0
      %v2319 = vadd.f32 0.0, %v2318
      %v2320 = vpop.f32.mrb[0].mxu0
      %v2321 = vpop.f32.mrb[0].mxu0
      %v2322 = vadd.f32 0.0, %v2321
      %v2323 = vpop.f32.mrb[0].mxu0
      %2324 = vmatprep.mubr.bf16.mxu0 0
      %2325 = vmatmul.mubr.bf16.gmra.mrb[0].mxu0 %v2205
      %v2326 = vpop.f32.mrb[0].mxu0
      %v2327 = vadd.f32 0.0, %v2326
      %v2328 = vpop.f32.mrb[0].mxu0
      %v2329 = vpop.f32.mrb[0].mxu0
      %v2330 = vadd.f32 0.0, %v2329
      %v2331 = vpop.f32.mrb[0].mxu0
      %2332 = vmatprep.mubr.bf16.mxu0 0
      %2333 = vmatmul.mubr.bf16.gmra.mrb[0].mxu0 %v2208
      %v2334 = vpop.f32.mrb[0].mxu0
      %v2335 = vadd.f32 0.0, %v2334
      %v2336 = vpop.f32.mrb[0].mxu0
      %v2337 = vpop.f32.mrb[0].mxu0
      %v2338 = vadd.f32 0.0, %v2337
      %v2339 = vpop.f32.mrb[0].mxu0
      %2340 = vmatprep.mubr.bf16.mxu0 0
      %2341 = vmatmul.mubr.bf16.gmra.mrb[0].mxu0 %v2211
      %v2342 = vpop.f32.mrb[0].mxu0
      %v2343 = vadd.f32 0.0, %v2342
      %v2344 = vpop.f32.mrb[0].mxu0
      %v2345 = vpop.f32.mrb[0].mxu0
      %v2346 = vadd.f32 0.0, %v2345
      %v2347 = vpop.f32.mrb[0].mxu0
      %2348 = vmatprep.mubr.bf16.mxu0 0
      %2349 = vmatmul.mubr.bf16.gmra.mrb[0].mxu0 %v2214
      %v2350 = vpop.f32.mrb[0].mxu0
      %v2351 = vadd.f32 0.0, %v2350
      %v2352 = vpop.f32.mrb[0].mxu0
      %v2353 = vpop.f32.mrb[0].mxu0
      %v2354 = vadd.f32 0.0, %v2353
      %v2355 = vpop.f32.mrb[0].mxu0
      %2356 = vmatprep.mubr.bf16.mxu0 0
      %2357 = vmatmul.mubr.bf16.gmra.mrb[0].mxu0 %v2217
      %v2358 = vpop.f32.mrb[0].mxu0
      %v2359 = vadd.f32 0.0, %v2358
      %v2360 = vpop.f32.mrb[0].mxu0
      %v2361 = vpop.f32.mrb[0].mxu0
      %v2362 = vadd.f32 0.0, %v2361
      %v2363 = vpop.f32.mrb[0].mxu0
      %2364 = vmatprep.mubr.bf16.mxu0 0
      %2365 = vmatmul.mubr.bf16.gmra.mrb[0].mxu0 %v2220
      %v2366 = vpop.f32.mrb[0].mxu0
      %v2367 = vadd.f32 0.0, %v2366
      %v2368 = vpop.f32.mrb[0].mxu0
      %v2369 = vpop.f32.mrb[0].mxu0
      %v2370 = vadd.f32 0.0, %v2369
      %v2371 = vpop.f32.mrb[0].mxu0
      %2372 = vmatprep.mubr.bf16.mxu0 0
      %2373 = vmatmul.mubr.bf16.gmra.mrb[0].mxu0 %v2223
      %v2374 = vpop.f32.mrb[0].mxu0
      %v2375 = vadd.f32 0.0, %v2374
      %v2376 = vpop.f32.mrb[0].mxu0
      %v2377 = vpop.f32.mrb[0].mxu0
      %v2378 = vadd.f32 0.0, %v2377
      %v2379 = vpop.f32.mrb[0].mxu0
      %2380 = vmatprep.mubr.bf16.mxu0 0
      %2381 = vmatmul.mubr.bf16.gmra.mrb[0].mxu0 %v2226
      %v2382 = vpop.f32.mrb[0].mxu0
      %v2383 = vadd.f32 0.0, %v2382
      %v2384 = vpop.f32.mrb[0].mxu0
      %v2385 = vpop.f32.mrb[0].mxu0
      %v2386 = vadd.f32 0.0, %v2385
      %v2387 = vpop.f32.mrb[0].mxu0
      %2388 = vdwg.mxu0
      %v2393 = vunpack.c.l.b16 %v2159
      %v2394 = vunpack.c.l.b16 %v2160
      %v2395 = vunpack.c.l.b16 %v2161
      %v2396 = vunpack.c.l.b16 %v2162
      %v2397 = vpack.c.b16 %v2394, %v2393
      %v2398 = vpack.c.b16 %v2396, %v2395
      %v2402 = vsel %vm610, %v2158, 0
      %v2405 = vsel %vm610, %v2050, 0
      %v2408 = vsel %vm610, %v2058, 0
      %v2411 = vsel %vm610, %v2066, 0
      %v2414 = vsel %vm610, %v2074, 0
      %v2417 = vsel %vm610, %v2082, 0
      %v2420 = vsel %vm610, %v2090, 0
      %v2423 = vsel %vm610, %v2098, 0
      %v2426 = vsel %vm610, %v2106, 0
      %v2429 = vsel %vm610, %v2114, 0
      %v2432 = vsel %vm610, %v2122, 0
      %v2435 = vsel %vm610, %v2130, 0
      %v2438 = vsel %vm610, %v2138, 0
      %v2441 = vsel %vm610, %v2146, 0
      %v2444 = vsel %vm610, %v2154, 0
      %2446 = vmatprep.subr.bf16.mxu0 0
      %2447 = vmatpush1.bf16.msra.mxu0 %v2397
      %2448 = vmatprep.subr.bf16.mxu0 0
      %2449 = vmatpush1.bf16.msra.mxu0 %v2398
      %2450 = vmatprep.subr.bf16.mxu0 0
      %2451 = vmatpush1.bf16.msra.mxu0 0
      %2452 = vmatprep.subr.bf16.mxu0 0
      %2453 = vmatpush1.bf16.msra.mxu0 0
      %2454 = vmatprep.subr.bf16.mxu0 0
      %2455 = vmatpush1.bf16.msra.mxu0 0
      %2456 = vmatprep.subr.bf16.mxu0 0
      %2457 = vmatpush1.bf16.msra.mxu0 0
      %2458 = vmatprep.subr.bf16.mxu0 0
      %2459 = vmatpush1.bf16.msra.mxu0 0
      %2460 = vmatprep.subr.bf16.mxu0 0
      %2461 = vmatpush1.bf16.msra.mxu0 0
      %2462 = vmatprep.subr.bf16.mxu0 0
      %2463 = vmatpush1.bf16.msra.mxu0 0
      %2464 = vmatprep.subr.bf16.mxu0 0
      %2465 = vmatpush1.bf16.msra.mxu0 0
      %2466 = vmatprep.subr.bf16.mxu0 0
      %2467 = vmatpush1.bf16.msra.mxu0 0
      %2468 = vmatprep.subr.bf16.mxu0 0
      %2469 = vmatpush1.bf16.msra.mxu0 0
      %2470 = vmatprep.subr.bf16.mxu0 0
      %2471 = vmatpush1.bf16.msra.mxu0 0
      %2472 = vmatprep.subr.bf16.mxu0 0
      %2473 = vmatpush1.bf16.msra.mxu0 0
      %2474 = vmatprep.subr.bf16.mxu0 0
      %2475 = vmatpush1.bf16.msra.mxu0 0
      %2476 = vmatprep.subr.bf16.mxu0 0
      %2477 = vmatpush1.bf16.msra.mxu0 0
      %2478 = vmatprep.mubr.bf16.mxu0 0
      %2479 = vmatmul.mubr.bf16.gmra.mrb[0].mxu0 %v2181
      %v2480 = vpop.f32.mrb[0].mxu0
      %v2481 = vadd.f32 %v2263, %v2480
      %v2482 = vpop.f32.mrb[0].mxu0
      %v2483 = vpop.f32.mrb[0].mxu0
      %v2484 = vadd.f32 %v2266, %v2483
      %v2485 = vpop.f32.mrb[0].mxu0
      %2486 = vmatprep.mubr.bf16.mxu0 0
      %2487 = vmatmul.mubr.bf16.gmra.mrb[0].mxu0 %v2402
      %v2488 = vpop.f32.mrb[0].mxu0
      %v2489 = vadd.f32 %v2271, %v2488
      %v2490 = vpop.f32.mrb[0].mxu0
      %v2491 = vpop.f32.mrb[0].mxu0
      %v2492 = vadd.f32 %v2274, %v2491
      %v2493 = vpop.f32.mrb[0].mxu0
      %2494 = vmatprep.mubr.bf16.mxu0 0
      %2495 = vmatmul.mubr.bf16.gmra.mrb[0].mxu0 %v2405
      %v2496 = vpop.f32.mrb[0].mxu0
      %v2497 = vadd.f32 %v2279, %v2496
      %v2498 = vpop.f32.mrb[0].mxu0
      %v2499 = vpop.f32.mrb[0].mxu0
      %v2500 = vadd.f32 %v2282, %v2499
      %v2501 = vpop.f32.mrb[0].mxu0
      %2502 = vmatprep.mubr.bf16.mxu0 0
      %2503 = vmatmul.mubr.bf16.gmra.mrb[0].mxu0 %v2408
      %v2504 = vpop.f32.mrb[0].mxu0
      %v2505 = vadd.f32 %v2287, %v2504
      %v2506 = vpop.f32.mrb[0].mxu0
      %v2507 = vpop.f32.mrb[0].mxu0
      %v2508 = vadd.f32 %v2290, %v2507
      %v2509 = vpop.f32.mrb[0].mxu0
      %2510 = vmatprep.mubr.bf16.mxu0 0
      %2511 = vmatmul.mubr.bf16.gmra.mrb[0].mxu0 %v2411
      %v2512 = vpop.f32.mrb[0].mxu0
      %v2513 = vadd.f32 %v2295, %v2512
      %v2514 = vpop.f32.mrb[0].mxu0
      %v2515 = vpop.f32.mrb[0].mxu0
      %v2516 = vadd.f32 %v2298, %v2515
      %v2517 = vpop.f32.mrb[0].mxu0
      %2518 = vmatprep.mubr.bf16.mxu0 0
      %2519 = vmatmul.mubr.bf16.gmra.mrb[0].mxu0 %v2414
      %v2520 = vpop.f32.mrb[0].mxu0
      %v2521 = vadd.f32 %v2303, %v2520
      %v2522 = vpop.f32.mrb[0].mxu0
      %v2523 = vpop.f32.mrb[0].mxu0
      %v2524 = vadd.f32 %v2306, %v2523
      %v2525 = vpop.f32.mrb[0].mxu0
      %2526 = vmatprep.mubr.bf16.mxu0 0
      %2527 = vmatmul.mubr.bf16.gmra.mrb[0].mxu0 %v2417
      %v2528 = vpop.f32.mrb[0].mxu0
      %v2529 = vadd.f32 %v2311, %v2528
      %v2530 = vpop.f32.mrb[0].mxu0
      %v2531 = vpop.f32.mrb[0].mxu0
      %v2532 = vadd.f32 %v2314, %v2531
      %v2533 = vpop.f32.mrb[0].mxu0
      %2534 = vmatprep.mubr.bf16.mxu0 0
      %2535 = vmatmul.mubr.bf16.gmra.mrb[0].mxu0 %v2420
      %v2536 = vpop.f32.mrb[0].mxu0
      %v2537 = vadd.f32 %v2319, %v2536
      %v2538 = vpop.f32.mrb[0].mxu0
      %v2539 = vpop.f32.mrb[0].mxu0
      %v2540 = vadd.f32 %v2322, %v2539
      %v2541 = vpop.f32.mrb[0].mxu0
      %2542 = vmatprep.mubr.bf16.mxu0 0
      %2543 = vmatmul.mubr.bf16.gmra.mrb[0].mxu0 %v2423
      %v2544 = vpop.f32.mrb[0].mxu0
      %v2545 = vadd.f32 %v2327, %v2544
      %v2546 = vpop.f32.mrb[0].mxu0
      %v2547 = vpop.f32.mrb[0].mxu0
      %v2548 = vadd.f32 %v2330, %v2547
      %v2549 = vpop.f32.mrb[0].mxu0
      %2550 = vmatprep.mubr.bf16.mxu0 0
      %2551 = vmatmul.mubr.bf16.gmra.mrb[0].mxu0 %v2426
      %v2552 = vpop.f32.mrb[0].mxu0
      %v2553 = vadd.f32 %v2335, %v2552
      %v2554 = vpop.f32.mrb[0].mxu0
      %v2555 = vpop.f32.mrb[0].mxu0
      %v2556 = vadd.f32 %v2338, %v2555
      %v2557 = vpop.f32.mrb[0].mxu0
      %2558 = vmatprep.mubr.bf16.mxu0 0
      %2559 = vmatmul.mubr.bf16.gmra.mrb[0].mxu0 %v2429
      %v2560 = vpop.f32.mrb[0].mxu0
      %v2561 = vadd.f32 %v2343, %v2560
      %v2562 = vpop.f32.mrb[0].mxu0
      %v2563 = vpop.f32.mrb[0].mxu0
      %v2564 = vadd.f32 %v2346, %v2563
      %v2565 = vpop.f32.mrb[0].mxu0
      %2566 = vmatprep.mubr.bf16.mxu0 0
      %2567 = vmatmul.mubr.bf16.gmra.mrb[0].mxu0 %v2432
      %v2568 = vpop.f32.mrb[0].mxu0
      %v2569 = vadd.f32 %v2351, %v2568
      %v2570 = vpop.f32.mrb[0].mxu0
      %v2571 = vpop.f32.mrb[0].mxu0
      %v2572 = vadd.f32 %v2354, %v2571
      %v2573 = vpop.f32.mrb[0].mxu0
      %2574 = vmatprep.mubr.bf16.mxu0 0
      %2575 = vmatmul.mubr.bf16.gmra.mrb[0].mxu0 %v2435
      %v2576 = vpop.f32.mrb[0].mxu0
      %v2577 = vadd.f32 %v2359, %v2576
      %v2578 = vpop.f32.mrb[0].mxu0
      %v2579 = vpop.f32.mrb[0].mxu0
      %v2580 = vadd.f32 %v2362, %v2579
      %v2581 = vpop.f32.mrb[0].mxu0
      %2582 = vmatprep.mubr.bf16.mxu0 0
      %2583 = vmatmul.mubr.bf16.gmra.mrb[0].mxu0 %v2438
      %v2584 = vpop.f32.mrb[0].mxu0
      %v2585 = vadd.f32 %v2367, %v2584
      %v2586 = vpop.f32.mrb[0].mxu0
      %v2587 = vpop.f32.mrb[0].mxu0
      %v2588 = vadd.f32 %v2370, %v2587
      %v2589 = vpop.f32.mrb[0].mxu0
      %2590 = vmatprep.mubr.bf16.mxu0 0
      %2591 = vmatmul.mubr.bf16.gmra.mrb[0].mxu0 %v2441
      %v2592 = vpop.f32.mrb[0].mxu0
      %v2593 = vadd.f32 %v2375, %v2592
      %v2594 = vpop.f32.mrb[0].mxu0
      %v2595 = vpop.f32.mrb[0].mxu0
      %v2596 = vadd.f32 %v2378, %v2595
      %v2597 = vpop.f32.mrb[0].mxu0
      %2598 = vmatprep.mubr.bf16.mxu0 0
      %2599 = vmatmul.mubr.bf16.gmra.mrb[0].mxu0 %v2444
      %v2600 = vpop.f32.mrb[0].mxu0
      %v2601 = vadd.f32 %v2383, %v2600
      %v2602 = vpop.f32.mrb[0].mxu0
      %v2603 = vpop.f32.mrb[0].mxu0
      %v2604 = vadd.f32 %v2386, %v2603
      %v2605 = vpop.f32.mrb[0].mxu0
      %2606 = vdwg.mxu0
      %vm2607 = vsmask.f32 7424
      %v2609 = vshll.u32 %v2019, 16
      %v2611 = vrot.slane %v2609, 1
      %v2612 = vshrl.u32 %v2019, 16
      %v2614 = vor.u32 %v2612, %v2611
      %v2616 = vshll.u32 %v2020, 16
      %v2618 = vrot.slane %v2616, 1
      %v2619 = vsel %vm2607, %v2614, %v2618
      %v2620 = vshrl.u32 %v2020, 16
      %v2622 = vor.u32 %v2620, %v2618
      %v2624 = vshll.u32 %v2021, 16
      %v2626 = vrot.slane %v2624, 1
      %v2627 = vsel %vm2607, %v2622, %v2626
      %v2628 = vshrl.u32 %v2021, 16
      %v2630 = vor.u32 %v2628, %v2626
      %v2632 = vshll.u32 %v2022, 16
      %v2634 = vrot.slane %v2632, 1
      %v2635 = vsel %vm2607, %v2630, %v2634
      %v2636 = vshrl.u32 %v2022, 16
      %v2638 = vor.u32 %v2636, %v2634
      %v2640 = vshll.u32 %v2023, 16
      %v2642 = vrot.slane %v2640, 1
      %v2643 = vsel %vm2607, %v2638, %v2642
      %v2644 = vshrl.u32 %v2023, 16
      %v2646 = vor.u32 %v2644, %v2642
      %v2648 = vshll.u32 %v2024, 16
      %v2650 = vrot.slane %v2648, 1
      %v2651 = vsel %vm2607, %v2646, %v2650
      %v2652 = vshrl.u32 %v2024, 16
      %v2654 = vor.u32 %v2652, %v2650
      %v2656 = vshll.u32 %v2025, 16
      %v2658 = vrot.slane %v2656, 1
      %v2659 = vsel %vm2607, %v2654, %v2658
      %v2660 = vshrl.u32 %v2025, 16
      %v2662 = vor.u32 %v2660, %v2658
      %v2664 = vshll.u32 %v2026, 16
      %v2666 = vrot.slane %v2664, 1
      %v2667 = vsel %vm2607, %v2662, %v2666
      %v2668 = vshrl.u32 %v2026, 16
      %v2670 = vor.u32 %v2668, %v2666
      %v2672 = vshll.u32 %v2027, 16
      %v2674 = vrot.slane %v2672, 1
      %v2675 = vsel %vm2607, %v2670, %v2674
      %v2676 = vshrl.u32 %v2027, 16
      %v2678 = vor.u32 %v2676, %v2674
      %v2680 = vshll.u32 %v2028, 16
      %v2682 = vrot.slane %v2680, 1
      %v2683 = vsel %vm2607, %v2678, %v2682
      %v2684 = vshrl.u32 %v2028, 16
      %v2686 = vor.u32 %v2684, %v2682
      %v2688 = vshll.u32 %v2029, 16
      %v2690 = vrot.slane %v2688, 1
      %v2691 = vsel %vm2607, %v2686, %v2690
      %v2692 = vshrl.u32 %v2029, 16
      %v2694 = vor.u32 %v2692, %v2690
      %v2696 = vshll.u32 %v2030, 16
      %v2698 = vrot.slane %v2696, 1
      %v2699 = vsel %vm2607, %v2694, %v2698
      %v2700 = vshrl.u32 %v2030, 16
      %v2702 = vor.u32 %v2700, %v2698
      %v2704 = vshll.u32 %v2031, 16
      %v2706 = vrot.slane %v2704, 1
      %v2707 = vsel %vm2607, %v2702, %v2706
      %v2708 = vshrl.u32 %v2031, 16
      %v2710 = vor.u32 %v2708, %v2706
      %v2712 = vshll.u32 %v2032, 16
      %v2714 = vrot.slane %v2712, 1
      %v2715 = vsel %vm2607, %v2710, %v2714
      %v2716 = vshrl.u32 %v2032, 16
      %v2718 = vor.u32 %v2716, %v2714
      %v2720 = vshll.u32 %v2033, 16
      %v2722 = vrot.slane %v2720, 1
      %v2723 = vsel %vm2607, %v2718, %v2722
      %v2724 = vshrl.u32 %v2033, 16
      %v2726 = vor.u32 %v2724, %v2722
      %v2728 = vshll.u32 %v2034, 16
      %v2730 = vrot.slane %v2728, 1
      %v2731 = vsel %vm2607, %v2726, %v2730
      %vm2733 = vcmask 1047552
      %vm2734 = vmand %vm2733, %vm2607
      %v2735 = vsel %vm2734, 0, %v2611
      %s2736 = scalar_lea.vmem %s7, 32
      %v2737 = vld [vmem:[%s2736] sm:$0xf]
      %v2738 = vld [vmem:[%s2736 + $0x4] sm:$0xf]
      %v2739 = vld [vmem:[%s2736 + $0x8] sm:$0xf]
      %v2740 = vld [vmem:[%s2736 + $0xc] sm:$0xf]
      %v2745 = vunpack.c.l.b16 %v2737
      %v2746 = vunpack.c.l.b16 %v2738
      %v2747 = vunpack.c.l.b16 %v2739
      %v2748 = vunpack.c.l.b16 %v2740
      %v2749 = vpack.c.b16 %v2746, %v2745
      %v2750 = vpack.c.b16 %v2748, %v2747
      %v2754 = vsel %vm610, %v2735, 0
      %v2757 = vsel %vm610, %v2619, 0
      %v2760 = vsel %vm610, %v2627, 0
      %v2763 = vsel %vm610, %v2635, 0
      %v2766 = vsel %vm610, %v2643, 0
      %v2769 = vsel %vm610, %v2651, 0
      %v2772 = vsel %vm610, %v2659, 0
      %v2775 = vsel %vm610, %v2667, 0
      %v2778 = vsel %vm610, %v2675, 0
      %v2781 = vsel %vm610, %v2683, 0
      %v2784 = vsel %vm610, %v2691, 0
      %v2787 = vsel %vm610, %v2699, 0
      %v2790 = vsel %vm610, %v2707, 0
      %v2793 = vsel %vm610, %v2715, 0
      %v2796 = vsel %vm610, %v2723, 0
      %v2799 = vsel %vm610, %v2731, 0
      %2801 = vmatprep.subr.bf16.mxu0 0
      %2802 = vmatpush1.bf16.msra.mxu0 %v2749
      %2803 = vmatprep.subr.bf16.mxu0 0
      %2804 = vmatpush1.bf16.msra.mxu0 %v2750
      %2805 = vmatprep.subr.bf16.mxu0 0
      %2806 = vmatpush1.bf16.msra.mxu0 0
      %2807 = vmatprep.subr.bf16.mxu0 0
      %2808 = vmatpush1.bf16.msra.mxu0 0
      %2809 = vmatprep.subr.bf16.mxu0 0
      %2810 = vmatpush1.bf16.msra.mxu0 0
      %2811 = vmatprep.subr.bf16.mxu0 0
      %2812 = vmatpush1.bf16.msra.mxu0 0
      %2813 = vmatprep.subr.bf16.mxu0 0
      %2814 = vmatpush1.bf16.msra.mxu0 0
      %2815 = vmatprep.subr.bf16.mxu0 0
      %2816 = vmatpush1.bf16.msra.mxu0 0
      %2817 = vmatprep.subr.bf16.mxu0 0
      %2818 = vmatpush1.bf16.msra.mxu0 0
      %2819 = vmatprep.subr.bf16.mxu0 0
      %2820 = vmatpush1.bf16.msra.mxu0 0
      %2821 = vmatprep.subr.bf16.mxu0 0
      %2822 = vmatpush1.bf16.msra.mxu0 0
      %2823 = vmatprep.subr.bf16.mxu0 0
      %2824 = vmatpush1.bf16.msra.mxu0 0
      %2825 = vmatprep.subr.bf16.mxu0 0
      %2826 = vmatpush1.bf16.msra.mxu0 0
      %2827 = vmatprep.subr.bf16.mxu0 0
      %2828 = vmatpush1.bf16.msra.mxu0 0
      %2829 = vmatprep.subr.bf16.mxu0 0
      %2830 = vmatpush1.bf16.msra.mxu0 0
      %2831 = vmatprep.subr.bf16.mxu0 0
      %2832 = vmatpush1.bf16.msra.mxu0 0
      %2833 = vmatprep.mubr.bf16.mxu0 0
      %2834 = vmatmul.mubr.bf16.gmra.mrb[0].mxu0 %v2754
      %v2835 = vpop.f32.mrb[0].mxu0
      %v2836 = vadd.f32 0.0, %v2835
      %v2837 = vpop.f32.mrb[0].mxu0
      %v2838 = vpop.f32.mrb[0].mxu0
      %v2839 = vadd.f32 0.0, %v2838
      %v2840 = vpop.f32.mrb[0].mxu0
      %2841 = vmatprep.mubr.bf16.mxu0 0
      %2842 = vmatmul.mubr.bf16.gmra.mrb[0].mxu0 %v2757
      %v2843 = vpop.f32.mrb[0].mxu0
      %v2844 = vadd.f32 0.0, %v2843
      %v2845 = vpop.f32.mrb[0].mxu0
      %v2846 = vpop.f32.mrb[0].mxu0
      %v2847 = vadd.f32 0.0, %v2846
      %v2848 = vpop.f32.mrb[0].mxu0
      %2849 = vmatprep.mubr.bf16.mxu0 0
      %2850 = vmatmul.mubr.bf16.gmra.mrb[0].mxu0 %v2760
      %v2851 = vpop.f32.mrb[0].mxu0
      %v2852 = vadd.f32 0.0, %v2851
      %v2853 = vpop.f32.mrb[0].mxu0
      %v2854 = vpop.f32.mrb[0].mxu0
      %v2855 = vadd.f32 0.0, %v2854
      %v2856 = vpop.f32.mrb[0].mxu0
      %2857 = vmatprep.mubr.bf16.mxu0 0
      %2858 = vmatmul.mubr.bf16.gmra.mrb[0].mxu0 %v2763
      %v2859 = vpop.f32.mrb[0].mxu0
      %v2860 = vadd.f32 0.0, %v2859
      %v2861 = vpop.f32.mrb[0].mxu0
      %v2862 = vpop.f32.mrb[0].mxu0
      %v2863 = vadd.f32 0.0, %v2862
      %v2864 = vpop.f32.mrb[0].mxu0
      %2865 = vmatprep.mubr.bf16.mxu0 0
      %2866 = vmatmul.mubr.bf16.gmra.mrb[0].mxu0 %v2766
      %v2867 = vpop.f32.mrb[0].mxu0
      %v2868 = vadd.f32 0.0, %v2867
      %v2869 = vpop.f32.mrb[0].mxu0
      %v2870 = vpop.f32.mrb[0].mxu0
      %v2871 = vadd.f32 0.0, %v2870
      %v2872 = vpop.f32.mrb[0].mxu0
      %2873 = vmatprep.mubr.bf16.mxu0 0
      %2874 = vmatmul.mubr.bf16.gmra.mrb[0].mxu0 %v2769
      %v2875 = vpop.f32.mrb[0].mxu0
      %v2876 = vadd.f32 0.0, %v2875
      %v2877 = vpop.f32.mrb[0].mxu0
      %v2878 = vpop.f32.mrb[0].mxu0
      %v2879 = vadd.f32 0.0, %v2878
      %v2880 = vpop.f32.mrb[0].mxu0
      %2881 = vmatprep.mubr.bf16.mxu0 0
      %2882 = vmatmul.mubr.bf16.gmra.mrb[0].mxu0 %v2772
      %v2883 = vpop.f32.mrb[0].mxu0
      %v2884 = vadd.f32 0.0, %v2883
      %v2885 = vpop.f32.mrb[0].mxu0
      %v2886 = vpop.f32.mrb[0].mxu0
      %v2887 = vadd.f32 0.0, %v2886
      %v2888 = vpop.f32.mrb[0].mxu0
      %2889 = vmatprep.mubr.bf16.mxu0 0
      %2890 = vmatmul.mubr.bf16.gmra.mrb[0].mxu0 %v2775
      %v2891 = vpop.f32.mrb[0].mxu0
      %v2892 = vadd.f32 0.0, %v2891
      %v2893 = vpop.f32.mrb[0].mxu0
      %v2894 = vpop.f32.mrb[0].mxu0
      %v2895 = vadd.f32 0.0, %v2894
      %v2896 = vpop.f32.mrb[0].mxu0
      %2897 = vmatprep.mubr.bf16.mxu0 0
      %2898 = vmatmul.mubr.bf16.gmra.mrb[0].mxu0 %v2778
      %v2899 = vpop.f32.mrb[0].mxu0
      %v2900 = vadd.f32 0.0, %v2899
      %v2901 = vpop.f32.mrb[0].mxu0
      %v2902 = vpop.f32.mrb[0].mxu0
      %v2903 = vadd.f32 0.0, %v2902
      %v2904 = vpop.f32.mrb[0].mxu0
      %2905 = vmatprep.mubr.bf16.mxu0 0
      %2906 = vmatmul.mubr.bf16.gmra.mrb[0].mxu0 %v2781
      %v2907 = vpop.f32.mrb[0].mxu0
      %v2908 = vadd.f32 0.0, %v2907
      %v2909 = vpop.f32.mrb[0].mxu0
      %v2910 = vpop.f32.mrb[0].mxu0
      %v2911 = vadd.f32 0.0, %v2910
      %v2912 = vpop.f32.mrb[0].mxu0
      %2913 = vmatprep.mubr.bf16.mxu0 0
      %2914 = vmatmul.mubr.bf16.gmra.mrb[0].mxu0 %v2784
      %v2915 = vpop.f32.mrb[0].mxu0
      %v2916 = vadd.f32 0.0, %v2915
      %v2917 = vpop.f32.mrb[0].mxu0
      %v2918 = vpop.f32.mrb[0].mxu0
      %v2919 = vadd.f32 0.0, %v2918
      %v2920 = vpop.f32.mrb[0].mxu0
      %2921 = vmatprep.mubr.bf16.mxu0 0
      %2922 = vmatmul.mubr.bf16.gmra.mrb[0].mxu0 %v2787
      %v2923 = vpop.f32.mrb[0].mxu0
      %v2924 = vadd.f32 0.0, %v2923
      %v2925 = vpop.f32.mrb[0].mxu0
      %v2926 = vpop.f32.mrb[0].mxu0
      %v2927 = vadd.f32 0.0, %v2926
      %v2928 = vpop.f32.mrb[0].mxu0
      %2929 = vmatprep.mubr.bf16.mxu0 0
      %2930 = vmatmul.mubr.bf16.gmra.mrb[0].mxu0 %v2790
      %v2931 = vpop.f32.mrb[0].mxu0
      %v2932 = vadd.f32 0.0, %v2931
      %v2933 = vpop.f32.mrb[0].mxu0
      %v2934 = vpop.f32.mrb[0].mxu0
      %v2935 = vadd.f32 0.0, %v2934
      %v2936 = vpop.f32.mrb[0].mxu0
      %2937 = vmatprep.mubr.bf16.mxu0 0
      %2938 = vmatmul.mubr.bf16.gmra.mrb[0].mxu0 %v2793
      %v2939 = vpop.f32.mrb[0].mxu0
      %v2940 = vadd.f32 0.0, %v2939
      %v2941 = vpop.f32.mrb[0].mxu0
      %v2942 = vpop.f32.mrb[0].mxu0
      %v2943 = vadd.f32 0.0, %v2942
      %v2944 = vpop.f32.mrb[0].mxu0
      %2945 = vmatprep.mubr.bf16.mxu0 0
      %2946 = vmatmul.mubr.bf16.gmra.mrb[0].mxu0 %v2796
      %v2947 = vpop.f32.mrb[0].mxu0
      %v2948 = vadd.f32 0.0, %v2947
      %v2949 = vpop.f32.mrb[0].mxu0
      %v2950 = vpop.f32.mrb[0].mxu0
      %v2951 = vadd.f32 0.0, %v2950
      %v2952 = vpop.f32.mrb[0].mxu0
      %2953 = vmatprep.mubr.bf16.mxu0 0
      %2954 = vmatmul.mubr.bf16.gmra.mrb[0].mxu0 %v2799
      %v2955 = vpop.f32.mrb[0].mxu0
      %v2956 = vadd.f32 0.0, %v2955
      %v2957 = vpop.f32.mrb[0].mxu0
      %v2958 = vpop.f32.mrb[0].mxu0
      %v2959 = vadd.f32 0.0, %v2958
      %v2960 = vpop.f32.mrb[0].mxu0
      %2961 = vdwg.mxu0
      %v2962 = vadd.f32 %v2481, %v2836
      %v2963 = vadd.f32 %v2484, %v2839
      %v2964 = vadd.f32 %v2489, %v2844
      %v2965 = vadd.f32 %v2492, %v2847
      %v2966 = vadd.f32 %v2497, %v2852
      %v2967 = vadd.f32 %v2500, %v2855
      %v2968 = vadd.f32 %v2505, %v2860
      %v2969 = vadd.f32 %v2508, %v2863
      %v2970 = vadd.f32 %v2513, %v2868
      %v2971 = vadd.f32 %v2516, %v2871
      %v2972 = vadd.f32 %v2521, %v2876
      %v2973 = vadd.f32 %v2524, %v2879
      %v2974 = vadd.f32 %v2529, %v2884
      %v2975 = vadd.f32 %v2532, %v2887
      %v2976 = vadd.f32 %v2537, %v2892
      %v2977 = vadd.f32 %v2540, %v2895
      %v2978 = vadd.f32 %v2545, %v2900
      %v2979 = vadd.f32 %v2548, %v2903
      %v2980 = vadd.f32 %v2553, %v2908
      %v2981 = vadd.f32 %v2556, %v2911
      %v2982 = vadd.f32 %v2561, %v2916
      %v2983 = vadd.f32 %v2564, %v2919
      %v2984 = vadd.f32 %v2569, %v2924
      %v2985 = vadd.f32 %v2572, %v2927
      %v2986 = vadd.f32 %v2577, %v2932
      %v2987 = vadd.f32 %v2580, %v2935
      %v2988 = vadd.f32 %v2585, %v2940
      %v2989 = vadd.f32 %v2588, %v2943
      %v2990 = vadd.f32 %v2593, %v2948
      %v2991 = vadd.f32 %v2596, %v2951
      %v2992 = vadd.f32 %v2601, %v2956
      %v2993 = vadd.f32 %v2604, %v2959
      %v2995 = vshrl.u32 %v1794, 16
      %v2997 = vrot.slane %v2995, 7
      %v2998 = vshll.u32 %v1794, 16
      %v3000 = vor.u32 %v2997, %v2998
      %v3001 = vsel %vm2035, %v2150, %v3000
      %s3002 = scalar_lea.vmem %s7, 48
      %v3003 = vld [vmem:[%s3002] sm:$0xf]
      %v3004 = vld [vmem:[%s3002 + $0x4] sm:$0xf]
      %v3005 = vld [vmem:[%s3002 + $0x8] sm:$0xf]
      %v3006 = vld [vmem:[%s3002 + $0xc] sm:$0xf]
      %v3011 = vunpack.c.l.b16 %v3003
      %v3012 = vunpack.c.l.b16 %v3004
      %v3013 = vunpack.c.l.b16 %v3005
      %v3014 = vunpack.c.l.b16 %v3006
      %v3015 = vpack.c.b16 %v3012, %v3011
      %v3016 = vpack.c.b16 %v3014, %v3013
      %v3020 = vsel %vm610, %v3001, 0
      %3022 = vmatprep.subr.bf16.mxu0 0
      %3023 = vmatpush1.bf16.msra.mxu0 %v3015
      %3024 = vmatprep.subr.bf16.mxu0 0
      %3025 = vmatpush1.bf16.msra.mxu0 %v3016
      %3026 = vmatprep.subr.bf16.mxu0 0
      %3027 = vmatpush1.bf16.msra.mxu0 0
      %3028 = vmatprep.subr.bf16.mxu0 0
      %3029 = vmatpush1.bf16.msra.mxu0 0
      %3030 = vmatprep.subr.bf16.mxu0 0
      %3031 = vmatpush1.bf16.msra.mxu0 0
      %3032 = vmatprep.subr.bf16.mxu0 0
      %3033 = vmatpush1.bf16.msra.mxu0 0
      %3034 = vmatprep.subr.bf16.mxu0 0
      %3035 = vmatpush1.bf16.msra.mxu0 0
      %3036 = vmatprep.subr.bf16.mxu0 0
      %3037 = vmatpush1.bf16.msra.mxu0 0
      %3038 = vmatprep.subr.bf16.mxu0 0
      %3039 = vmatpush1.bf16.msra.mxu0 0
      %3040 = vmatprep.subr.bf16.mxu0 0
      %3041 = vmatpush1.bf16.msra.mxu0 0
      %3042 = vmatprep.subr.bf16.mxu0 0
      %3043 = vmatpush1.bf16.msra.mxu0 0
      %3044 = vmatprep.subr.bf16.mxu0 0
      %3045 = vmatpush1.bf16.msra.mxu0 0
      %3046 = vmatprep.subr.bf16.mxu0 0
      %3047 = vmatpush1.bf16.msra.mxu0 0
      %3048 = vmatprep.subr.bf16.mxu0 0
      %3049 = vmatpush1.bf16.msra.mxu0 0
      %3050 = vmatprep.subr.bf16.mxu0 0
      %3051 = vmatpush1.bf16.msra.mxu0 0
      %3052 = vmatprep.subr.bf16.mxu0 0
      %3053 = vmatpush1.bf16.msra.mxu0 0
      %3054 = vmatprep.mubr.bf16.mxu0 0
      %3055 = vmatmul.mubr.bf16.gmra.mrb[0].mxu0 %v2402
      %v3056 = vpop.f32.mrb[0].mxu0
      %v3057 = vadd.f32 0.0, %v3056
      %v3058 = vpop.f32.mrb[0].mxu0
      %v3059 = vpop.f32.mrb[0].mxu0
      %v3060 = vadd.f32 0.0, %v3059
      %v3061 = vpop.f32.mrb[0].mxu0
      %3062 = vmatprep.mubr.bf16.mxu0 0
      %3063 = vmatmul.mubr.bf16.gmra.mrb[0].mxu0 %v2405
      %v3064 = vpop.f32.mrb[0].mxu0
      %v3065 = vadd.f32 0.0, %v3064
      %v3066 = vpop.f32.mrb[0].mxu0
      %v3067 = vpop.f32.mrb[0].mxu0
      %v3068 = vadd.f32 0.0, %v3067
      %v3069 = vpop.f32.mrb[0].mxu0
      %3070 = vmatprep.mubr.bf16.mxu0 0
      %3071 = vmatmul.mubr.bf16.gmra.mrb[0].mxu0 %v2408
      %v3072 = vpop.f32.mrb[0].mxu0
      %v3073 = vadd.f32 0.0, %v3072
      %v3074 = vpop.f32.mrb[0].mxu0
      %v3075 = vpop.f32.mrb[0].mxu0
      %v3076 = vadd.f32 0.0, %v3075
      %v3077 = vpop.f32.mrb[0].mxu0
      %3078 = vmatprep.mubr.bf16.mxu0 0
      %3079 = vmatmul.mubr.bf16.gmra.mrb[0].mxu0 %v2411
      %v3080 = vpop.f32.mrb[0].mxu0
      %v3081 = vadd.f32 0.0, %v3080
      %v3082 = vpop.f32.mrb[0].mxu0
      %v3083 = vpop.f32.mrb[0].mxu0
      %v3084 = vadd.f32 0.0, %v3083
      %v3085 = vpop.f32.mrb[0].mxu0
      %3086 = vmatprep.mubr.bf16.mxu0 0
      %3087 = vmatmul.mubr.bf16.gmra.mrb[0].mxu0 %v2414
      %v3088 = vpop.f32.mrb[0].mxu0
      %v3089 = vadd.f32 0.0, %v3088
      %v3090 = vpop.f32.mrb[0].mxu0
      %v3091 = vpop.f32.mrb[0].mxu0
      %v3092 = vadd.f32 0.0, %v3091
      %v3093 = vpop.f32.mrb[0].mxu0
      %3094 = vmatprep.mubr.bf16.mxu0 0
      %3095 = vmatmul.mubr.bf16.gmra.mrb[0].mxu0 %v2417
      %v3096 = vpop.f32.mrb[0].mxu0
      %v3097 = vadd.f32 0.0, %v3096
      %v3098 = vpop.f32.mrb[0].mxu0
      %v3099 = vpop.f32.mrb[0].mxu0
      %v3100 = vadd.f32 0.0, %v3099
      %v3101 = vpop.f32.mrb[0].mxu0
      %3102 = vmatprep.mubr.bf16.mxu0 0
      %3103 = vmatmul.mubr.bf16.gmra.mrb[0].mxu0 %v2420
      %v3104 = vpop.f32.mrb[0].mxu0
      %v3105 = vadd.f32 0.0, %v3104
      %v3106 = vpop.f32.mrb[0].mxu0
      %v3107 = vpop.f32.mrb[0].mxu0
      %v3108 = vadd.f32 0.0, %v3107
      %v3109 = vpop.f32.mrb[0].mxu0
      %3110 = vmatprep.mubr.bf16.mxu0 0
      %3111 = vmatmul.mubr.bf16.gmra.mrb[0].mxu0 %v2423
      %v3112 = vpop.f32.mrb[0].mxu0
      %v3113 = vadd.f32 0.0, %v3112
      %v3114 = vpop.f32.mrb[0].mxu0
      %v3115 = vpop.f32.mrb[0].mxu0
      %v3116 = vadd.f32 0.0, %v3115
      %v3117 = vpop.f32.mrb[0].mxu0
      %3118 = vmatprep.mubr.bf16.mxu0 0
      %3119 = vmatmul.mubr.bf16.gmra.mrb[0].mxu0 %v2426
      %v3120 = vpop.f32.mrb[0].mxu0
      %v3121 = vadd.f32 0.0, %v3120
      %v3122 = vpop.f32.mrb[0].mxu0
      %v3123 = vpop.f32.mrb[0].mxu0
      %v3124 = vadd.f32 0.0, %v3123
      %v3125 = vpop.f32.mrb[0].mxu0
      %3126 = vmatprep.mubr.bf16.mxu0 0
      %3127 = vmatmul.mubr.bf16.gmra.mrb[0].mxu0 %v2429
      %v3128 = vpop.f32.mrb[0].mxu0
      %v3129 = vadd.f32 0.0, %v3128
      %v3130 = vpop.f32.mrb[0].mxu0
      %v3131 = vpop.f32.mrb[0].mxu0
      %v3132 = vadd.f32 0.0, %v3131
      %v3133 = vpop.f32.mrb[0].mxu0
      %3134 = vmatprep.mubr.bf16.mxu0 0
      %3135 = vmatmul.mubr.bf16.gmra.mrb[0].mxu0 %v2432
      %v3136 = vpop.f32.mrb[0].mxu0
      %v3137 = vadd.f32 0.0, %v3136
      %v3138 = vpop.f32.mrb[0].mxu0
      %v3139 = vpop.f32.mrb[0].mxu0
      %v3140 = vadd.f32 0.0, %v3139
      %v3141 = vpop.f32.mrb[0].mxu0
      %3142 = vmatprep.mubr.bf16.mxu0 0
      %3143 = vmatmul.mubr.bf16.gmra.mrb[0].mxu0 %v2435
      %v3144 = vpop.f32.mrb[0].mxu0
      %v3145 = vadd.f32 0.0, %v3144
      %v3146 = vpop.f32.mrb[0].mxu0
      %v3147 = vpop.f32.mrb[0].mxu0
      %v3148 = vadd.f32 0.0, %v3147
      %v3149 = vpop.f32.mrb[0].mxu0
      %3150 = vmatprep.mubr.bf16.mxu0 0
      %3151 = vmatmul.mubr.bf16.gmra.mrb[0].mxu0 %v2438
      %v3152 = vpop.f32.mrb[0].mxu0
      %v3153 = vadd.f32 0.0, %v3152
      %v3154 = vpop.f32.mrb[0].mxu0
      %v3155 = vpop.f32.mrb[0].mxu0
      %v3156 = vadd.f32 0.0, %v3155
      %v3157 = vpop.f32.mrb[0].mxu0
      %3158 = vmatprep.mubr.bf16.mxu0 0
      %3159 = vmatmul.mubr.bf16.gmra.mrb[0].mxu0 %v2441
      %v3160 = vpop.f32.mrb[0].mxu0
      %v3161 = vadd.f32 0.0, %v3160
      %v3162 = vpop.f32.mrb[0].mxu0
      %v3163 = vpop.f32.mrb[0].mxu0
      %v3164 = vadd.f32 0.0, %v3163
      %v3165 = vpop.f32.mrb[0].mxu0
      %3166 = vmatprep.mubr.bf16.mxu0 0
      %3167 = vmatmul.mubr.bf16.gmra.mrb[0].mxu0 %v2444
      %v3168 = vpop.f32.mrb[0].mxu0
      %v3169 = vadd.f32 0.0, %v3168
      %v3170 = vpop.f32.mrb[0].mxu0
      %v3171 = vpop.f32.mrb[0].mxu0
      %v3172 = vadd.f32 0.0, %v3171
      %v3173 = vpop.f32.mrb[0].mxu0
      %3174 = vmatprep.mubr.bf16.mxu0 0
      %3175 = vmatmul.mubr.bf16.gmra.mrb[0].mxu0 %v3020
      %v3176 = vpop.f32.mrb[0].mxu0
      %v3177 = vadd.f32 0.0, %v3176
      %v3178 = vpop.f32.mrb[0].mxu0
      %v3179 = vpop.f32.mrb[0].mxu0
      %v3180 = vadd.f32 0.0, %v3179
      %v3181 = vpop.f32.mrb[0].mxu0
      %3182 = vdwg.mxu0
      %v3183 = vadd.f32 %v2962, %v3057
      %v3184 = vadd.f32 %v2963, %v3060
      %v3185 = vadd.f32 %v2964, %v3065
      %v3186 = vadd.f32 %v2965, %v3068
      %v3187 = vadd.f32 %v2966, %v3073
      %v3188 = vadd.f32 %v2967, %v3076
      %v3189 = vadd.f32 %v2968, %v3081
      %v3190 = vadd.f32 %v2969, %v3084
      %v3191 = vadd.f32 %v2970, %v3089
      %v3192 = vadd.f32 %v2971, %v3092
      %v3193 = vadd.f32 %v2972, %v3097
      %v3194 = vadd.f32 %v2973, %v3100
      %v3195 = vadd.f32 %v2974, %v3105
      %v3196 = vadd.f32 %v2975, %v3108
      %v3197 = vadd.f32 %v2976, %v3113
      %v3198 = vadd.f32 %v2977, %v3116
      %v3199 = vadd.f32 %v2978, %v3121
      %v3200 = vadd.f32 %v2979, %v3124
      %v3201 = vadd.f32 %v2980, %v3129
      %v3202 = vadd.f32 %v2981, %v3132
      %v3203 = vadd.f32 %v2982, %v3137
      %v3204 = vadd.f32 %v2983, %v3140
      %v3205 = vadd.f32 %v2984, %v3145
      %v3206 = vadd.f32 %v2985, %v3148
      %v3207 = vadd.f32 %v2986, %v3153
      %v3208 = vadd.f32 %v2987, %v3156
      %v3209 = vadd.f32 %v2988, %v3161
      %v3210 = vadd.f32 %v2989, %v3164
      %v3211 = vadd.f32 %v2990, %v3169
      %v3212 = vadd.f32 %v2991, %v3172
      %v3213 = vadd.f32 %v2992, %v3177
      %v3214 = vadd.f32 %v2993, %v3180
      %s3215 = scalar_lea.vmem %s7, 64
      %v3216 = vld [vmem:[%s3215] sm:$0xf]
      %v3217 = vld [vmem:[%s3215 + $0x4] sm:$0xf]
      %v3218 = vld [vmem:[%s3215 + $0x8] sm:$0xf]
      %v3219 = vld [vmem:[%s3215 + $0xc] sm:$0xf]
      %v3224 = vunpack.c.l.b16 %v3216
      %v3225 = vunpack.c.l.b16 %v3217
      %v3226 = vunpack.c.l.b16 %v3218
      %v3227 = vunpack.c.l.b16 %v3219
      %v3228 = vpack.c.b16 %v3225, %v3224
      %v3229 = vpack.c.b16 %v3227, %v3226
      %v3233 = vsel %vm610, %v1137, 0
      %3235 = vmatprep.subr.bf16.mxu0 0
      %3236 = vmatpush1.bf16.msra.mxu0 %v3228
      %3237 = vmatprep.subr.bf16.mxu0 0
      %3238 = vmatpush1.bf16.msra.mxu0 %v3229
      %3239 = vmatprep.subr.bf16.mxu0 0
      %3240 = vmatpush1.bf16.msra.mxu0 0
      %3241 = vmatprep.subr.bf16.mxu0 0
      %3242 = vmatpush1.bf16.msra.mxu0 0
      %3243 = vmatprep.subr.bf16.mxu0 0
      %3244 = vmatpush1.bf16.msra.mxu0 0
      %3245 = vmatprep.subr.bf16.mxu0 0
      %3246 = vmatpush1.bf16.msra.mxu0 0
      %3247 = vmatprep.subr.bf16.mxu0 0
      %3248 = vmatpush1.bf16.msra.mxu0 0
      %3249 = vmatprep.subr.bf16.mxu0 0
      %3250 = vmatpush1.bf16.msra.mxu0 0
      %3251 = vmatprep.subr.bf16.mxu0 0
      %3252 = vmatpush1.bf16.msra.mxu0 0
      %3253 = vmatprep.subr.bf16.mxu0 0
      %3254 = vmatpush1.bf16.msra.mxu0 0
      %3255 = vmatprep.subr.bf16.mxu0 0
      %3256 = vmatpush1.bf16.msra.mxu0 0
      %3257 = vmatprep.subr.bf16.mxu0 0
      %3258 = vmatpush1.bf16.msra.mxu0 0
      %3259 = vmatprep.subr.bf16.mxu0 0
      %3260 = vmatpush1.bf16.msra.mxu0 0
      %3261 = vmatprep.subr.bf16.mxu0 0
      %3262 = vmatpush1.bf16.msra.mxu0 0
      %3263 = vmatprep.subr.bf16.mxu0 0
      %3264 = vmatpush1.bf16.msra.mxu0 0
      %3265 = vmatprep.subr.bf16.mxu0 0
      %3266 = vmatpush1.bf16.msra.mxu0 0
      %3267 = vmatprep.mubr.bf16.mxu0 0
      %3268 = vmatmul.mubr.bf16.gmra.mrb[0].mxu0 %v2184
      %v3269 = vpop.f32.mrb[0].mxu0
      %v3270 = vadd.f32 0.0, %v3269
      %v3271 = vpop.f32.mrb[0].mxu0
      %v3272 = vpop.f32.mrb[0].mxu0
      %v3273 = vadd.f32 0.0, %v3272
      %v3274 = vpop.f32.mrb[0].mxu0
      %3275 = vmatprep.mubr.bf16.mxu0 0
      %3276 = vmatmul.mubr.bf16.gmra.mrb[0].mxu0 %v2187
      %v3277 = vpop.f32.mrb[0].mxu0
      %v3278 = vadd.f32 0.0, %v3277
      %v3279 = vpop.f32.mrb[0].mxu0
      %v3280 = vpop.f32.mrb[0].mxu0
      %v3281 = vadd.f32 0.0, %v3280
      %v3282 = vpop.f32.mrb[0].mxu0
      %3283 = vmatprep.mubr.bf16.mxu0 0
      %3284 = vmatmul.mubr.bf16.gmra.mrb[0].mxu0 %v2190
      %v3285 = vpop.f32.mrb[0].mxu0
      %v3286 = vadd.f32 0.0, %v3285
      %v3287 = vpop.f32.mrb[0].mxu0
      %v3288 = vpop.f32.mrb[0].mxu0
      %v3289 = vadd.f32 0.0, %v3288
      %v3290 = vpop.f32.mrb[0].mxu0
      %3291 = vmatprep.mubr.bf16.mxu0 0
      %3292 = vmatmul.mubr.bf16.gmra.mrb[0].mxu0 %v2193
      %v3293 = vpop.f32.mrb[0].mxu0
      %v3294 = vadd.f32 0.0, %v3293
      %v3295 = vpop.f32.mrb[0].mxu0
      %v3296 = vpop.f32.mrb[0].mxu0
      %v3297 = vadd.f32 0.0, %v3296
      %v3298 = vpop.f32.mrb[0].mxu0
      %3299 = vmatprep.mubr.bf16.mxu0 0
      %3300 = vmatmul.mubr.bf16.gmra.mrb[0].mxu0 %v2196
      %v3301 = vpop.f32.mrb[0].mxu0
      %v3302 = vadd.f32 0.0, %v3301
      %v3303 = vpop.f32.mrb[0].mxu0
      %v3304 = vpop.f32.mrb[0].mxu0
      %v3305 = vadd.f32 0.0, %v3304
      %v3306 = vpop.f32.mrb[0].mxu0
      %3307 = vmatprep.mubr.bf16.mxu0 0
      %3308 = vmatmul.mubr.bf16.gmra.mrb[0].mxu0 %v2199
      %v3309 = vpop.f32.mrb[0].mxu0
      %v3310 = vadd.f32 0.0, %v3309
      %v3311 = vpop.f32.mrb[0].mxu0
      %v3312 = vpop.f32.mrb[0].mxu0
      %v3313 = vadd.f32 0.0, %v3312
      %v3314 = vpop.f32.mrb[0].mxu0
      %3315 = vmatprep.mubr.bf16.mxu0 0
      %3316 = vmatmul.mubr.bf16.gmra.mrb[0].mxu0 %v2202
      %v3317 = vpop.f32.mrb[0].mxu0
      %v3318 = vadd.f32 0.0, %v3317
      %v3319 = vpop.f32.mrb[0].mxu0
      %v3320 = vpop.f32.mrb[0].mxu0
      %v3321 = vadd.f32 0.0, %v3320
      %v3322 = vpop.f32.mrb[0].mxu0
      %3323 = vmatprep.mubr.bf16.mxu0 0
      %3324 = vmatmul.mubr.bf16.gmra.mrb[0].mxu0 %v2205
      %v3325 = vpop.f32.mrb[0].mxu0
      %v3326 = vadd.f32 0.0, %v3325
      %v3327 = vpop.f32.mrb[0].mxu0
      %v3328 = vpop.f32.mrb[0].mxu0
      %v3329 = vadd.f32 0.0, %v3328
      %v3330 = vpop.f32.mrb[0].mxu0
      %3331 = vmatprep.mubr.bf16.mxu0 0
      %3332 = vmatmul.mubr.bf16.gmra.mrb[0].mxu0 %v2208
      %v3333 = vpop.f32.mrb[0].mxu0
      %v3334 = vadd.f32 0.0, %v3333
      %v3335 = vpop.f32.mrb[0].mxu0
      %v3336 = vpop.f32.mrb[0].mxu0
      %v3337 = vadd.f32 0.0, %v3336
      %v3338 = vpop.f32.mrb[0].mxu0
      %3339 = vmatprep.mubr.bf16.mxu0 0
      %3340 = vmatmul.mubr.bf16.gmra.mrb[0].mxu0 %v2211
      %v3341 = vpop.f32.mrb[0].mxu0
      %v3342 = vadd.f32 0.0, %v3341
      %v3343 = vpop.f32.mrb[0].mxu0
      %v3344 = vpop.f32.mrb[0].mxu0
      %v3345 = vadd.f32 0.0, %v3344
      %v3346 = vpop.f32.mrb[0].mxu0
      %3347 = vmatprep.mubr.bf16.mxu0 0
      %3348 = vmatmul.mubr.bf16.gmra.mrb[0].mxu0 %v2214
      %v3349 = vpop.f32.mrb[0].mxu0
      %v3350 = vadd.f32 0.0, %v3349
      %v3351 = vpop.f32.mrb[0].mxu0
      %v3352 = vpop.f32.mrb[0].mxu0
      %v3353 = vadd.f32 0.0, %v3352
      %v3354 = vpop.f32.mrb[0].mxu0
      %3355 = vmatprep.mubr.bf16.mxu0 0
      %3356 = vmatmul.mubr.bf16.gmra.mrb[0].mxu0 %v2217
      %v3357 = vpop.f32.mrb[0].mxu0
      %v3358 = vadd.f32 0.0, %v3357
      %v3359 = vpop.f32.mrb[0].mxu0
      %v3360 = vpop.f32.mrb[0].mxu0
      %v3361 = vadd.f32 0.0, %v3360
      %v3362 = vpop.f32.mrb[0].mxu0
      %3363 = vmatprep.mubr.bf16.mxu0 0
      %3364 = vmatmul.mubr.bf16.gmra.mrb[0].mxu0 %v2220
      %v3365 = vpop.f32.mrb[0].mxu0
      %v3366 = vadd.f32 0.0, %v3365
      %v3367 = vpop.f32.mrb[0].mxu0
      %v3368 = vpop.f32.mrb[0].mxu0
      %v3369 = vadd.f32 0.0, %v3368
      %v3370 = vpop.f32.mrb[0].mxu0
      %3371 = vmatprep.mubr.bf16.mxu0 0
      %3372 = vmatmul.mubr.bf16.gmra.mrb[0].mxu0 %v2223
      %v3373 = vpop.f32.mrb[0].mxu0
      %v3374 = vadd.f32 0.0, %v3373
      %v3375 = vpop.f32.mrb[0].mxu0
      %v3376 = vpop.f32.mrb[0].mxu0
      %v3377 = vadd.f32 0.0, %v3376
      %v3378 = vpop.f32.mrb[0].mxu0
      %3379 = vmatprep.mubr.bf16.mxu0 0
      %3380 = vmatmul.mubr.bf16.gmra.mrb[0].mxu0 %v2226
      %v3381 = vpop.f32.mrb[0].mxu0
      %v3382 = vadd.f32 0.0, %v3381
      %v3383 = vpop.f32.mrb[0].mxu0
      %v3384 = vpop.f32.mrb[0].mxu0
      %v3385 = vadd.f32 0.0, %v3384
      %v3386 = vpop.f32.mrb[0].mxu0
      %3387 = vmatprep.mubr.bf16.mxu0 0
      %3388 = vmatmul.mubr.bf16.gmra.mrb[0].mxu0 %v3233
      %v3389 = vpop.f32.mrb[0].mxu0
      %v3390 = vadd.f32 0.0, %v3389
      %v3391 = vpop.f32.mrb[0].mxu0
      %v3392 = vpop.f32.mrb[0].mxu0
      %v3393 = vadd.f32 0.0, %v3392
      %v3394 = vpop.f32.mrb[0].mxu0
      %3395 = vdwg.mxu0
      %v3396 = vadd.f32 %v3183, %v3270
      %v3397 = vadd.f32 %v3184, %v3273
      %v3398 = vadd.f32 %v3185, %v3278
      %v3399 = vadd.f32 %v3186, %v3281
      %v3400 = vadd.f32 %v3187, %v3286
      %v3401 = vadd.f32 %v3188, %v3289
      %v3402 = vadd.f32 %v3189, %v3294
      %v3403 = vadd.f32 %v3190, %v3297
      %v3404 = vadd.f32 %v3191, %v3302
      %v3405 = vadd.f32 %v3192, %v3305
      %v3406 = vadd.f32 %v3193, %v3310
      %v3407 = vadd.f32 %v3194, %v3313
      %v3408 = vadd.f32 %v3195, %v3318
      %v3409 = vadd.f32 %v3196, %v3321
      %v3410 = vadd.f32 %v3197, %v3326
      %v3411 = vadd.f32 %v3198, %v3329
      %v3412 = vadd.f32 %v3199, %v3334
      %v3413 = vadd.f32 %v3200, %v3337
      %v3414 = vadd.f32 %v3201, %v3342
      %v3415 = vadd.f32 %v3202, %v3345
      %v3416 = vadd.f32 %v3203, %v3350
      %v3417 = vadd.f32 %v3204, %v3353
      %v3418 = vadd.f32 %v3205, %v3358
      %v3419 = vadd.f32 %v3206, %v3361
      %v3420 = vadd.f32 %v3207, %v3366
      %v3421 = vadd.f32 %v3208, %v3369
      %v3422 = vadd.f32 %v3209, %v3374
      %v3423 = vadd.f32 %v3210, %v3377
      %v3424 = vadd.f32 %v3211, %v3382
      %v3425 = vadd.f32 %v3212, %v3385
      %v3426 = vadd.f32 %v3213, %v3390
      %v3427 = vadd.f32 %v3214, %v3393
      %v3428 = vshrl.u32 %v2034, 16
      %v3430 = vor.u32 %v3428, %v2730
      %v3432 = vsel %vm2734, %v3430, 0
      %s3433 = scalar_lea.vmem %s7, 80
      %v3434 = vld [vmem:[%s3433] sm:$0xf]
      %v3435 = vld [vmem:[%s3433 + $0x4] sm:$0xf]
      %v3436 = vld [vmem:[%s3433 + $0x8] sm:$0xf]
      %v3437 = vld [vmem:[%s3433 + $0xc] sm:$0xf]
      %v3442 = vunpack.c.l.b16 %v3434
      %v3443 = vunpack.c.l.b16 %v3435
      %v3444 = vunpack.c.l.b16 %v3436
      %v3445 = vunpack.c.l.b16 %v3437
      %v3446 = vpack.c.b16 %v3443, %v3442
      %v3447 = vpack.c.b16 %v3445, %v3444
      %v3451 = vsel %vm610, %v3432, 0
      %3453 = vmatprep.subr.bf16.mxu0 0
      %3454 = vmatpush1.bf16.msra.mxu0 %v3446
      %3455 = vmatprep.subr.bf16.mxu0 0
      %3456 = vmatpush1.bf16.msra.mxu0 %v3447
      %3457 = vmatprep.subr.bf16.mxu0 0
      %3458 = vmatpush1.bf16.msra.mxu0 0
      %3459 = vmatprep.subr.bf16.mxu0 0
      %3460 = vmatpush1.bf16.msra.mxu0 0
      %3461 = vmatprep.subr.bf16.mxu0 0
      %3462 = vmatpush1.bf16.msra.mxu0 0
      %3463 = vmatprep.subr.bf16.mxu0 0
      %3464 = vmatpush1.bf16.msra.mxu0 0
      %3465 = vmatprep.subr.bf16.mxu0 0
      %3466 = vmatpush1.bf16.msra.mxu0 0
      %3467 = vmatprep.subr.bf16.mxu0 0
      %3468 = vmatpush1.bf16.msra.mxu0 0
      %3469 = vmatprep.subr.bf16.mxu0 0
      %3470 = vmatpush1.bf16.msra.mxu0 0
      %3471 = vmatprep.subr.bf16.mxu0 0
      %3472 = vmatpush1.bf16.msra.mxu0 0
      %3473 = vmatprep.subr.bf16.mxu0 0
      %3474 = vmatpush1.bf16.msra.mxu0 0
      %3475 = vmatprep.subr.bf16.mxu0 0
      %3476 = vmatpush1.bf16.msra.mxu0 0
      %3477 = vmatprep.subr.bf16.mxu0 0
      %3478 = vmatpush1.bf16.msra.mxu0 0
      %3479 = vmatprep.subr.bf16.mxu0 0
      %3480 = vmatpush1.bf16.msra.mxu0 0
      %3481 = vmatprep.subr.bf16.mxu0 0
      %3482 = vmatpush1.bf16.msra.mxu0 0
      %3483 = vmatprep.subr.bf16.mxu0 0
      %3484 = vmatpush1.bf16.msra.mxu0 0
      %3485 = vmatprep.mubr.bf16.mxu0 0
      %3486 = vmatmul.mubr.bf16.gmra.mrb[0].mxu0 %v2757
      %v3487 = vpop.f32.mrb[0].mxu0
      %v3488 = vadd.f32 0.0, %v3487
      %v3489 = vpop.f32.mrb[0].mxu0
      %v3490 = vpop.f32.mrb[0].mxu0
      %v3491 = vadd.f32 0.0, %v3490
      %v3492 = vpop.f32.mrb[0].mxu0
      %3493 = vmatprep.mubr.bf16.mxu0 0
      %3494 = vmatmul.mubr.bf16.gmra.mrb[0].mxu0 %v2760
      %v3495 = vpop.f32.mrb[0].mxu0
      %v3496 = vadd.f32 0.0, %v3495
      %v3497 = vpop.f32.mrb[0].mxu0
      %v3498 = vpop.f32.mrb[0].mxu0
      %v3499 = vadd.f32 0.0, %v3498
      %v3500 = vpop.f32.mrb[0].mxu0
      %3501 = vmatprep.mubr.bf16.mxu0 0
      %3502 = vmatmul.mubr.bf16.gmra.mrb[0].mxu0 %v2763
      %v3503 = vpop.f32.mrb[0].mxu0
      %v3504 = vadd.f32 0.0, %v3503
      %v3505 = vpop.f32.mrb[0].mxu0
      %v3506 = vpop.f32.mrb[0].mxu0
      %v3507 = vadd.f32 0.0, %v3506
      %v3508 = vpop.f32.mrb[0].mxu0
      %3509 = vmatprep.mubr.bf16.mxu0 0
      %3510 = vmatmul.mubr.bf16.gmra.mrb[0].mxu0 %v2766
      %v3511 = vpop.f32.mrb[0].mxu0
      %v3512 = vadd.f32 0.0, %v3511
      %v3513 = vpop.f32.mrb[0].mxu0
      %v3514 = vpop.f32.mrb[0].mxu0
      %v3515 = vadd.f32 0.0, %v3514
      %v3516 = vpop.f32.mrb[0].mxu0
      %3517 = vmatprep.mubr.bf16.mxu0 0
      %3518 = vmatmul.mubr.bf16.gmra.mrb[0].mxu0 %v2769
      %v3519 = vpop.f32.mrb[0].mxu0
      %v3520 = vadd.f32 0.0, %v3519
      %v3521 = vpop.f32.mrb[0].mxu0
      %v3522 = vpop.f32.mrb[0].mxu0
      %v3523 = vadd.f32 0.0, %v3522
      %v3524 = vpop.f32.mrb[0].mxu0
      %3525 = vmatprep.mubr.bf16.mxu0 0
      %3526 = vmatmul.mubr.bf16.gmra.mrb[0].mxu0 %v2772
      %v3527 = vpop.f32.mrb[0].mxu0
      %v3528 = vadd.f32 0.0, %v3527
      %v3529 = vpop.f32.mrb[0].mxu0
      %v3530 = vpop.f32.mrb[0].mxu0
      %v3531 = vadd.f32 0.0, %v3530
      %v3532 = vpop.f32.mrb[0].mxu0
      %3533 = vmatprep.mubr.bf16.mxu0 0
      %3534 = vmatmul.mubr.bf16.gmra.mrb[0].mxu0 %v2775
      %v3535 = vpop.f32.mrb[0].mxu0
      %v3536 = vadd.f32 0.0, %v3535
      %v3537 = vpop.f32.mrb[0].mxu0
      %v3538 = vpop.f32.mrb[0].mxu0
      %v3539 = vadd.f32 0.0, %v3538
      %v3540 = vpop.f32.mrb[0].mxu0
      %3541 = vmatprep.mubr.bf16.mxu0 0
      %3542 = vmatmul.mubr.bf16.gmra.mrb[0].mxu0 %v2778
      %v3543 = vpop.f32.mrb[0].mxu0
      %v3544 = vadd.f32 0.0, %v3543
      %v3545 = vpop.f32.mrb[0].mxu0
      %v3546 = vpop.f32.mrb[0].mxu0
      %v3547 = vadd.f32 0.0, %v3546
      %v3548 = vpop.f32.mrb[0].mxu0
      %3549 = vmatprep.mubr.bf16.mxu0 0
      %3550 = vmatmul.mubr.bf16.gmra.mrb[0].mxu0 %v2781
      %v3551 = vpop.f32.mrb[0].mxu0
      %v3552 = vadd.f32 0.0, %v3551
      %v3553 = vpop.f32.mrb[0].mxu0
      %v3554 = vpop.f32.mrb[0].mxu0
      %v3555 = vadd.f32 0.0, %v3554
      %v3556 = vpop.f32.mrb[0].mxu0
      %3557 = vmatprep.mubr.bf16.mxu0 0
      %3558 = vmatmul.mubr.bf16.gmra.mrb[0].mxu0 %v2784
      %v3559 = vpop.f32.mrb[0].mxu0
      %v3560 = vadd.f32 0.0, %v3559
      %v3561 = vpop.f32.mrb[0].mxu0
      %v3562 = vpop.f32.mrb[0].mxu0
      %v3563 = vadd.f32 0.0, %v3562
      %v3564 = vpop.f32.mrb[0].mxu0
      %3565 = vmatprep.mubr.bf16.mxu0 0
      %3566 = vmatmul.mubr.bf16.gmra.mrb[0].mxu0 %v2787
      %v3567 = vpop.f32.mrb[0].mxu0
      %v3568 = vadd.f32 0.0, %v3567
      %v3569 = vpop.f32.mrb[0].mxu0
      %v3570 = vpop.f32.mrb[0].mxu0
      %v3571 = vadd.f32 0.0, %v3570
      %v3572 = vpop.f32.mrb[0].mxu0
      %3573 = vmatprep.mubr.bf16.mxu0 0
      %3574 = vmatmul.mubr.bf16.gmra.mrb[0].mxu0 %v2790
      %v3575 = vpop.f32.mrb[0].mxu0
      %v3576 = vadd.f32 0.0, %v3575
      %v3577 = vpop.f32.mrb[0].mxu0
      %v3578 = vpop.f32.mrb[0].mxu0
      %v3579 = vadd.f32 0.0, %v3578
      %v3580 = vpop.f32.mrb[0].mxu0
      %3581 = vmatprep.mubr.bf16.mxu0 0
      %3582 = vmatmul.mubr.bf16.gmra.mrb[0].mxu0 %v2793
      %v3583 = vpop.f32.mrb[0].mxu0
      %v3584 = vadd.f32 0.0, %v3583
      %v3585 = vpop.f32.mrb[0].mxu0
      %v3586 = vpop.f32.mrb[0].mxu0
      %v3587 = vadd.f32 0.0, %v3586
      %v3588 = vpop.f32.mrb[0].mxu0
      %3589 = vmatprep.mubr.bf16.mxu0 0
      %3590 = vmatmul.mubr.bf16.gmra.mrb[0].mxu0 %v2796
      %v3591 = vpop.f32.mrb[0].mxu0
      %v3592 = vadd.f32 0.0, %v3591
      %v3593 = vpop.f32.mrb[0].mxu0
      %v3594 = vpop.f32.mrb[0].mxu0
      %v3595 = vadd.f32 0.0, %v3594
      %v3596 = vpop.f32.mrb[0].mxu0
      %3597 = vmatprep.mubr.bf16.mxu0 0
      %3598 = vmatmul.mubr.bf16.gmra.mrb[0].mxu0 %v2799
      %v3599 = vpop.f32.mrb[0].mxu0
      %v3600 = vadd.f32 0.0, %v3599
      %v3601 = vpop.f32.mrb[0].mxu0
      %v3602 = vpop.f32.mrb[0].mxu0
      %v3603 = vadd.f32 0.0, %v3602
      %v3604 = vpop.f32.mrb[0].mxu0
      %3605 = vmatprep.mubr.bf16.mxu0 0
      %3606 = vmatmul.mubr.bf16.gmra.mrb[0].mxu0 %v3451
      %v3607 = vpop.f32.mrb[0].mxu0
      %v3608 = vadd.f32 0.0, %v3607
      %v3609 = vpop.f32.mrb[0].mxu0
      %v3610 = vpop.f32.mrb[0].mxu0
      %v3611 = vadd.f32 0.0, %v3610
      %v3612 = vpop.f32.mrb[0].mxu0
      %3613 = vdwg.mxu0
      %v3614 = vadd.f32 %v3396, %v3488
      %v3615 = vadd.f32 %v3397, %v3491
      %v3616 = vadd.f32 %v3398, %v3496
      %v3617 = vadd.f32 %v3399, %v3499
      %v3618 = vadd.f32 %v3400, %v3504
      %v3619 = vadd.f32 %v3401, %v3507
      %v3620 = vadd.f32 %v3402, %v3512
      %v3621 = vadd.f32 %v3403, %v3515
      %v3622 = vadd.f32 %v3404, %v3520
      %v3623 = vadd.f32 %v3405, %v3523
      %v3624 = vadd.f32 %v3406, %v3528
      %v3625 = vadd.f32 %v3407, %v3531
      %v3626 = vadd.f32 %v3408, %v3536
      %v3627 = vadd.f32 %v3409, %v3539
      %v3628 = vadd.f32 %v3410, %v3544
      %v3629 = vadd.f32 %v3411, %v3547
      %v3630 = vadd.f32 %v3412, %v3552
      %v3631 = vadd.f32 %v3413, %v3555
      %v3632 = vadd.f32 %v3414, %v3560
      %v3633 = vadd.f32 %v3415, %v3563
      %v3634 = vadd.f32 %v3416, %v3568
      %v3635 = vadd.f32 %v3417, %v3571
      %v3636 = vadd.f32 %v3418, %v3576
      %v3637 = vadd.f32 %v3419, %v3579
      %v3638 = vadd.f32 %v3420, %v3584
      %v3639 = vadd.f32 %v3421, %v3587
      %v3640 = vadd.f32 %v3422, %v3592
      %v3641 = vadd.f32 %v3423, %v3595
      %v3642 = vadd.f32 %v3424, %v3600
      %v3643 = vadd.f32 %v3425, %v3603
      %v3644 = vadd.f32 %v3426, %v3608
      %v3645 = vadd.f32 %v3427, %v3611
      %v3647 = vsel %vm2157, %v2997, 0
      %s3648 = scalar_lea.vmem %s7, 96
      %v3649 = vld [vmem:[%s3648] sm:$0xf]
      %v3650 = vld [vmem:[%s3648 + $0x4] sm:$0xf]
      %v3651 = vld [vmem:[%s3648 + $0x8] sm:$0xf]
      %v3652 = vld [vmem:[%s3648 + $0xc] sm:$0xf]
      %v3657 = vunpack.c.l.b16 %v3649
      %v3658 = vunpack.c.l.b16 %v3650
      %v3659 = vunpack.c.l.b16 %v3651
      %v3660 = vunpack.c.l.b16 %v3652
      %v3661 = vpack.c.b16 %v3658, %v3657
      %v3662 = vpack.c.b16 %v3660, %v3659
      %v3666 = vsel %vm610, %v3647, 0
      %3668 = vmatprep.subr.bf16.mxu0 0
      %3669 = vmatpush1.bf16.msra.mxu0 %v3661
      %3670 = vmatprep.subr.bf16.mxu0 0
      %3671 = vmatpush1.bf16.msra.mxu0 %v3662
      %3672 = vmatprep.subr.bf16.mxu0 0
      %3673 = vmatpush1.bf16.msra.mxu0 0
      %3674 = vmatprep.subr.bf16.mxu0 0
      %3675 = vmatpush1.bf16.msra.mxu0 0
      %3676 = vmatprep.subr.bf16.mxu0 0
      %3677 = vmatpush1.bf16.msra.mxu0 0
      %3678 = vmatprep.subr.bf16.mxu0 0
      %3679 = vmatpush1.bf16.msra.mxu0 0
      %3680 = vmatprep.subr.bf16.mxu0 0
      %3681 = vmatpush1.bf16.msra.mxu0 0
      %3682 = vmatprep.subr.bf16.mxu0 0
      %3683 = vmatpush1.bf16.msra.mxu0 0
      %3684 = vmatprep.subr.bf16.mxu0 0
      %3685 = vmatpush1.bf16.msra.mxu0 0
      %3686 = vmatprep.subr.bf16.mxu0 0
      %3687 = vmatpush1.bf16.msra.mxu0 0
      %3688 = vmatprep.subr.bf16.mxu0 0
      %3689 = vmatpush1.bf16.msra.mxu0 0
      %3690 = vmatprep.subr.bf16.mxu0 0
      %3691 = vmatpush1.bf16.msra.mxu0 0
      %3692 = vmatprep.subr.bf16.mxu0 0
      %3693 = vmatpush1.bf16.msra.mxu0 0
      %3694 = vmatprep.subr.bf16.mxu0 0
      %3695 = vmatpush1.bf16.msra.mxu0 0
      %3696 = vmatprep.subr.bf16.mxu0 0
      %3697 = vmatpush1.bf16.msra.mxu0 0
      %3698 = vmatprep.subr.bf16.mxu0 0
      %3699 = vmatpush1.bf16.msra.mxu0 0
      %3700 = vmatprep.mubr.bf16.mxu0 0
      %3701 = vmatmul.mubr.bf16.gmra.mrb[0].mxu0 %v2405
      %v3702 = vpop.f32.mrb[0].mxu0
      %v3703 = vadd.f32 0.0, %v3702
      %v3704 = vpop.f32.mrb[0].mxu0
      %v3705 = vpop.f32.mrb[0].mxu0
      %v3706 = vadd.f32 0.0, %v3705
      %v3707 = vpop.f32.mrb[0].mxu0
      %3708 = vmatprep.mubr.bf16.mxu0 0
      %3709 = vmatmul.mubr.bf16.gmra.mrb[0].mxu0 %v2408
      %v3710 = vpop.f32.mrb[0].mxu0
      %v3711 = vadd.f32 0.0, %v3710
      %v3712 = vpop.f32.mrb[0].mxu0
      %v3713 = vpop.f32.mrb[0].mxu0
      %v3714 = vadd.f32 0.0, %v3713
      %v3715 = vpop.f32.mrb[0].mxu0
      %3716 = vmatprep.mubr.bf16.mxu0 0
      %3717 = vmatmul.mubr.bf16.gmra.mrb[0].mxu0 %v2411
      %v3718 = vpop.f32.mrb[0].mxu0
      %v3719 = vadd.f32 0.0, %v3718
      %v3720 = vpop.f32.mrb[0].mxu0
      %v3721 = vpop.f32.mrb[0].mxu0
      %v3722 = vadd.f32 0.0, %v3721
      %v3723 = vpop.f32.mrb[0].mxu0
      %3724 = vmatprep.mubr.bf16.mxu0 0
      %3725 = vmatmul.mubr.bf16.gmra.mrb[0].mxu0 %v2414
      %v3726 = vpop.f32.mrb[0].mxu0
      %v3727 = vadd.f32 0.0, %v3726
      %v3728 = vpop.f32.mrb[0].mxu0
      %v3729 = vpop.f32.mrb[0].mxu0
      %v3730 = vadd.f32 0.0, %v3729
      %v3731 = vpop.f32.mrb[0].mxu0
      %3732 = vmatprep.mubr.bf16.mxu0 0
      %3733 = vmatmul.mubr.bf16.gmra.mrb[0].mxu0 %v2417
      %v3734 = vpop.f32.mrb[0].mxu0
      %v3735 = vadd.f32 0.0, %v3734
      %v3736 = vpop.f32.mrb[0].mxu0
      %v3737 = vpop.f32.mrb[0].mxu0
      %v3738 = vadd.f32 0.0, %v3737
      %v3739 = vpop.f32.mrb[0].mxu0
      %3740 = vmatprep.mubr.bf16.mxu0 0
      %3741 = vmatmul.mubr.bf16.gmra.mrb[0].mxu0 %v2420
      %v3742 = vpop.f32.mrb[0].mxu0
      %v3743 = vadd.f32 0.0, %v3742
      %v3744 = vpop.f32.mrb[0].mxu0
      %v3745 = vpop.f32.mrb[0].mxu0
      %v3746 = vadd.f32 0.0, %v3745
      %v3747 = vpop.f32.mrb[0].mxu0
      %3748 = vmatprep.mubr.bf16.mxu0 0
      %3749 = vmatmul.mubr.bf16.gmra.mrb[0].mxu0 %v2423
      %v3750 = vpop.f32.mrb[0].mxu0
      %v3751 = vadd.f32 0.0, %v3750
      %v3752 = vpop.f32.mrb[0].mxu0
      %v3753 = vpop.f32.mrb[0].mxu0
      %v3754 = vadd.f32 0.0, %v3753
      %v3755 = vpop.f32.mrb[0].mxu0
      %3756 = vmatprep.mubr.bf16.mxu0 0
      %3757 = vmatmul.mubr.bf16.gmra.mrb[0].mxu0 %v2426
      %v3758 = vpop.f32.mrb[0].mxu0
      %v3759 = vadd.f32 0.0, %v3758
      %v3760 = vpop.f32.mrb[0].mxu0
      %v3761 = vpop.f32.mrb[0].mxu0
      %v3762 = vadd.f32 0.0, %v3761
      %v3763 = vpop.f32.mrb[0].mxu0
      %3764 = vmatprep.mubr.bf16.mxu0 0
      %3765 = vmatmul.mubr.bf16.gmra.mrb[0].mxu0 %v2429
      %v3766 = vpop.f32.mrb[0].mxu0
      %v3767 = vadd.f32 0.0, %v3766
      %v3768 = vpop.f32.mrb[0].mxu0
      %v3769 = vpop.f32.mrb[0].mxu0
      %v3770 = vadd.f32 0.0, %v3769
      %v3771 = vpop.f32.mrb[0].mxu0
      %3772 = vmatprep.mubr.bf16.mxu0 0
      %3773 = vmatmul.mubr.bf16.gmra.mrb[0].mxu0 %v2432
      %v3774 = vpop.f32.mrb[0].mxu0
      %v3775 = vadd.f32 0.0, %v3774
      %v3776 = vpop.f32.mrb[0].mxu0
      %v3777 = vpop.f32.mrb[0].mxu0
      %v3778 = vadd.f32 0.0, %v3777
      %v3779 = vpop.f32.mrb[0].mxu0
      %3780 = vmatprep.mubr.bf16.mxu0 0
      %3781 = vmatmul.mubr.bf16.gmra.mrb[0].mxu0 %v2435
      %v3782 = vpop.f32.mrb[0].mxu0
      %v3783 = vadd.f32 0.0, %v3782
      %v3784 = vpop.f32.mrb[0].mxu0
      %v3785 = vpop.f32.mrb[0].mxu0
      %v3786 = vadd.f32 0.0, %v3785
      %v3787 = vpop.f32.mrb[0].mxu0
      %3788 = vmatprep.mubr.bf16.mxu0 0
      %3789 = vmatmul.mubr.bf16.gmra.mrb[0].mxu0 %v2438
      %v3790 = vpop.f32.mrb[0].mxu0
      %v3791 = vadd.f32 0.0, %v3790
      %v3792 = vpop.f32.mrb[0].mxu0
      %v3793 = vpop.f32.mrb[0].mxu0
      %v3794 = vadd.f32 0.0, %v3793
      %v3795 = vpop.f32.mrb[0].mxu0
      %3796 = vmatprep.mubr.bf16.mxu0 0
      %3797 = vmatmul.mubr.bf16.gmra.mrb[0].mxu0 %v2441
      %v3798 = vpop.f32.mrb[0].mxu0
      %v3799 = vadd.f32 0.0, %v3798
      %v3800 = vpop.f32.mrb[0].mxu0
      %v3801 = vpop.f32.mrb[0].mxu0
      %v3802 = vadd.f32 0.0, %v3801
      %v3803 = vpop.f32.mrb[0].mxu0
      %3804 = vmatprep.mubr.bf16.mxu0 0
      %3805 = vmatmul.mubr.bf16.gmra.mrb[0].mxu0 %v2444
      %v3806 = vpop.f32.mrb[0].mxu0
      %v3807 = vadd.f32 0.0, %v3806
      %v3808 = vpop.f32.mrb[0].mxu0
      %v3809 = vpop.f32.mrb[0].mxu0
      %v3810 = vadd.f32 0.0, %v3809
      %v3811 = vpop.f32.mrb[0].mxu0
      %3812 = vmatprep.mubr.bf16.mxu0 0
      %3813 = vmatmul.mubr.bf16.gmra.mrb[0].mxu0 %v3020
      %v3814 = vpop.f32.mrb[0].mxu0
      %v3815 = vadd.f32 0.0, %v3814
      %v3816 = vpop.f32.mrb[0].mxu0
      %v3817 = vpop.f32.mrb[0].mxu0
      %v3818 = vadd.f32 0.0, %v3817
      %v3819 = vpop.f32.mrb[0].mxu0
      %3820 = vmatprep.mubr.bf16.mxu0 0
      %3821 = vmatmul.mubr.bf16.gmra.mrb[0].mxu0 %v3666
      %v3822 = vpop.f32.mrb[0].mxu0
      %v3823 = vadd.f32 0.0, %v3822
      %v3824 = vpop.f32.mrb[0].mxu0
      %v3825 = vpop.f32.mrb[0].mxu0
      %v3826 = vadd.f32 0.0, %v3825
      %v3827 = vpop.f32.mrb[0].mxu0
      %3828 = vdwg.mxu0
      %v3829 = vadd.f32 %v3614, %v3703
      %v3830 = vadd.f32 %v3615, %v3706
      %v3831 = vadd.f32 %v3616, %v3711
      %v3832 = vadd.f32 %v3617, %v3714
      %v3833 = vadd.f32 %v3618, %v3719
      %v3834 = vadd.f32 %v3619, %v3722
      %v3835 = vadd.f32 %v3620, %v3727
      %v3836 = vadd.f32 %v3621, %v3730
      %v3837 = vadd.f32 %v3622, %v3735
      %v3838 = vadd.f32 %v3623, %v3738
      %v3839 = vadd.f32 %v3624, %v3743
      %v3840 = vadd.f32 %v3625, %v3746
      %v3841 = vadd.f32 %v3626, %v3751
      %v3842 = vadd.f32 %v3627, %v3754
      %v3843 = vadd.f32 %v3628, %v3759
      %v3844 = vadd.f32 %v3629, %v3762
      %v3845 = vadd.f32 %v3630, %v3767
      %v3846 = vadd.f32 %v3631, %v3770
      %v3847 = vadd.f32 %v3632, %v3775
      %v3848 = vadd.f32 %v3633, %v3778
      %v3849 = vadd.f32 %v3634, %v3783
      %v3850 = vadd.f32 %v3635, %v3786
      %v3851 = vadd.f32 %v3636, %v3791
      %v3852 = vadd.f32 %v3637, %v3794
      %v3853 = vadd.f32 %v3638, %v3799
      %v3854 = vadd.f32 %v3639, %v3802
      %v3855 = vadd.f32 %v3640, %v3807
      %v3856 = vadd.f32 %v3641, %v3810
      %v3857 = vadd.f32 %v3642, %v3815
      %v3858 = vadd.f32 %v3643, %v3818
      %v3859 = vadd.f32 %v3644, %v3823
      %v3860 = vadd.f32 %v3645, %v3826
      %s3861 = scalar_lea.vmem %s7, 112
      %v3862 = vld [vmem:[%s3861] sm:$0xf]
      %v3863 = vld [vmem:[%s3861 + $0x4] sm:$0xf]
      %v3864 = vld [vmem:[%s3861 + $0x8] sm:$0xf]
      %v3865 = vld [vmem:[%s3861 + $0xc] sm:$0xf]
      %v3870 = vunpack.c.l.b16 %v3862
      %v3871 = vunpack.c.l.b16 %v3863
      %v3872 = vunpack.c.l.b16 %v3864
      %v3873 = vunpack.c.l.b16 %v3865
      %v3874 = vpack.c.b16 %v3871, %v3870
      %v3875 = vpack.c.b16 %v3873, %v3872
      %3878 = vmatprep.subr.bf16.mxu0 0
      %3879 = vmatpush1.bf16.msra.mxu0 %v3874
      %3880 = vmatprep.subr.bf16.mxu0 0
      %3881 = vmatpush1.bf16.msra.mxu0 %v3875
      %3882 = vmatprep.subr.bf16.mxu0 0
      %3883 = vmatpush1.bf16.msra.mxu0 0
      %3884 = vmatprep.subr.bf16.mxu0 0
      %3885 = vmatpush1.bf16.msra.mxu0 0
      %3886 = vmatprep.subr.bf16.mxu0 0
      %3887 = vmatpush1.bf16.msra.mxu0 0
      %3888 = vmatprep.subr.bf16.mxu0 0
      %3889 = vmatpush1.bf16.msra.mxu0 0
      %3890 = vmatprep.subr.bf16.mxu0 0
      %3891 = vmatpush1.bf16.msra.mxu0 0
      %3892 = vmatprep.subr.bf16.mxu0 0
      %3893 = vmatpush1.bf16.msra.mxu0 0
      %3894 = vmatprep.subr.bf16.mxu0 0
      %3895 = vmatpush1.bf16.msra.mxu0 0
      %3896 = vmatprep.subr.bf16.mxu0 0
      %3897 = vmatpush1.bf16.msra.mxu0 0
      %3898 = vmatprep.subr.bf16.mxu0 0
      %3899 = vmatpush1.bf16.msra.mxu0 0
      %3900 = vmatprep.subr.bf16.mxu0 0
      %3901 = vmatpush1.bf16.msra.mxu0 0
      %3902 = vmatprep.subr.bf16.mxu0 0
      %3903 = vmatpush1.bf16.msra.mxu0 0
      %3904 = vmatprep.subr.bf16.mxu0 0
      %3905 = vmatpush1.bf16.msra.mxu0 0
      %3906 = vmatprep.subr.bf16.mxu0 0
      %3907 = vmatpush1.bf16.msra.mxu0 0
      %3908 = vmatprep.subr.bf16.mxu0 0
      %3909 = vmatpush1.bf16.msra.mxu0 0
      %3910 = vmatprep.mubr.bf16.mxu0 0
      %3911 = vmatmul.mubr.bf16.gmra.mrb[0].mxu0 %v2187
      %v3912 = vpop.f32.mrb[0].mxu0
      %v3913 = vadd.f32 0.0, %v3912
      %v3914 = vpop.f32.mrb[0].mxu0
      %v3915 = vpop.f32.mrb[0].mxu0
      %v3916 = vadd.f32 0.0, %v3915
      %v3917 = vpop.f32.mrb[0].mxu0
      %3918 = vmatprep.mubr.bf16.mxu0 0
      %3919 = vmatmul.mubr.bf16.gmra.mrb[0].mxu0 %v2190
      %v3920 = vpop.f32.mrb[0].mxu0
      %v3921 = vadd.f32 0.0, %v3920
      %v3922 = vpop.f32.mrb[0].mxu0
      %v3923 = vpop.f32.mrb[0].mxu0
      %v3924 = vadd.f32 0.0, %v3923
      %v3925 = vpop.f32.mrb[0].mxu0
      %3926 = vmatprep.mubr.bf16.mxu0 0
      %3927 = vmatmul.mubr.bf16.gmra.mrb[0].mxu0 %v2193
      %v3928 = vpop.f32.mrb[0].mxu0
      %v3929 = vadd.f32 0.0, %v3928
      %v3930 = vpop.f32.mrb[0].mxu0
      %v3931 = vpop.f32.mrb[0].mxu0
      %v3932 = vadd.f32 0.0, %v3931
      %v3933 = vpop.f32.mrb[0].mxu0
      %3934 = vmatprep.mubr.bf16.mxu0 0
      %3935 = vmatmul.mubr.bf16.gmra.mrb[0].mxu0 %v2196
      %v3936 = vpop.f32.mrb[0].mxu0
      %v3937 = vadd.f32 0.0, %v3936
      %v3938 = vpop.f32.mrb[0].mxu0
      %v3939 = vpop.f32.mrb[0].mxu0
      %v3940 = vadd.f32 0.0, %v3939
      %v3941 = vpop.f32.mrb[0].mxu0
      %3942 = vmatprep.mubr.bf16.mxu0 0
      %3943 = vmatmul.mubr.bf16.gmra.mrb[0].mxu0 %v2199
      %v3944 = vpop.f32.mrb[0].mxu0
      %v3945 = vadd.f32 0.0, %v3944
      %v3946 = vpop.f32.mrb[0].mxu0
      %v3947 = vpop.f32.mrb[0].mxu0
      %v3948 = vadd.f32 0.0, %v3947
      %v3949 = vpop.f32.mrb[0].mxu0
      %3950 = vmatprep.mubr.bf16.mxu0 0
      %3951 = vmatmul.mubr.bf16.gmra.mrb[0].mxu0 %v2202
      %v3952 = vpop.f32.mrb[0].mxu0
      %v3953 = vadd.f32 0.0, %v3952
      %v3954 = vpop.f32.mrb[0].mxu0
      %v3955 = vpop.f32.mrb[0].mxu0
      %v3956 = vadd.f32 0.0, %v3955
      %v3957 = vpop.f32.mrb[0].mxu0
      %3958 = vmatprep.mubr.bf16.mxu0 0
      %3959 = vmatmul.mubr.bf16.gmra.mrb[0].mxu0 %v2205
      %v3960 = vpop.f32.mrb[0].mxu0
      %v3961 = vadd.f32 0.0, %v3960
      %v3962 = vpop.f32.mrb[0].mxu0
      %v3963 = vpop.f32.mrb[0].mxu0
      %v3964 = vadd.f32 0.0, %v3963
      %v3965 = vpop.f32.mrb[0].mxu0
      %3966 = vmatprep.mubr.bf16.mxu0 0
      %3967 = vmatmul.mubr.bf16.gmra.mrb[0].mxu0 %v2208
      %v3968 = vpop.f32.mrb[0].mxu0
      %v3969 = vadd.f32 0.0, %v3968
      %v3970 = vpop.f32.mrb[0].mxu0
      %v3971 = vpop.f32.mrb[0].mxu0
      %v3972 = vadd.f32 0.0, %v3971
      %v3973 = vpop.f32.mrb[0].mxu0
      %3974 = vmatprep.mubr.bf16.mxu0 0
      %3975 = vmatmul.mubr.bf16.gmra.mrb[0].mxu0 %v2211
      %v3976 = vpop.f32.mrb[0].mxu0
      %v3977 = vadd.f32 0.0, %v3976
      %v3978 = vpop.f32.mrb[0].mxu0
      %v3979 = vpop.f32.mrb[0].mxu0
      %v3980 = vadd.f32 0.0, %v3979
      %v3981 = vpop.f32.mrb[0].mxu0
      %3982 = vmatprep.mubr.bf16.mxu0 0
      %3983 = vmatmul.mubr.bf16.gmra.mrb[0].mxu0 %v2214
      %v3984 = vpop.f32.mrb[0].mxu0
      %v3985 = vadd.f32 0.0, %v3984
      %v3986 = vpop.f32.mrb[0].mxu0
      %v3987 = vpop.f32.mrb[0].mxu0
      %v3988 = vadd.f32 0.0, %v3987
      %v3989 = vpop.f32.mrb[0].mxu0
      %3990 = vmatprep.mubr.bf16.mxu0 0
      %3991 = vmatmul.mubr.bf16.gmra.mrb[0].mxu0 %v2217
      %v3992 = vpop.f32.mrb[0].mxu0
      %v3993 = vadd.f32 0.0, %v3992
      %v3994 = vpop.f32.mrb[0].mxu0
      %v3995 = vpop.f32.mrb[0].mxu0
      %v3996 = vadd.f32 0.0, %v3995
      %v3997 = vpop.f32.mrb[0].mxu0
      %3998 = vmatprep.mubr.bf16.mxu0 0
      %3999 = vmatmul.mubr.bf16.gmra.mrb[0].mxu0 %v2220
      %v4000 = vpop.f32.mrb[0].mxu0
      %v4001 = vadd.f32 0.0, %v4000
      %v4002 = vpop.f32.mrb[0].mxu0
      %v4003 = vpop.f32.mrb[0].mxu0
      %v4004 = vadd.f32 0.0, %v4003
      %v4005 = vpop.f32.mrb[0].mxu0
      %4006 = vmatprep.mubr.bf16.mxu0 0
      %4007 = vmatmul.mubr.bf16.gmra.mrb[0].mxu0 %v2223
      %v4008 = vpop.f32.mrb[0].mxu0
      %v4009 = vadd.f32 0.0, %v4008
      %v4010 = vpop.f32.mrb[0].mxu0
      %v4011 = vpop.f32.mrb[0].mxu0
      %v4012 = vadd.f32 0.0, %v4011
      %v4013 = vpop.f32.mrb[0].mxu0
      %4014 = vmatprep.mubr.bf16.mxu0 0
      %4015 = vmatmul.mubr.bf16.gmra.mrb[0].mxu0 %v2226
      %v4016 = vpop.f32.mrb[0].mxu0
      %v4017 = vadd.f32 0.0, %v4016
      %v4018 = vpop.f32.mrb[0].mxu0
      %v4019 = vpop.f32.mrb[0].mxu0
      %v4020 = vadd.f32 0.0, %v4019
      %v4021 = vpop.f32.mrb[0].mxu0
      %4022 = vmatprep.mubr.bf16.mxu0 0
      %4023 = vmatmul.mubr.bf16.gmra.mrb[0].mxu0 %v3233
      %v4024 = vpop.f32.mrb[0].mxu0
      %v4025 = vadd.f32 0.0, %v4024
      %v4026 = vpop.f32.mrb[0].mxu0
      %v4027 = vpop.f32.mrb[0].mxu0
      %v4028 = vadd.f32 0.0, %v4027
      %v4029 = vpop.f32.mrb[0].mxu0
      %4030 = vmatprep.mubr.bf16.mxu0 0
      %4031 = vmatmul.mubr.bf16.gmra.mrb[0].mxu0 %v2181
      %v4032 = vpop.f32.mrb[0].mxu0
      %v4033 = vadd.f32 0.0, %v4032
      %v4034 = vpop.f32.mrb[0].mxu0
      %v4035 = vpop.f32.mrb[0].mxu0
      %v4036 = vadd.f32 0.0, %v4035
      %v4037 = vpop.f32.mrb[0].mxu0
      %4038 = vdwg.mxu0
      %v4039 = vadd.f32 %v3829, %v3913
      %v4040 = vadd.f32 %v3830, %v3916
      %v4041 = vadd.f32 %v3831, %v3921
      %v4042 = vadd.f32 %v3832, %v3924
      %v4043 = vadd.f32 %v3833, %v3929
      %v4044 = vadd.f32 %v3834, %v3932
      %v4045 = vadd.f32 %v3835, %v3937
      %v4046 = vadd.f32 %v3836, %v3940
      %v4047 = vadd.f32 %v3837, %v3945
      %v4048 = vadd.f32 %v3838, %v3948
      %v4049 = vadd.f32 %v3839, %v3953
      %v4050 = vadd.f32 %v3840, %v3956
      %v4051 = vadd.f32 %v3841, %v3961
      %v4052 = vadd.f32 %v3842, %v3964
      %v4053 = vadd.f32 %v3843, %v3969
      %v4054 = vadd.f32 %v3844, %v3972
      %v4055 = vadd.f32 %v3845, %v3977
      %v4056 = vadd.f32 %v3846, %v3980
      %v4057 = vadd.f32 %v3847, %v3985
      %v4058 = vadd.f32 %v3848, %v3988
      %v4059 = vadd.f32 %v3849, %v3993
      %v4060 = vadd.f32 %v3850, %v3996
      %v4061 = vadd.f32 %v3851, %v4001
      %v4062 = vadd.f32 %v3852, %v4004
      %v4063 = vadd.f32 %v3853, %v4009
      %v4064 = vadd.f32 %v3854, %v4012
      %v4065 = vadd.f32 %v3855, %v4017
      %v4066 = vadd.f32 %v3856, %v4020
      %v4067 = vadd.f32 %v3857, %v4025
      %v4068 = vadd.f32 %v3858, %v4028
      %v4069 = vadd.f32 %v3859, %v4033
      %v4070 = vadd.f32 %v3860, %v4036
      %s4071 = scalar_lea.vmem %s7, 128
      %v4072 = vld [vmem:[%s4071] sm:$0xf]
      %v4073 = vld [vmem:[%s4071 + $0x4] sm:$0xf]
      %v4074 = vld [vmem:[%s4071 + $0x8] sm:$0xf]
      %v4075 = vld [vmem:[%s4071 + $0xc] sm:$0xf]
      %v4080 = vunpack.c.l.b16 %v4072
      %v4081 = vunpack.c.l.b16 %v4073
      %v4082 = vunpack.c.l.b16 %v4074
      %v4083 = vunpack.c.l.b16 %v4075
      %v4084 = vpack.c.b16 %v4081, %v4080
      %v4085 = vpack.c.b16 %v4083, %v4082
      %4088 = vmatprep.subr.bf16.mxu0 0
      %4089 = vmatpush1.bf16.msra.mxu0 %v4084
      %4090 = vmatprep.subr.bf16.mxu0 0
      %4091 = vmatpush1.bf16.msra.mxu0 %v4085
      %4092 = vmatprep.subr.bf16.mxu0 0
      %4093 = vmatpush1.bf16.msra.mxu0 0
      %4094 = vmatprep.subr.bf16.mxu0 0
      %4095 = vmatpush1.bf16.msra.mxu0 0
      %4096 = vmatprep.subr.bf16.mxu0 0
      %4097 = vmatpush1.bf16.msra.mxu0 0
      %4098 = vmatprep.subr.bf16.mxu0 0
      %4099 = vmatpush1.bf16.msra.mxu0 0
      %4100 = vmatprep.subr.bf16.mxu0 0
      %4101 = vmatpush1.bf16.msra.mxu0 0
      %4102 = vmatprep.subr.bf16.mxu0 0
      %4103 = vmatpush1.bf16.msra.mxu0 0
      %4104 = vmatprep.subr.bf16.mxu0 0
      %4105 = vmatpush1.bf16.msra.mxu0 0
      %4106 = vmatprep.subr.bf16.mxu0 0
      %4107 = vmatpush1.bf16.msra.mxu0 0
      %4108 = vmatprep.subr.bf16.mxu0 0
      %4109 = vmatpush1.bf16.msra.mxu0 0
      %4110 = vmatprep.subr.bf16.mxu0 0
      %4111 = vmatpush1.bf16.msra.mxu0 0
      %4112 = vmatprep.subr.bf16.mxu0 0
      %4113 = vmatpush1.bf16.msra.mxu0 0
      %4114 = vmatprep.subr.bf16.mxu0 0
      %4115 = vmatpush1.bf16.msra.mxu0 0
      %4116 = vmatprep.subr.bf16.mxu0 0
      %4117 = vmatpush1.bf16.msra.mxu0 0
      %4118 = vmatprep.subr.bf16.mxu0 0
      %4119 = vmatpush1.bf16.msra.mxu0 0
      %4120 = vmatprep.mubr.bf16.mxu0 0
      %4121 = vmatmul.mubr.bf16.gmra.mrb[0].mxu0 %v2760
      %v4122 = vpop.f32.mrb[0].mxu0
      %v4123 = vadd.f32 0.0, %v4122
      %v4124 = vpop.f32.mrb[0].mxu0
      %v4125 = vpop.f32.mrb[0].mxu0
      %v4126 = vadd.f32 0.0, %v4125
      %v4127 = vpop.f32.mrb[0].mxu0
      %4128 = vmatprep.mubr.bf16.mxu0 0
      %4129 = vmatmul.mubr.bf16.gmra.mrb[0].mxu0 %v2763
      %v4130 = vpop.f32.mrb[0].mxu0
      %v4131 = vadd.f32 0.0, %v4130
      %v4132 = vpop.f32.mrb[0].mxu0
      %v4133 = vpop.f32.mrb[0].mxu0
      %v4134 = vadd.f32 0.0, %v4133
      %v4135 = vpop.f32.mrb[0].mxu0
      %4136 = vmatprep.mubr.bf16.mxu0 0
      %4137 = vmatmul.mubr.bf16.gmra.mrb[0].mxu0 %v2766
      %v4138 = vpop.f32.mrb[0].mxu0
      %v4139 = vadd.f32 0.0, %v4138
      %v4140 = vpop.f32.mrb[0].mxu0
      %v4141 = vpop.f32.mrb[0].mxu0
      %v4142 = vadd.f32 0.0, %v4141
      %v4143 = vpop.f32.mrb[0].mxu0
      %4144 = vmatprep.mubr.bf16.mxu0 0
      %4145 = vmatmul.mubr.bf16.gmra.mrb[0].mxu0 %v2769
      %v4146 = vpop.f32.mrb[0].mxu0
      %v4147 = vadd.f32 0.0, %v4146
      %v4148 = vpop.f32.mrb[0].mxu0
      %v4149 = vpop.f32.mrb[0].mxu0
      %v4150 = vadd.f32 0.0, %v4149
      %v4151 = vpop.f32.mrb[0].mxu0
      %4152 = vmatprep.mubr.bf16.mxu0 0
      %4153 = vmatmul.mubr.bf16.gmra.mrb[0].mxu0 %v2772
      %v4154 = vpop.f32.mrb[0].mxu0
      %v4155 = vadd.f32 0.0, %v4154
      %v4156 = vpop.f32.mrb[0].mxu0
      %v4157 = vpop.f32.mrb[0].mxu0
      %v4158 = vadd.f32 0.0, %v4157
      %v4159 = vpop.f32.mrb[0].mxu0
      %4160 = vmatprep.mubr.bf16.mxu0 0
      %4161 = vmatmul.mubr.bf16.gmra.mrb[0].mxu0 %v2775
      %v4162 = vpop.f32.mrb[0].mxu0
      %v4163 = vadd.f32 0.0, %v4162
      %v4164 = vpop.f32.mrb[0].mxu0
      %v4165 = vpop.f32.mrb[0].mxu0
      %v4166 = vadd.f32 0.0, %v4165
      %v4167 = vpop.f32.mrb[0].mxu0
      %4168 = vmatprep.mubr.bf16.mxu0 0
      %4169 = vmatmul.mubr.bf16.gmra.mrb[0].mxu0 %v2778
      %v4170 = vpop.f32.mrb[0].mxu0
      %v4171 = vadd.f32 0.0, %v4170
      %v4172 = vpop.f32.mrb[0].mxu0
      %v4173 = vpop.f32.mrb[0].mxu0
      %v4174 = vadd.f32 0.0, %v4173
      %v4175 = vpop.f32.mrb[0].mxu0
      %4176 = vmatprep.mubr.bf16.mxu0 0
      %4177 = vmatmul.mubr.bf16.gmra.mrb[0].mxu0 %v2781
      %v4178 = vpop.f32.mrb[0].mxu0
      %v4179 = vadd.f32 0.0, %v4178
      %v4180 = vpop.f32.mrb[0].mxu0
      %v4181 = vpop.f32.mrb[0].mxu0
      %v4182 = vadd.f32 0.0, %v4181
      %v4183 = vpop.f32.mrb[0].mxu0
      %4184 = vmatprep.mubr.bf16.mxu0 0
      %4185 = vmatmul.mubr.bf16.gmra.mrb[0].mxu0 %v2784
      %v4186 = vpop.f32.mrb[0].mxu0
      %v4187 = vadd.f32 0.0, %v4186
      %v4188 = vpop.f32.mrb[0].mxu0
      %v4189 = vpop.f32.mrb[0].mxu0
      %v4190 = vadd.f32 0.0, %v4189
      %v4191 = vpop.f32.mrb[0].mxu0
      %4192 = vmatprep.mubr.bf16.mxu0 0
      %4193 = vmatmul.mubr.bf16.gmra.mrb[0].mxu0 %v2787
      %v4194 = vpop.f32.mrb[0].mxu0
      %v4195 = vadd.f32 0.0, %v4194
      %v4196 = vpop.f32.mrb[0].mxu0
      %v4197 = vpop.f32.mrb[0].mxu0
      %v4198 = vadd.f32 0.0, %v4197
      %v4199 = vpop.f32.mrb[0].mxu0
      %4200 = vmatprep.mubr.bf16.mxu0 0
      %4201 = vmatmul.mubr.bf16.gmra.mrb[0].mxu0 %v2790
      %v4202 = vpop.f32.mrb[0].mxu0
      %v4203 = vadd.f32 0.0, %v4202
      %v4204 = vpop.f32.mrb[0].mxu0
      %v4205 = vpop.f32.mrb[0].mxu0
      %v4206 = vadd.f32 0.0, %v4205
      %v4207 = vpop.f32.mrb[0].mxu0
      %4208 = vmatprep.mubr.bf16.mxu0 0
      %4209 = vmatmul.mubr.bf16.gmra.mrb[0].mxu0 %v2793
      %v4210 = vpop.f32.mrb[0].mxu0
      %v4211 = vadd.f32 0.0, %v4210
      %v4212 = vpop.f32.mrb[0].mxu0
      %v4213 = vpop.f32.mrb[0].mxu0
      %v4214 = vadd.f32 0.0, %v4213
      %v4215 = vpop.f32.mrb[0].mxu0
      %4216 = vmatprep.mubr.bf16.mxu0 0
      %4217 = vmatmul.mubr.bf16.gmra.mrb[0].mxu0 %v2796
      %v4218 = vpop.f32.mrb[0].mxu0
      %v4219 = vadd.f32 0.0, %v4218
      %v4220 = vpop.f32.mrb[0].mxu0
      %v4221 = vpop.f32.mrb[0].mxu0
      %v4222 = vadd.f32 0.0, %v4221
      %v4223 = vpop.f32.mrb[0].mxu0
      %4224 = vmatprep.mubr.bf16.mxu0 0
      %4225 = vmatmul.mubr.bf16.gmra.mrb[0].mxu0 %v2799
      %v4226 = vpop.f32.mrb[0].mxu0
      %v4227 = vadd.f32 0.0, %v4226
      %v4228 = vpop.f32.mrb[0].mxu0
      %v4229 = vpop.f32.mrb[0].mxu0
      %v4230 = vadd.f32 0.0, %v4229
      %v4231 = vpop.f32.mrb[0].mxu0
      %4232 = vmatprep.mubr.bf16.mxu0 0
      %4233 = vmatmul.mubr.bf16.gmra.mrb[0].mxu0 %v3451
      %v4234 = vpop.f32.mrb[0].mxu0
      %v4235 = vadd.f32 0.0, %v4234
      %v4236 = vpop.f32.mrb[0].mxu0
      %v4237 = vpop.f32.mrb[0].mxu0
      %v4238 = vadd.f32 0.0, %v4237
      %v4239 = vpop.f32.mrb[0].mxu0
      %4240 = vmatprep.mubr.bf16.mxu0 0
      %4241 = vmatmul.mubr.bf16.gmra.mrb[0].mxu0 %v2181
      %v4242 = vpop.f32.mrb[0].mxu0
      %v4243 = vadd.f32 0.0, %v4242
      %v4244 = vpop.f32.mrb[0].mxu0
      %v4245 = vpop.f32.mrb[0].mxu0
      %v4246 = vadd.f32 0.0, %v4245
      %v4247 = vpop.f32.mrb[0].mxu0
      %4248 = vdwg.mxu0
      %v4249 = vadd.f32 %v4039, %v4123
      %v4250 = vadd.f32 %v4040, %v4126
      %v4251 = vadd.f32 %v4041, %v4131
      %v4252 = vadd.f32 %v4042, %v4134
      %v4253 = vadd.f32 %v4043, %v4139
      %v4254 = vadd.f32 %v4044, %v4142
      %v4255 = vadd.f32 %v4045, %v4147
      %v4256 = vadd.f32 %v4046, %v4150
      %v4257 = vadd.f32 %v4047, %v4155
      %v4258 = vadd.f32 %v4048, %v4158
      %v4259 = vadd.f32 %v4049, %v4163
      %v4260 = vadd.f32 %v4050, %v4166
      %v4261 = vadd.f32 %v4051, %v4171
      %v4262 = vadd.f32 %v4052, %v4174
      %v4263 = vadd.f32 %v4053, %v4179
      %v4264 = vadd.f32 %v4054, %v4182
      %v4265 = vadd.f32 %v4055, %v4187
      %v4266 = vadd.f32 %v4056, %v4190
      %v4267 = vadd.f32 %v4057, %v4195
      %v4268 = vadd.f32 %v4058, %v4198
      %v4269 = vadd.f32 %v4059, %v4203
      %v4270 = vadd.f32 %v4060, %v4206
      %v4271 = vadd.f32 %v4061, %v4211
      %v4272 = vadd.f32 %v4062, %v4214
      %v4273 = vadd.f32 %v4063, %v4219
      %v4274 = vadd.f32 %v4064, %v4222
      %v4275 = vadd.f32 %v4065, %v4227
      %v4276 = vadd.f32 %v4066, %v4230
      %v4277 = vadd.f32 %v4067, %v4235
      %v4278 = vadd.f32 %v4068, %v4238
      %v4279 = vadd.f32 %v4069, %v4243
      %v4280 = vadd.f32 %v4070, %v4246
      %v4281 = vld [vmem:[%s8] sm:$0x1]
      %v4283 = vlaneseq
      %v4284 = vshrl.u32 %v4283, 7
      %v4285 = vsub.s32 0, %v4284
      %v4286 = vrot.slane %v4281, %v4285
      %v4288 = vadd.f32 %v4249, %v4286
      %v4289 = vadd.f32 %v4250, %v4286
      %v4290 = vadd.f32 %v4251, %v4286
      %v4291 = vadd.f32 %v4252, %v4286
      %v4292 = vadd.f32 %v4253, %v4286
      %v4293 = vadd.f32 %v4254, %v4286
      %v4294 = vadd.f32 %v4255, %v4286
      %v4295 = vadd.f32 %v4256, %v4286
      %v4296 = vadd.f32 %v4257, %v4286
      %v4297 = vadd.f32 %v4258, %v4286
      %v4298 = vadd.f32 %v4259, %v4286
      %v4299 = vadd.f32 %v4260, %v4286
      %v4300 = vadd.f32 %v4261, %v4286
      %v4301 = vadd.f32 %v4262, %v4286
      %v4302 = vadd.f32 %v4263, %v4286
      %v4303 = vadd.f32 %v4264, %v4286
      %v4304 = vadd.f32 %v4265, %v4286
      %v4305 = vadd.f32 %v4266, %v4286
      %v4306 = vadd.f32 %v4267, %v4286
      %v4307 = vadd.f32 %v4268, %v4286
      %v4308 = vadd.f32 %v4269, %v4286
      %v4309 = vadd.f32 %v4270, %v4286
      %v4310 = vadd.f32 %v4271, %v4286
      %v4311 = vadd.f32 %v4272, %v4286
      %v4312 = vadd.f32 %v4273, %v4286
      %v4313 = vadd.f32 %v4274, %v4286
      %v4314 = vadd.f32 %v4275, %v4286
      %v4315 = vadd.f32 %v4276, %v4286
      %v4316 = vadd.f32 %v4277, %v4286
      %v4317 = vadd.f32 %v4278, %v4286
      %v4318 = vadd.f32 %v4279, %v4286
      %v4319 = vadd.f32 %v4280, %v4286
      %4320 = vst [vmem:[%s394] sm:$0xff] %v4288
      %4321 = vst [vmem:[%s394 + $0x8] sm:$0xff] %v4289
      %4322 = vst [vmem:[%s394 + $0x10] sm:$0xff] %v4290
      %4323 = vst [vmem:[%s394 + $0x18] sm:$0xff] %v4291
      %4324 = vst [vmem:[%s394 + $0x20] sm:$0xff] %v4292
      %4325 = vst [vmem:[%s394 + $0x28] sm:$0xff] %v4293
      %4326 = vst [vmem:[%s394 + $0x30] sm:$0xff] %v4294
      %4327 = vst [vmem:[%s394 + $0x38] sm:$0xff] %v4295
      %4328 = vst [vmem:[%s394 + $0x40] sm:$0xff] %v4296
      %4329 = vst [vmem:[%s394 + $0x48] sm:$0xff] %v4297
      %4330 = vst [vmem:[%s394 + $0x50] sm:$0xff] %v4298
      %4331 = vst [vmem:[%s394 + $0x58] sm:$0xff] %v4299
      %4332 = vst [vmem:[%s394 + $0x60] sm:$0xff] %v4300
      %4333 = vst [vmem:[%s394 + $0x68] sm:$0xff] %v4301
      %4334 = vst [vmem:[%s394 + $0x70] sm:$0xff] %v4302
      %4335 = vst [vmem:[%s394 + $0x78] sm:$0xff] %v4303
      %4336 = vst [vmem:[%s394 + $0x80] sm:$0xff] %v4304
      %4337 = vst [vmem:[%s394 + $0x88] sm:$0xff] %v4305
      %4338 = vst [vmem:[%s394 + $0x90] sm:$0xff] %v4306
      %4339 = vst [vmem:[%s394 + $0x98] sm:$0xff] %v4307
      %4340 = vst [vmem:[%s394 + $0xa0] sm:$0xff] %v4308
      %4341 = vst [vmem:[%s394 + $0xa8] sm:$0xff] %v4309
      %4342 = vst [vmem:[%s394 + $0xb0] sm:$0xff] %v4310
      %4343 = vst [vmem:[%s394 + $0xb8] sm:$0xff] %v4311
      %4344 = vst [vmem:[%s394 + $0xc0] sm:$0xff] %v4312
      %4345 = vst [vmem:[%s394 + $0xc8] sm:$0xff] %v4313
      %4346 = vst [vmem:[%s394 + $0xd0] sm:$0xff] %v4314
      %4347 = vst [vmem:[%s394 + $0xd8] sm:$0xff] %v4315
      %4348 = vst [vmem:[%s394 + $0xe0] sm:$0xff] %v4316
      %4349 = vst [vmem:[%s394 + $0xe8] sm:$0xff] %v4317
      %4350 = vst [vmem:[%s394 + $0xf0] sm:$0xff] %v4318
      %4351 = vst [vmem:[%s394 + $0xf8] sm:$0xff] %v4319
      %p4352 = scmp.lt.s32.totalorder %s20, 1
      %s4353 = scalar_select %p4352, %s20, 1
      %s4354 = smul.addr %s4353, 32
      %s4355 = smul.addr %s4354, 8
      %s4356 = scalar_lea.vmem %s9, %s4355
      // Predicated region
      $region57: #{ddpm_forward.1} parent=55 // pred_check
        %p4357 = pneg %p252
      $region58: #{ddpm_forward.1} parent=55 // pred_check_branch
        %4359 = sbr.rel (%p4357) target = $region60
      $region59: #{ddpm_forward.1} parent=55 // pred_region
        _
      $region60: #{ddpm_forward.1} parent=55 // pred_fallthru
        _
    $region56: #{ddpm_forward.1} parent=5 // pred_fallthru
      _
    %p4360 = scmp.le.s32.totalorder 2, %s15
    // Predicated region
    $region61: #{ddpm_forward.1} parent=5 // pred_check
      %p4361 = pneg %p4360
    $region62: #{ddpm_forward.1} parent=5 // pred_check_branch
      %4363 = sbr.rel (%p4361) target = $region64
    $region63: #{ddpm_forward.1} parent=5 // pred_region
      %s4364 = ssub.s32 %s15, 2
      // Predicated region
      $region65: #{ddpm_forward.1} parent=63 // pred_check
        %p4365 = pneg %p258
      $region66: #{ddpm_forward.1} parent=63 // pred_check_branch
        %4367 = sbr.rel (%p4365) target = $region68
      $region67: #{ddpm_forward.1} parent=63 // pred_region
        %p4368 = scmp.lt.s32.totalorder %s21, 1
        %s4369 = scalar_select %p4368, %s21, 1
        %s4370 = smul.addr %s4369, 32
        %s4371 = smul.addr %s4370, 8
        %s4372 = scalar_lea.vmem %s9, %s4371
      $region68: #{ddpm_forward.1} parent=63 // pred_fallthru
        _
    $region64: #{ddpm_forward.1} parent=5 // pred_fallthru
      _
  $region6: #{ddpm_forward.1} parent=0 // loop_footer
    %s19 = sadd.s32 1, %s15
  $region7: #{ddpm_forward.1} parent=0 // loop_footer_branch
    %14 = sbr.rel target = $region3
  $region8: #{ddpm_forward.1} parent=0 // loop_exit
    _

</llo_original>
